<compile_context>
chip_gen: v7x
topology: tpu7x:2x2x1
jax: 0.10.0
libtpu: 0.0.40
codegen_flags: <defaults>
</compile_context>

<pallas_src>
import functools
import math

import jax
import jax.numpy as jnp
from jax.experimental import pallas as pl
from jax.experimental.pallas import tpu as pltpu

_LOG2 = math.log(2.0)


def _ssp(x):
    """ShiftedSoftplus: softplus(x) - log(2)."""
    return jax.nn.softplus(x) - _LOG2


def _round_up(x, m):
    return ((x + m - 1) // m) * m


def _pad_dim(x, axis, target):
    pad = target - x.shape[axis]
    if pad == 0:
        return x
    widths = [(0, 0)] * x.ndim
    widths[axis] = (0, pad)
    return jnp.pad(x, widths)


def _interaction_kernel(feat_ref, rbf_ref, nbr_ref, mask_ref, w_ref, b_ref,
                        out_ref, *, w_offs):
    Fb, Ball, Cp = feat_ref.shape          # all beads of the Fb frames
    _, TB, Np, Gp = rbf_ref.shape          # bead tile of the same frames
    nfp = out_ref.shape[-1]
    rows = Fb * TB * Np
    o_w0, o_wf1, o_wf2, o_wo1, o_wo2 = w_offs

    # Unpack weights from the packed slab (static, 8-aligned row slices).
    w0 = w_ref[o_w0:o_w0 + Cp, :]
    wf1 = w_ref[o_wf1:o_wf1 + Gp, :]
    wf2 = w_ref[o_wf2:o_wf2 + nfp, :]
    wo1 = w_ref[o_wo1:o_wo1 + nfp, :]
    wo2 = w_ref[o_wo2:o_wo2 + nfp, :]
    bf1 = b_ref[0:1, :]
    bf2 = b_ref[1:2, :]
    bo1 = b_ref[2:3, :]
    bo2 = b_ref[3:4, :]

    # 1) initial atom-wise dense (no bias/activation) over ALL beads of the
    #    Fb frames -- it is the gather source for this bead tile.
    feat2d = feat_ref[...].reshape(Fb * Ball, Cp)               # bf16
    init = jnp.dot(feat2d, w0, preferred_element_type=jnp.float32)
    init_bf = init.astype(jnp.bfloat16)                         # (Fb*Ball, nfp)

    # 2a) filter generator: Linear -> ShiftedSoftplus -> Linear
    rbf2d = rbf_ref[...].reshape(rows, Gp)                      # bf16
    h = _ssp(jnp.dot(rbf2d, wf1, preferred_element_type=jnp.float32) + bf1)
    filt = jnp.dot(h.astype(jnp.bfloat16), wf2,
                   preferred_element_type=jnp.float32) + bf2    # (rows, nfp) f32

    # 2b) masked neighbor gather as a one-hot (bf16) matmul on the MXU.
    #     The neighbor mask is folded into the one-hot (values 0/1*mask are
    #     exact in bf16).  Out-of-range indices gather zeros (torch.gather
    #     would raise instead).
    nbr = nbr_ref[...]                                          # (Fb,TB,Np,1) i32
    frame = jax.lax.broadcasted_iota(jnp.int32, (Fb, TB, Np, 1), 0)
    gidx = frame * Ball + nbr                                   # index into init
    cols = jax.lax.broadcasted_iota(jnp.int32, (Fb, TB, Np, Fb * Ball), 3)
    mask_bf = mask_ref[...].astype(jnp.bfloat16)                # (Fb,TB,Np,1)
    onehot = ((gidx == cols).astype(jnp.bfloat16) * mask_bf
              ).reshape(rows, Fb * Ball)
    nbr_feat = jnp.dot(onehot, init_bf,
                       preferred_element_type=jnp.float32)      # (rows, nfp) f32

    # 2c) continuous-filter convolution + neighbor-sum (Np is a multiple of 8,
    #     so the reshape is sublane-tile aligned and incurs no relayout).
    conv = nbr_feat * filt
    agg = conv.reshape(Fb * TB, Np, nfp).sum(axis=1)            # (Fb*TB, nfp)

    # 3/4) output dense: Linear -> ShiftedSoftplus -> Linear
    h2 = _ssp(jnp.dot(agg.astype(jnp.bfloat16), wo1,
                      preferred_element_type=jnp.float32) + bo1)
    out = jnp.dot(h2.astype(jnp.bfloat16), wo2,
                  preferred_element_type=jnp.float32) + bo2     # (Fb*TB, nfp)

    out_ref[...] = out.reshape(Fb, TB, nfp).astype(out_ref.dtype)


@functools.partial(jax.jit, static_argnames=("frames_per_block",
                                             "beads_per_block"))
def interaction_block(features, rbf, neighbor_list, neighbor_mask, params,
                      *, frames_per_block=None, beads_per_block=None):
    F, B, C = features.shape
    _, _, N, G = rbf.shape
    nf = params["w0"].shape[1]

    # Padded, layout-friendly sizes (zero padding keeps results exact).
    nfp = _round_up(nf, 128)          # lane-dense hidden/output width
    Bp = _round_up(B, 8)
    Np = _round_up(N, 8)
    Cp = _round_up(C, 8)
    Gp = _round_up(G, 8)

    cdt = jnp.bfloat16

    feat = _pad_dim(_pad_dim(features, 1, Bp), 2, Cp).astype(cdt)
    rbf_p = _pad_dim(_pad_dim(_pad_dim(rbf, 1, Bp), 2, Np), 3, Gp).astype(cdt)
    nbr = _pad_dim(_pad_dim(neighbor_list.astype(jnp.int32), 1, Bp), 2, Np)
    nbr = nbr.reshape(F, Bp, Np, 1)
    mask = _pad_dim(_pad_dim(neighbor_mask.astype(jnp.float32), 1, Bp), 2, Np)
    mask = mask.reshape(F, Bp, Np, 1)

    # Pack weights into one bf16 slab (rows: w0 | wf1 | wf2 | wo1 | wo2) and
    # biases into one (4, nfp) f32 slab -> 2 constant inputs instead of 9.
    def _pw(w, rows):
        return _pad_dim(_pad_dim(w, 0, rows), 1, nfp)

    w_packed = jnp.concatenate(
        [_pw(params["w0"], Cp), _pw(params["wf1"], Gp), _pw(params["wf2"], nfp),
         _pw(params["wo1"], nfp), _pw(params["wo2"], nfp)], axis=0).astype(cdt)
    w_offs = (0, Cp, Cp + Gp, Cp + Gp + nfp, Cp + Gp + 2 * nfp)
    b_packed = jnp.concatenate(
        [_pad_dim(params["bf1"], 1, nfp), _pad_dim(params["bf2"], 1, nfp),
         _pad_dim(params["bo1"], 1, nfp), _pad_dim(params["bo2"], 1, nfp)],
        axis=0).astype(jnp.float32)                               # (4, nfp)

    # Frame / bead tiling.
    if frames_per_block is None:
        frames_per_block = 1
        for d in range(1, F + 1):
            if F % d == 0 and d * Bp * Np <= 2048:
                frames_per_block = d
    if F % frames_per_block != 0:
        frames_per_block = 1
    if (beads_per_block is None or Bp % beads_per_block != 0
            or beads_per_block % 8 != 0):
        beads_per_block = Bp
    Fb, TB = frames_per_block, beads_per_block
    grid = (F // Fb, Bp // TB)

    kernel = functools.partial(_interaction_kernel, w_offs=w_offs)

    out = pl.pallas_call(
        kernel,
        out_shape=jax.ShapeDtypeStruct((F, Bp, nfp), jnp.float32),
        grid=grid,
        in_specs=[
            pl.BlockSpec((Fb, Bp, Cp), lambda fi, bi: (fi, 0, 0)),
            pl.BlockSpec((Fb, TB, Np, Gp), lambda fi, bi: (fi, bi, 0, 0)),
            pl.BlockSpec((Fb, TB, Np, 1), lambda fi, bi: (fi, bi, 0, 0)),
            pl.BlockSpec((Fb, TB, Np, 1), lambda fi, bi: (fi, bi, 0, 0)),
            pl.BlockSpec(w_packed.shape, lambda fi, bi: (0, 0)),
            pl.BlockSpec(b_packed.shape, lambda fi, bi: (0, 0)),
        ],
        out_specs=pl.BlockSpec((Fb, TB, nfp), lambda fi, bi: (fi, bi, 0)),
        compiler_params=pltpu.CompilerParams(
            dimension_semantics=("parallel", "parallel"),
            vmem_limit_bytes=32 * 1024 * 1024),
    )(feat, rbf_p, nbr, mask, w_packed, b_packed)

    return out[:, :B, :nf]


def interaction_block_ref(features, rbf, neighbor_list, neighbor_mask, params):
    """Pure-JAX f32 reference mirroring the PyTorch module."""
    F, B, _ = features.shape
    _, _, N, _ = rbf.shape
    init = features @ params["w0"]
    h = _ssp(rbf @ params["wf1"] + params["bf1"][0])
    filt = h @ params["wf2"] + params["bf2"][0]
    nbr_feat = jnp.take_along_axis(
        init, neighbor_list.reshape(F, B * N, 1), axis=1).reshape(F, B, N, -1)
    conv = nbr_feat * filt * neighbor_mask[..., None]
    agg = conv.sum(axis=2)
    h2 = _ssp(agg @ params["wo1"] + params["bo1"][0])
    return h2 @ params["wo2"] + params["bo2"][0]


def make_params(key, n_inputs, n_gaussians, n_filters):
    ks = jax.random.split(key, 8)
    s = 0.1
    return {
        "w0":  s * jax.random.normal(ks[0], (n_inputs, n_filters), jnp.float32),
        "wf1": s * jax.random.normal(ks[1], (n_gaussians, n_filters), jnp.float32),
        "bf1": s * jax.random.normal(ks[2], (1, n_filters), jnp.float32),
        "wf2": s * jax.random.normal(ks[3], (n_filters, n_filters), jnp.float32),
        "bf2": s * jax.random.normal(ks[4], (1, n_filters), jnp.float32),
        "wo1": s * jax.random.normal(ks[5], (n_filters, n_filters), jnp.float32),
        "bo1": s * jax.random.normal(ks[6], (1, n_filters), jnp.float32),
        "wo2": s * jax.random.normal(ks[7], (n_filters, n_filters), jnp.float32),
        "bo2": jnp.zeros((1, n_filters), jnp.float32),
    }


if __name__ == "__main__":
    # Small but lane/MXU-friendly shapes (typical SchNet uses n_filters=128).
    n_frames, n_beads, n_neighbors = 8, 16, 8
    n_inputs, n_gaussians, n_filters = 32, 32, 128

    key = jax.random.PRNGKey(0)
    k1, k2, k3, k4, kp = jax.random.split(key, 5)

    features = jax.random.normal(k1, (n_frames, n_beads, n_inputs), jnp.float32)
    rbf = jax.random.normal(
        k2, (n_frames, n_beads, n_neighbors, n_gaussians), jnp.float32)
    neighbor_list = jax.random.randint(
        k3, (n_frames, n_beads, n_neighbors), 0, n_beads, dtype=jnp.int32)
    neighbor_mask = (jax.random.uniform(k4, (n_frames, n_beads, n_neighbors))
                     > 0.25).astype(jnp.float32)

    params = make_params(kp, n_inputs, n_gaussians, n_filters)

    # grid = (2, 2): 4 pipeline steps, 256 matmul rows per step.
    out = interaction_block(features, rbf, neighbor_list, neighbor_mask, params,
                            frames_per_block=4, beads_per_block=8)
    out = jax.block_until_ready(out)

    ref = interaction_block_ref(features, rbf, neighbor_list, neighbor_mask,
                                params)
    assert out.shape == (n_frames, n_beads, n_filters)
    # bf16 matmul operands (f32 accumulation) -> loosened tolerance vs f32 ref.
    assert jnp.allclose(out, ref, atol=3e-2, rtol=3e-2), \
        "mismatch vs JAX reference"

    print("KERNEL_OK")
</pallas_src>

<mosaic_0001>
module attributes {stable_mosaic.version = 11 : i64} {
  func.func @_interaction_kernel(%arg0: i32, %arg1: i32, %arg2: memref<4x16x32xbf16, #tpu.memory_space<vmem>>, %arg3: memref<4x8x8x32xbf16, #tpu.memory_space<vmem>>, %arg4: memref<4x8x8x1xi32, #tpu.memory_space<vmem>>, %arg5: memref<4x8x8x1xf32, #tpu.memory_space<vmem>>, %arg6: memref<448x128xbf16, #tpu.memory_space<vmem>>, %arg7: memref<4x128xf32, #tpu.memory_space<vmem>>, %arg8: memref<4x8x128xf32, #tpu.memory_space<vmem>>) attributes {dimension_semantics = [#tpu.dimension_semantics<parallel>, #tpu.dimension_semantics<parallel>], iteration_bounds = array<i64: 2, 2>, scalar_prefetch = 0 : i64, scratch_operands = 0 : i64, tpu.core_type = #tpu.core_type<tc>, window_params = [{transform_indices = @transform_0, window_bounds = array<i64: 4, 16, 32>}, {transform_indices = @transform_1, window_bounds = array<i64: 4, 8, 8, 32>}, {transform_indices = @transform_2, window_bounds = array<i64: 4, 8, 8, 1>}, {transform_indices = @transform_3, window_bounds = array<i64: 4, 8, 8, 1>}, {pipeline_mode = #tpu.pipeline_mode<synchronous>, transform_indices = @transform_4, window_bounds = array<i64: 448, 128>}, {pipeline_mode = #tpu.pipeline_mode<synchronous>, transform_indices = @transform_5, window_bounds = array<i64: 4, 128>}, {transform_indices = @transform_6, window_bounds = array<i64: 4, 8, 128>}]} {
    %c0 = arith.constant 0 : index
    %c0_0 = arith.constant 0 : index
    %0 = vector.load %arg6[%c0, %c0_0] : memref<448x128xbf16, #tpu.memory_space<vmem>>, vector<32x128xbf16>
    %c32 = arith.constant 32 : index
    %c0_1 = arith.constant 0 : index
    %1 = vector.load %arg6[%c32, %c0_1] : memref<448x128xbf16, #tpu.memory_space<vmem>>, vector<32x128xbf16>
    %c64 = arith.constant 64 : index
    %c0_2 = arith.constant 0 : index
    %2 = vector.load %arg6[%c64, %c0_2] : memref<448x128xbf16, #tpu.memory_space<vmem>>, vector<128x128xbf16>
    %c192 = arith.constant 192 : index
    %c0_3 = arith.constant 0 : index
    %3 = vector.load %arg6[%c192, %c0_3] : memref<448x128xbf16, #tpu.memory_space<vmem>>, vector<128x128xbf16>
    %c320 = arith.constant 320 : index
    %c0_4 = arith.constant 0 : index
    %4 = vector.load %arg6[%c320, %c0_4] : memref<448x128xbf16, #tpu.memory_space<vmem>>, vector<128x128xbf16>
    %c0_5 = arith.constant 0 : index
    %c0_6 = arith.constant 0 : index
    %5 = vector.load %arg7[%c0_5, %c0_6] : memref<4x128xf32, #tpu.memory_space<vmem>>, vector<1x128xf32>
    %c1 = arith.constant 1 : index
    %c0_7 = arith.constant 0 : index
    %6 = vector.load %arg7[%c1, %c0_7] : memref<4x128xf32, #tpu.memory_space<vmem>>, vector<1x128xf32>
    %c2 = arith.constant 2 : index
    %c0_8 = arith.constant 0 : index
    %7 = vector.load %arg7[%c2, %c0_8] : memref<4x128xf32, #tpu.memory_space<vmem>>, vector<1x128xf32>
    %c3 = arith.constant 3 : index
    %c0_9 = arith.constant 0 : index
    %8 = vector.load %arg7[%c3, %c0_9] : memref<4x128xf32, #tpu.memory_space<vmem>>, vector<1x128xf32>
    %c0_10 = arith.constant 0 : index
    %c0_11 = arith.constant 0 : index
    %c0_12 = arith.constant 0 : index
    %9 = vector.load %arg2[%c0_10, %c0_11, %c0_12] : memref<4x16x32xbf16, #tpu.memory_space<vmem>>, vector<4x16x32xbf16>
    %10 = vector.shape_cast %9 : vector<4x16x32xbf16> to vector<64x32xbf16>
    %cst = arith.constant dense<0.000000e+00> : vector<64x128xf32>
    %11 = tpu.matmul %10, %0, %cst {dimension_numbers = #tpu.dot_dimension_numbers<[1], [0], [0], [1], [0, 0, 1, 1], [], []>} : vector<64x32xbf16>, vector<32x128xbf16>, vector<64x128xf32> -> vector<64x128xf32>
    %12 = arith.truncf %11 : vector<64x128xf32> to vector<64x128xbf16>
    %c0_13 = arith.constant 0 : index
    %c0_14 = arith.constant 0 : index
    %c0_15 = arith.constant 0 : index
    %c0_16 = arith.constant 0 : index
    %13 = vector.load %arg3[%c0_13, %c0_14, %c0_15, %c0_16] : memref<4x8x8x32xbf16, #tpu.memory_space<vmem>>, vector<4x8x8x32xbf16>
    %14 = vector.shape_cast %13 : vector<4x8x8x32xbf16> to vector<256x32xbf16>
    %cst_17 = arith.constant dense<0.000000e+00> : vector<256x128xf32>
    %15 = tpu.matmul %14, %1, %cst_17 {dimension_numbers = #tpu.dot_dimension_numbers<[1], [0], [0], [1], [0, 0, 1, 1], [], []>} : vector<256x32xbf16>, vector<32x128xbf16>, vector<256x128xf32> -> vector<256x128xf32>
    %16 = vector.broadcast %5 : vector<1x128xf32> to vector<256x128xf32>
    %17 = arith.addf %15, %16 : vector<256x128xf32>
    %cst_18 = arith.constant 0.000000e+00 : f32
    %18 = vector.broadcast %cst_18 : f32 to vector<256x128xf32>
    %19 = arith.maximumf %17, %18 : vector<256x128xf32>
    %20 = vector.broadcast %cst_18 : f32 to vector<256x128xf32>
    %21 = arith.subf %17, %20 : vector<256x128xf32>
    %22 = arith.cmpf one, %21, %21 : vector<256x128xf32>
    %23 = vector.broadcast %cst_18 : f32 to vector<256x128xf32>
    %24 = arith.addf %17, %23 : vector<256x128xf32>
    %25 = math.absf %21 : vector<256x128xf32>
    %cst_19 = arith.constant 0.000000e+00 : f32
    %26 = vector.broadcast %cst_19 : f32 to vector<256x128xf32>
    %27 = arith.subf %26, %25 : vector<256x128xf32>
    %28 = math.exp %27 : vector<256x128xf32>
    %29 = math.log1p %28 : vector<256x128xf32>
    %30 = arith.addf %19, %29 : vector<256x128xf32>
    %31 = arith.select %22, %24, %30 : vector<256x128xi1>, vector<256x128xf32>
    %cst_20 = arith.constant 0.693147182 : f32
    %32 = vector.broadcast %cst_20 : f32 to vector<256x128xf32>
    %33 = arith.subf %31, %32 : vector<256x128xf32>
    %34 = arith.truncf %33 : vector<256x128xf32> to vector<256x128xbf16>
    %cst_21 = arith.constant dense<0.000000e+00> : vector<256x128xf32>
    %35 = tpu.matmul %34, %2, %cst_21 {dimension_numbers = #tpu.dot_dimension_numbers<[1], [0], [0], [1], [0, 0, 1, 1], [], []>} : vector<256x128xbf16>, vector<128x128xbf16>, vector<256x128xf32> -> vector<256x128xf32>
    %36 = vector.broadcast %6 : vector<1x128xf32> to vector<256x128xf32>
    %37 = arith.addf %35, %36 : vector<256x128xf32>
    %c0_22 = arith.constant 0 : index
    %c0_23 = arith.constant 0 : index
    %c0_24 = arith.constant 0 : index
    %c0_25 = arith.constant 0 : index
    %38 = vector.load %arg4[%c0_22, %c0_23, %c0_24, %c0_25] : memref<4x8x8x1xi32, #tpu.memory_space<vmem>>, vector<4x8x8x1xi32>
    %39 = tpu.iota {dimensions = array<i32: 0>} : vector<4x8x8x1xi32>
    %c16_i32 = arith.constant 16 : i32
    %40 = vector.broadcast %c16_i32 : i32 to vector<4x8x8x1xi32>
    %41 = arith.muli %39, %40 : vector<4x8x8x1xi32>
    %42 = arith.addi %41, %38 : vector<4x8x8x1xi32>
    %43 = tpu.iota {dimensions = array<i32: 3>} : vector<4x8x8x64xi32>
    %c0_26 = arith.constant 0 : index
    %c0_27 = arith.constant 0 : index
    %c0_28 = arith.constant 0 : index
    %c0_29 = arith.constant 0 : index
    %44 = vector.load %arg5[%c0_26, %c0_27, %c0_28, %c0_29] : memref<4x8x8x1xf32, #tpu.memory_space<vmem>>, vector<4x8x8x1xf32>
    %45 = arith.truncf %44 : vector<4x8x8x1xf32> to vector<4x8x8x1xbf16>
    %46 = vector.broadcast %42 : vector<4x8x8x1xi32> to vector<4x8x8x64xi32>
    %47 = arith.cmpi eq, %46, %43 : vector<4x8x8x64xi32>
    %48 = arith.extui %47 : vector<4x8x8x64xi1> to vector<4x8x8x64xi32>
    %49 = arith.sitofp %48 : vector<4x8x8x64xi32> to vector<4x8x8x64xf32>
    %50 = arith.truncf %49 : vector<4x8x8x64xf32> to vector<4x8x8x64xbf16>
    %51 = vector.broadcast %45 : vector<4x8x8x1xbf16> to vector<4x8x8x64xbf16>
    %52 = arith.mulf %50, %51 : vector<4x8x8x64xbf16>
    %53 = vector.shape_cast %52 : vector<4x8x8x64xbf16> to vector<256x64xbf16>
    %cst_30 = arith.constant dense<0.000000e+00> : vector<256x128xf32>
    %54 = tpu.matmul %53, %12, %cst_30 {dimension_numbers = #tpu.dot_dimension_numbers<[1], [0], [0], [1], [0, 0, 1, 1], [], []>} : vector<256x64xbf16>, vector<64x128xbf16>, vector<256x128xf32> -> vector<256x128xf32>
    %55 = arith.mulf %54, %37 : vector<256x128xf32>
    %56 = vector.shape_cast %55 : vector<256x128xf32> to vector<32x8x128xf32>
    %cst_31 = arith.constant dense<0.000000e+00> : vector<32x128xf32>
    %57 = vector.multi_reduction <add>, %56, %cst_31 [1] : vector<32x8x128xf32> to vector<32x128xf32>
    %58 = arith.truncf %57 : vector<32x128xf32> to vector<32x128xbf16>
    %cst_32 = arith.constant dense<0.000000e+00> : vector<32x128xf32>
    %59 = tpu.matmul %58, %3, %cst_32 {dimension_numbers = #tpu.dot_dimension_numbers<[1], [0], [0], [1], [0, 0, 1, 1], [], []>} : vector<32x128xbf16>, vector<128x128xbf16>, vector<32x128xf32> -> vector<32x128xf32>
    %60 = vector.broadcast %7 : vector<1x128xf32> to vector<32x128xf32>
    %61 = arith.addf %59, %60 : vector<32x128xf32>
    %cst_33 = arith.constant 0.000000e+00 : f32
    %62 = vector.broadcast %cst_33 : f32 to vector<32x128xf32>
    %63 = arith.maximumf %61, %62 : vector<32x128xf32>
    %64 = vector.broadcast %cst_33 : f32 to vector<32x128xf32>
    %65 = arith.subf %61, %64 : vector<32x128xf32>
    %66 = arith.cmpf one, %65, %65 : vector<32x128xf32>
    %67 = vector.broadcast %cst_33 : f32 to vector<32x128xf32>
    %68 = arith.addf %61, %67 : vector<32x128xf32>
    %69 = math.absf %65 : vector<32x128xf32>
    %cst_34 = arith.constant 0.000000e+00 : f32
    %70 = vector.broadcast %cst_34 : f32 to vector<32x128xf32>
    %71 = arith.subf %70, %69 : vector<32x128xf32>
    %72 = math.exp %71 : vector<32x128xf32>
    %73 = math.log1p %72 : vector<32x128xf32>
    %74 = arith.addf %63, %73 : vector<32x128xf32>
    %75 = arith.select %66, %68, %74 : vector<32x128xi1>, vector<32x128xf32>
    %cst_35 = arith.constant 0.693147182 : f32
    %76 = vector.broadcast %cst_35 : f32 to vector<32x128xf32>
    %77 = arith.subf %75, %76 : vector<32x128xf32>
    %78 = arith.truncf %77 : vector<32x128xf32> to vector<32x128xbf16>
    %cst_36 = arith.constant dense<0.000000e+00> : vector<32x128xf32>
    %79 = tpu.matmul %78, %4, %cst_36 {dimension_numbers = #tpu.dot_dimension_numbers<[1], [0], [0], [1], [0, 0, 1, 1], [], []>} : vector<32x128xbf16>, vector<128x128xbf16>, vector<32x128xf32> -> vector<32x128xf32>
    %80 = vector.broadcast %8 : vector<1x128xf32> to vector<32x128xf32>
    %81 = arith.addf %79, %80 : vector<32x128xf32>
    %82 = vector.shape_cast %81 : vector<32x128xf32> to vector<4x8x128xf32>
    %c0_37 = arith.constant 0 : index
    %c0_38 = arith.constant 0 : index
    %c0_39 = arith.constant 0 : index
    %83 = vector.load %arg8[%c0_37, %c0_38, %c0_39] : memref<4x8x128xf32, #tpu.memory_space<vmem>>, vector<4x8x128xf32>
    tpu.vector_store %arg8[%c0_37, %c0_38, %c0_39], %82 {strides = array<i32>} : memref<4x8x128xf32, #tpu.memory_space<vmem>>, vector<4x8x128xf32>,
    return
  }
  func.func @transform_0(%arg0: i32, %arg1: i32) -> (i32, i32, i32) {
    %c0_i32 = arith.constant 0 : i32
    %c0_i32_0 = arith.constant 0 : i32
    %c0_i32_1 = arith.constant 0 : i32
    return %arg0, %c0_i32, %c0_i32_0 : i32, i32, i32
  }
  func.func @transform_1(%arg0: i32, %arg1: i32) -> (i32, i32, i32, i32) {
    %c0_i32 = arith.constant 0 : i32
    %c0_i32_0 = arith.constant 0 : i32
    %c0_i32_1 = arith.constant 0 : i32
    return %arg0, %arg1, %c0_i32, %c0_i32_0 : i32, i32, i32, i32
  }
  func.func @transform_2(%arg0: i32, %arg1: i32) -> (i32, i32, i32, i32) {
    %c0_i32 = arith.constant 0 : i32
    %c0_i32_0 = arith.constant 0 : i32
    %c0_i32_1 = arith.constant 0 : i32
    return %arg0, %arg1, %c0_i32, %c0_i32_0 : i32, i32, i32, i32
  }
  func.func @transform_3(%arg0: i32, %arg1: i32) -> (i32, i32, i32, i32) {
    %c0_i32 = arith.constant 0 : i32
    %c0_i32_0 = arith.constant 0 : i32
    %c0_i32_1 = arith.constant 0 : i32
    return %arg0, %arg1, %c0_i32, %c0_i32_0 : i32, i32, i32, i32
  }
  func.func @transform_4(%arg0: i32, %arg1: i32) -> (i32, i32) {
    %c0_i32 = arith.constant 0 : i32
    %c0_i32_0 = arith.constant 0 : i32
    %c0_i32_1 = arith.constant 0 : i32
    return %c0_i32, %c0_i32_0 : i32, i32
  }
  func.func @transform_5(%arg0: i32, %arg1: i32) -> (i32, i32) {
    %c0_i32 = arith.constant 0 : i32
    %c0_i32_0 = arith.constant 0 : i32
    %c0_i32_1 = arith.constant 0 : i32
    return %c0_i32, %c0_i32_0 : i32, i32
  }
  func.func @transform_6(%arg0: i32, %arg1: i32) -> (i32, i32, i32) {
    %c0_i32 = arith.constant 0 : i32
    %c0_i32_0 = arith.constant 0 : i32
    return %arg0, %arg1, %c0_i32 : i32, i32, i32
  }
}

</mosaic_0001>

<llo_original>
// kernel: interaction_block.1
$region0: #{interaction_block.1}
  #allocation0 [shape = 'u32[]', space=smem, size = 0x4, offset = 0x4, fixed_abs, tag = 'smem constant byte address 0x4 - core index']
  #allocation1 [shape = 'u32[144,128]{1,0:T(1,128)}', space=vmem, size = 0x12000, scoped, tag = 'internal scratch']
  %s0 = inlined_call_operand.vmem [shape: bf16[8,16,32], index: 0, kind: input, shape index: {}]
  %s1 = inlined_call_operand.vmem [shape: bf16[8,16,8,32], index: 1, kind: input, shape index: {}]
  %s2 = inlined_call_operand.vmem [shape: s32[8,16,8,1], index: 2, kind: input, shape index: {}]
  %s3 = inlined_call_operand.vmem [shape: f32[8,16,8,1], index: 3, kind: input, shape index: {}]
  %s4 = inlined_call_operand.vmem [shape: bf16[448,128], index: 4, kind: input, shape index: {}]
  %s5 = inlined_call_operand.vmem [shape: f32[4,128], index: 5, kind: input, shape index: {}]
  %s6 = inlined_call_operand.hbm [shape: f32[8,16,128], index: 6, kind: output, shape index: {}]
  %s7 = sld [smem:[#allocation0]]
  $region174: #{interaction_block.1} parent=0
    _
  %s9 = ssub.s32 1, %s7
  %s10 = scalar_select 0, %s9, %s7
  $region1: #{interaction_block.1} parent=0
    #allocation2 [shape = 'u8[131072]{0}', space=vmem, size = 0x20000, scoped, tag = 'input window, operand 1']
    #allocation3 [shape = 'u8[262144]{0}', space=vmem, size = 0x40000, scoped, tag = 'input window, operand 2']
    #allocation4 [shape = 'u8[262144]{0}', space=vmem, size = 0x40000, scoped, tag = 'input window, operand 3']
    #allocation5 [shape = 'u8[32768]{0}', space=vmem, size = 0x8000, scoped, tag = 'output window, operand 0']
    #allocation6 [shape = 's32[2]{0}', space=sflag, size = 0x8, scoped, tag = 'scoped memory for interaction_block.1']
    %11 = vsyncpa [#allocation6], 0
    %s12 = scalar_lea.sflag [#allocation6], 1
    %13 = vsyncpa %s12, 0
    loop: start=0, step=1, limit=6
    $region2: #{interaction_block.1} parent=1 // loop_pre_header
      _
    $region3: #{interaction_block.1} parent=1 // loop_header
      %s15 = sphi 0, %s19
      %p16 = scmp.ge.s32.totalorder %s15, 6
      %s22 = sphi 0, %s34
      %s23 = sphi 0, %s30
      %s24 = sphi 0, %s22
      %s25 = sphi 0, %s23
      %s26 = sphi 0, %s24
      %s27 = sphi 0, %s25
      %s37 = sphi 0, %s39
      %s40 = sphi 0, %s37
      %s41 = sphi 0, %s40
      %s57 = sphi 0, %s41
      %s65 = sphi 0, %s67
      %s68 = sphi 0, %s65
      %s69 = sphi 0, %s68
      %s85 = sphi 0, %s69
      %s93 = sphi 0, %s95
      %s96 = sphi 0, %s93
      %s97 = sphi 0, %s96
      %s113 = sphi 0, %s97
      %s121 = sphi 0, %s123
      %s124 = sphi 0, %s121
      %s125 = sphi 0, %s124
      %s141 = sphi 0, %s125
      %s145 = sphi 0, %s145
      %s147 = sphi 0, %s145
      %s148 = sphi 0, %s147
      %s162 = sphi 0, %s148
      %s166 = sphi 0, %s166
      %s168 = sphi 0, %s166
      %s169 = sphi 0, %s168
      %s183 = sphi 0, %s169
      %s191 = sphi 0, %s193
      %s194 = sphi 0, %s191
      %s195 = sphi 0, %s194
      %s211 = sphi 0, %s195
    $region4: #{interaction_block.1} parent=1 // loop_header_branch
      %18 = sbr.rel (%p16) target = $region8
    $region5: #{interaction_block.1} parent=1 // loop_body
      %s20 = ssub.s32 %s15, 1
      %s21 = ssub.s32 %s15, 2
      %s28 = sadd.s32 1, %s23
      %p29 = scmp.ge.s32.totalorder %s28, 2
      %s30 = scalar_select %p29, 0, %s28
      %s31 = sadd.s32 1, %s22
      %s32 = scalar_select %p29, %s31, %s22
      %p33 = scmp.ge.s32.totalorder %s32, 2
      %s34 = scalar_select %p33, 0, %s32
      %s35 = ssub.s32 %s22, %s34
      %p36 = scmp.eq.s32.totalorder %s35, 0
      %s38 = sadd.s32 %s37, 1
      %s39 = scalar_select %p36, %s37, %s38
      %p42 = pneg %p36
      %p43 = scmp.eq.s32.totalorder %s15, 3
      %p44 = por %p42, %p43
      %p45 = scmp.ne.s32.totalorder %s37, %s40
      %p46 = scmp.eq.s32.totalorder %s15, 0
      %p47 = por %p45, %p46
      %p48 = scmp.ne.s32.totalorder %s37, %s40
      %p49 = scmp.eq.s32.totalorder %s20, 3
      %p50 = por %p48, %p49
      %p51 = scmp.ne.s32.totalorder %s40, %s41
      %p52 = scmp.eq.s32.totalorder %s20, 0
      %p53 = por %p51, %p52
      %p54 = scmp.ne.s32.totalorder %s40, %s41
      %p55 = scmp.eq.s32.totalorder %s21, 3
      %p56 = por %p54, %p55
      %p58 = scmp.ne.s32.totalorder %s41, %s57
      %p59 = scmp.eq.s32.totalorder %s21, 0
      %p60 = por %p58, %p59
      %s61 = ssub.s32 %s22, %s34
      %s62 = ssub.s32 %s23, %s30
      %s63 = sor.u32 %s61, %s62
      %p64 = scmp.eq.s32.totalorder %s63, 0
      %s66 = sadd.s32 %s65, 1
      %s67 = scalar_select %p64, %s65, %s66
      %p70 = pneg %p64
      %p71 = scmp.eq.s32.totalorder %s15, 3
      %p72 = por %p70, %p71
      %p73 = scmp.ne.s32.totalorder %s65, %s68
      %p74 = scmp.eq.s32.totalorder %s15, 0
      %p75 = por %p73, %p74
      %p76 = scmp.ne.s32.totalorder %s65, %s68
      %p77 = scmp.eq.s32.totalorder %s20, 3
      %p78 = por %p76, %p77
      %p79 = scmp.ne.s32.totalorder %s68, %s69
      %p80 = scmp.eq.s32.totalorder %s20, 0
      %p81 = por %p79, %p80
      %p82 = scmp.ne.s32.totalorder %s68, %s69
      %p83 = scmp.eq.s32.totalorder %s21, 3
      %p84 = por %p82, %p83
      %p86 = scmp.ne.s32.totalorder %s69, %s85
      %p87 = scmp.eq.s32.totalorder %s21, 0
      %p88 = por %p86, %p87
      %s89 = ssub.s32 %s22, %s34
      %s90 = ssub.s32 %s23, %s30
      %s91 = sor.u32 %s89, %s90
      %p92 = scmp.eq.s32.totalorder %s91, 0
      %s94 = sadd.s32 %s93, 1
      %s95 = scalar_select %p92, %s93, %s94
      %p98 = pneg %p92
      %p99 = scmp.eq.s32.totalorder %s15, 3
      %p100 = por %p98, %p99
      %p101 = scmp.ne.s32.totalorder %s93, %s96
      %p102 = scmp.eq.s32.totalorder %s15, 0
      %p103 = por %p101, %p102
      %p104 = scmp.ne.s32.totalorder %s93, %s96
      %p105 = scmp.eq.s32.totalorder %s20, 3
      %p106 = por %p104, %p105
      %p107 = scmp.ne.s32.totalorder %s96, %s97
      %p108 = scmp.eq.s32.totalorder %s20, 0
      %p109 = por %p107, %p108
      %p110 = scmp.ne.s32.totalorder %s96, %s97
      %p111 = scmp.eq.s32.totalorder %s21, 3
      %p112 = por %p110, %p111
      %p114 = scmp.ne.s32.totalorder %s97, %s113
      %p115 = scmp.eq.s32.totalorder %s21, 0
      %p116 = por %p114, %p115
      %s117 = ssub.s32 %s22, %s34
      %s118 = ssub.s32 %s23, %s30
      %s119 = sor.u32 %s117, %s118
      %p120 = scmp.eq.s32.totalorder %s119, 0
      %s122 = sadd.s32 %s121, 1
      %s123 = scalar_select %p120, %s121, %s122
      %p126 = pneg %p120
      %p127 = scmp.eq.s32.totalorder %s15, 3
      %p128 = por %p126, %p127
      %p129 = scmp.ne.s32.totalorder %s121, %s124
      %p130 = scmp.eq.s32.totalorder %s15, 0
      %p131 = por %p129, %p130
      %p132 = scmp.ne.s32.totalorder %s121, %s124
      %p133 = scmp.eq.s32.totalorder %s20, 3
      %p134 = por %p132, %p133
      %p135 = scmp.ne.s32.totalorder %s124, %s125
      %p136 = scmp.eq.s32.totalorder %s20, 0
      %p137 = por %p135, %p136
      %p138 = scmp.ne.s32.totalorder %s124, %s125
      %p139 = scmp.eq.s32.totalorder %s21, 3
      %p140 = por %p138, %p139
      %p142 = scmp.ne.s32.totalorder %s125, %s141
      %p143 = scmp.eq.s32.totalorder %s21, 0
      %p144 = por %p142, %p143
      %s146 = sadd.s32 %s145, 1
      %p149 = scmp.eq.s32.totalorder %s15, 3
      %p150 = scmp.ne.s32.totalorder %s145, %s147
      %p151 = scmp.eq.s32.totalorder %s15, 0
      %p152 = por %p150, %p151
      %p153 = scmp.ne.s32.totalorder %s145, %s147
      %p154 = scmp.eq.s32.totalorder %s20, 3
      %p155 = por %p153, %p154
      %p156 = scmp.ne.s32.totalorder %s147, %s148
      %p157 = scmp.eq.s32.totalorder %s20, 0
      %p158 = por %p156, %p157
      %p159 = scmp.ne.s32.totalorder %s147, %s148
      %p160 = scmp.eq.s32.totalorder %s21, 3
      %p161 = por %p159, %p160
      %p163 = scmp.ne.s32.totalorder %s148, %s162
      %p164 = scmp.eq.s32.totalorder %s21, 0
      %p165 = por %p163, %p164
      %s167 = sadd.s32 %s166, 1
      %p170 = scmp.eq.s32.totalorder %s15, 3
      %p171 = scmp.ne.s32.totalorder %s166, %s168
      %p172 = scmp.eq.s32.totalorder %s15, 0
      %p173 = por %p171, %p172
      %p174 = scmp.ne.s32.totalorder %s166, %s168
      %p175 = scmp.eq.s32.totalorder %s20, 3
      %p176 = por %p174, %p175
      %p177 = scmp.ne.s32.totalorder %s168, %s169
      %p178 = scmp.eq.s32.totalorder %s20, 0
      %p179 = por %p177, %p178
      %p180 = scmp.ne.s32.totalorder %s168, %s169
      %p181 = scmp.eq.s32.totalorder %s21, 3
      %p182 = por %p180, %p181
      %p184 = scmp.ne.s32.totalorder %s169, %s183
      %p185 = scmp.eq.s32.totalorder %s21, 0
      %p186 = por %p184, %p185
      %s187 = ssub.s32 %s22, %s34
      %s188 = ssub.s32 %s23, %s30
      %s189 = sor.u32 %s187, %s188
      %p190 = scmp.eq.s32.totalorder %s189, 0
      %s192 = sadd.s32 %s191, 1
      %s193 = scalar_select %p190, %s191, %s192
      %p196 = pneg %p190
      %p197 = scmp.eq.s32.totalorder %s15, 3
      %p198 = por %p196, %p197
      %p199 = scmp.ne.s32.totalorder %s191, %s194
      %p200 = scmp.eq.s32.totalorder %s15, 0
      %p201 = por %p199, %p200
      %p202 = scmp.ne.s32.totalorder %s191, %s194
      %p203 = scmp.eq.s32.totalorder %s20, 3
      %p204 = por %p202, %p203
      %p205 = scmp.ne.s32.totalorder %s194, %s195
      %p206 = scmp.eq.s32.totalorder %s20, 0
      %p207 = por %p205, %p206
      %p208 = scmp.ne.s32.totalorder %s194, %s195
      %p209 = scmp.eq.s32.totalorder %s21, 3
      %p210 = por %p208, %p209
      %p212 = scmp.ne.s32.totalorder %s195, %s211
      %p213 = scmp.eq.s32.totalorder %s21, 0
      %p214 = por %p212, %p213
      %p215 = scmp.le.s32.totalorder 1, %s15
      %p216 = scmp.lt.s32.totalorder %s15, 5
      %p217 = pnand %p215, %p216
      %p218 = pneg %p217
      // Predicated region
      $region9: #{interaction_block.1} parent=5 // pred_check
        _
      $region10: #{interaction_block.1} parent=5 // pred_check_branch
        %220 = sbr.rel (%p217) target = $region12
      $region11: #{interaction_block.1} parent=5 // pred_region
        %s221 = ssub.s32 %s15, 1
        // Predicated region
        $region13: #{interaction_block.1} parent=11 // pred_check
          %p222 = pneg %p158
        $region14: #{interaction_block.1} parent=11 // pred_check_branch
          %224 = sbr.rel (%p222) target = $region16
        $region15: #{interaction_block.1} parent=11 // pred_region
          _
        $region16: #{interaction_block.1} parent=11 // pred_fallthru
          _
        // Predicated region
        $region17: #{interaction_block.1} parent=11 // pred_check
          %p225 = pneg %p179
        $region18: #{interaction_block.1} parent=11 // pred_check_branch
          %227 = sbr.rel (%p225) target = $region20
        $region19: #{interaction_block.1} parent=11 // pred_region
          _
        $region20: #{interaction_block.1} parent=11 // pred_fallthru
          _
      $region12: #{interaction_block.1} parent=5 // pred_fallthru
        _
      %p228 = scmp.lt.s32.totalorder %s15, 4
      // Predicated region
      $region21: #{interaction_block.1} parent=5 // pred_check
        %p229 = pneg %p228
      $region22: #{interaction_block.1} parent=5 // pred_check_branch
        %231 = sbr.rel (%p229) target = $region24
      $region23: #{interaction_block.1} parent=5 // pred_region
        // Predicated region
        $region25: #{interaction_block.1} parent=23 // pred_check
          %p232 = pneg %p47
        $region26: #{interaction_block.1} parent=23 // pred_check_branch
          %234 = sbr.rel (%p232) target = $region28
        $region27: #{interaction_block.1} parent=23 // pred_region
          %s235 = smul.u32 4, %s22
          %p236 = scmp.lt.s32.totalorder %s235, 7
          %s237 = scalar_select %p236, %s235, 7
          %s238 = smul.addr %s237, 2
          %s239 = smul.addr %s238, 4
          %s240 = scalar_lea.vmem %s0, %s239
          %s241 = smul.u32 4, %s22
        $region28: #{interaction_block.1} parent=23 // pred_fallthru
          _
        // Predicated region
        $region29: #{interaction_block.1} parent=23 // pred_check
          %p242 = pneg %p75
        $region30: #{interaction_block.1} parent=23 // pred_check_branch
          %244 = sbr.rel (%p242) target = $region32
        $region31: #{interaction_block.1} parent=23 // pred_region
          %s245 = sand.u32 %s65, 1
          %s246 = sand.u32 %s65, 1
          %s247 = smul.addr %s246, 128
          %s248 = scalar_lea.vmem [#allocation2], %s247
          %s249 = smul.u32 4, %s22
          %s250 = smul.u32 8, %s23
          %s251 = smul.addr %s249, 16
          %s252 = sadd.s32 %s250, %s251
          %s253 = smul.addr %s252, 4
          %s254 = scalar_lea.vmem %s1, %s253
          // Predicated region
          $region33: #{interaction_block.1} parent=31 // pred_check
            _
          $region34: #{interaction_block.1} parent=31 // pred_check_branch
            %256 = sbr.rel (0) target = $region36
          $region35: #{interaction_block.1} parent=31 // pred_region
            // Predicated region
            $region37: #{interaction_block.1} parent=35 // pred_check
              _
            $region38: #{interaction_block.1} parent=35 // pred_check_branch
              %258 = sbr.rel target = $region40
            $region39: #{interaction_block.1} parent=35 // pred_region
              // Predicated region
              $region52: #{interaction_block.1} parent=39 // pred_check
                _
              $region53: #{interaction_block.1} parent=39 // pred_check_branch
                %335 = sbr.rel (0) target = $region55
              $region54: #{interaction_block.1} parent=39 // pred_region
                loop: start=0, step=1, limit=1
                $region56: #{interaction_block.1} parent=54 // loop_pre_header
                  _
                $region57: #{interaction_block.1} parent=54 // loop_header
                  %s337 = sphi 0, %s341
                  %p338 = scmp.ge.s32.totalorder %s337, 1
                  %s342 = sphi %s254, %s254
                  %s343 = sphi %s248, %s248
                $region58: #{interaction_block.1} parent=54 // loop_header_branch
                  %340 = sbr.rel (%p338) target = $region62
                $region59: #{interaction_block.1} parent=54 // loop_body
                  _
                $region60: #{interaction_block.1} parent=54 // loop_footer
                  %s341 = sadd.s32 1, %s337
                $region61: #{interaction_block.1} parent=54 // loop_footer_branch
                  %336 = sbr.rel target = $region57
                $region62: #{interaction_block.1} parent=54 // loop_exit
                  _
                loop: start=0, step=1, limit=1
                $region63: #{interaction_block.1} parent=54 // loop_pre_header
                  _
                $region64: #{interaction_block.1} parent=54 // loop_header
                  %s346 = sphi 0, %s350
                  %p347 = scmp.ge.s32.totalorder %s346, 1
                  %s351 = sphi %s254, %s254
                  %s352 = sphi %s248, %s248
                $region65: #{interaction_block.1} parent=54 // loop_header_branch
                  %349 = sbr.rel (%p347) target = $region69
                $region66: #{interaction_block.1} parent=54 // loop_body
                  %v353 = vld [vmem:[%s351] sm:$0xf]
                  %354 = vst [vmem:[%s352] sm:$0xf] %v353
                  %v355 = vld [vmem:[%s351 + $0x4] sm:$0xf]
                  %356 = vst [vmem:[%s352 + $0x4] sm:$0xf] %v355
                  %v357 = vld [vmem:[%s351 + $0x8] sm:$0xf]
                  %358 = vst [vmem:[%s352 + $0x8] sm:$0xf] %v357
                  %v359 = vld [vmem:[%s351 + $0xc] sm:$0xf]
                  %360 = vst [vmem:[%s352 + $0xc] sm:$0xf] %v359
                  %v361 = vld [vmem:[%s351 + $0x10] sm:$0xf]
                  %362 = vst [vmem:[%s352 + $0x10] sm:$0xf] %v361
                  %v363 = vld [vmem:[%s351 + $0x14] sm:$0xf]
                  %364 = vst [vmem:[%s352 + $0x14] sm:$0xf] %v363
                  %v365 = vld [vmem:[%s351 + $0x18] sm:$0xf]
                  %366 = vst [vmem:[%s352 + $0x18] sm:$0xf] %v365
                  %v367 = vld [vmem:[%s351 + $0x1c] sm:$0xf]
                  %368 = vst [vmem:[%s352 + $0x1c] sm:$0xf] %v367
                  %v369 = vld [vmem:[%s351 + $0x40] sm:$0xf]
                  %370 = vst [vmem:[%s352 + $0x20] sm:$0xf] %v369
                  %v371 = vld [vmem:[%s351 + $0x44] sm:$0xf]
                  %372 = vst [vmem:[%s352 + $0x24] sm:$0xf] %v371
                  %v373 = vld [vmem:[%s351 + $0x48] sm:$0xf]
                  %374 = vst [vmem:[%s352 + $0x28] sm:$0xf] %v373
                  %v375 = vld [vmem:[%s351 + $0x4c] sm:$0xf]
                  %376 = vst [vmem:[%s352 + $0x2c] sm:$0xf] %v375
                  %v377 = vld [vmem:[%s351 + $0x50] sm:$0xf]
                  %378 = vst [vmem:[%s352 + $0x30] sm:$0xf] %v377
                  %v379 = vld [vmem:[%s351 + $0x54] sm:$0xf]
                  %380 = vst [vmem:[%s352 + $0x34] sm:$0xf] %v379
                  %v381 = vld [vmem:[%s351 + $0x58] sm:$0xf]
                  %382 = vst [vmem:[%s352 + $0x38] sm:$0xf] %v381
                  %v383 = vld [vmem:[%s351 + $0x5c] sm:$0xf]
                  %384 = vst [vmem:[%s352 + $0x3c] sm:$0xf] %v383
                  %v385 = vld [vmem:[%s351 + $0x80] sm:$0xf]
                  %386 = vst [vmem:[%s352 + $0x40] sm:$0xf] %v385
                  %v387 = vld [vmem:[%s351 + $0x84] sm:$0xf]
                  %388 = vst [vmem:[%s352 + $0x44] sm:$0xf] %v387
                  %v389 = vld [vmem:[%s351 + $0x88] sm:$0xf]
                  %390 = vst [vmem:[%s352 + $0x48] sm:$0xf] %v389
                  %v391 = vld [vmem:[%s351 + $0x8c] sm:$0xf]
                  %392 = vst [vmem:[%s352 + $0x4c] sm:$0xf] %v391
                  %v393 = vld [vmem:[%s351 + $0x90] sm:$0xf]
                  %394 = vst [vmem:[%s352 + $0x50] sm:$0xf] %v393
                  %v395 = vld [vmem:[%s351 + $0x94] sm:$0xf]
                  %396 = vst [vmem:[%s352 + $0x54] sm:$0xf] %v395
                  %v397 = vld [vmem:[%s351 + $0x98] sm:$0xf]
                  %398 = vst [vmem:[%s352 + $0x58] sm:$0xf] %v397
                  %v399 = vld [vmem:[%s351 + $0x9c] sm:$0xf]
                  %400 = vst [vmem:[%s352 + $0x5c] sm:$0xf] %v399
                  %v401 = vld [vmem:[%s351 + $0xc0] sm:$0xf]
                  %402 = vst [vmem:[%s352 + $0x60] sm:$0xf] %v401
                  %v403 = vld [vmem:[%s351 + $0xc4] sm:$0xf]
                  %404 = vst [vmem:[%s352 + $0x64] sm:$0xf] %v403
                  %v405 = vld [vmem:[%s351 + $0xc8] sm:$0xf]
                  %406 = vst [vmem:[%s352 + $0x68] sm:$0xf] %v405
                  %v407 = vld [vmem:[%s351 + $0xcc] sm:$0xf]
                  %408 = vst [vmem:[%s352 + $0x6c] sm:$0xf] %v407
                  %v409 = vld [vmem:[%s351 + $0xd0] sm:$0xf]
                  %410 = vst [vmem:[%s352 + $0x70] sm:$0xf] %v409
                  %v411 = vld [vmem:[%s351 + $0xd4] sm:$0xf]
                  %412 = vst [vmem:[%s352 + $0x74] sm:$0xf] %v411
                  %v413 = vld [vmem:[%s351 + $0xd8] sm:$0xf]
                  %414 = vst [vmem:[%s352 + $0x78] sm:$0xf] %v413
                  %v415 = vld [vmem:[%s351 + $0xdc] sm:$0xf]
                  %416 = vst [vmem:[%s352 + $0x7c] sm:$0xf] %v415
                $region67: #{interaction_block.1} parent=54 // loop_footer
                  %s350 = sadd.s32 1, %s346
                $region68: #{interaction_block.1} parent=54 // loop_footer_branch
                  %345 = sbr.rel target = $region64
                $region69: #{interaction_block.1} parent=54 // loop_exit
                  _
              $region55: #{interaction_block.1} parent=39 // pred_fallthru
                _
            $region40: #{interaction_block.1} parent=35 // pred_fallthru
              _
            // Predicated region
            $region41: #{interaction_block.1} parent=35 // pred_check
              _
            $region42: #{interaction_block.1} parent=35 // pred_check_branch
              %260 = sbr.rel (0) target = $region44
            $region43: #{interaction_block.1} parent=35 // pred_region
              loop: start=0, step=1, limit=1
              $region45: #{interaction_block.1} parent=43 // loop_pre_header
                _
              $region46: #{interaction_block.1} parent=43 // loop_header
                %s263 = sphi 0, %s267
                %p264 = scmp.ge.s32.totalorder %s263, 1
                %s268 = sphi %s254, %s254
                %s269 = sphi %s248, %s248
              $region47: #{interaction_block.1} parent=43 // loop_header_branch
                %266 = sbr.rel (%p264) target = $region51
              $region48: #{interaction_block.1} parent=43 // loop_body
                %v270 = vld [vmem:[%s268] sm:$0xf]
                %271 = vst [vmem:[%s269] sm:$0xf] %v270
                %v272 = vld [vmem:[%s268 + $0x4] sm:$0xf]
                %273 = vst [vmem:[%s269 + $0x4] sm:$0xf] %v272
                %v274 = vld [vmem:[%s268 + $0x8] sm:$0xf]
                %275 = vst [vmem:[%s269 + $0x8] sm:$0xf] %v274
                %v276 = vld [vmem:[%s268 + $0xc] sm:$0xf]
                %277 = vst [vmem:[%s269 + $0xc] sm:$0xf] %v276
                %v278 = vld [vmem:[%s268 + $0x10] sm:$0xf]
                %279 = vst [vmem:[%s269 + $0x10] sm:$0xf] %v278
                %v280 = vld [vmem:[%s268 + $0x14] sm:$0xf]
                %281 = vst [vmem:[%s269 + $0x14] sm:$0xf] %v280
                %v282 = vld [vmem:[%s268 + $0x18] sm:$0xf]
                %283 = vst [vmem:[%s269 + $0x18] sm:$0xf] %v282
                %v284 = vld [vmem:[%s268 + $0x1c] sm:$0xf]
                %285 = vst [vmem:[%s269 + $0x1c] sm:$0xf] %v284
                %v286 = vld [vmem:[%s268 + $0x40] sm:$0xf]
                %287 = vst [vmem:[%s269 + $0x20] sm:$0xf] %v286
                %v288 = vld [vmem:[%s268 + $0x44] sm:$0xf]
                %289 = vst [vmem:[%s269 + $0x24] sm:$0xf] %v288
                %v290 = vld [vmem:[%s268 + $0x48] sm:$0xf]
                %291 = vst [vmem:[%s269 + $0x28] sm:$0xf] %v290
                %v292 = vld [vmem:[%s268 + $0x4c] sm:$0xf]
                %293 = vst [vmem:[%s269 + $0x2c] sm:$0xf] %v292
                %v294 = vld [vmem:[%s268 + $0x50] sm:$0xf]
                %295 = vst [vmem:[%s269 + $0x30] sm:$0xf] %v294
                %v296 = vld [vmem:[%s268 + $0x54] sm:$0xf]
                %297 = vst [vmem:[%s269 + $0x34] sm:$0xf] %v296
                %v298 = vld [vmem:[%s268 + $0x58] sm:$0xf]
                %299 = vst [vmem:[%s269 + $0x38] sm:$0xf] %v298
                %v300 = vld [vmem:[%s268 + $0x5c] sm:$0xf]
                %301 = vst [vmem:[%s269 + $0x3c] sm:$0xf] %v300
                %v302 = vld [vmem:[%s268 + $0x80] sm:$0xf]
                %303 = vst [vmem:[%s269 + $0x40] sm:$0xf] %v302
                %v304 = vld [vmem:[%s268 + $0x84] sm:$0xf]
                %305 = vst [vmem:[%s269 + $0x44] sm:$0xf] %v304
                %v306 = vld [vmem:[%s268 + $0x88] sm:$0xf]
                %307 = vst [vmem:[%s269 + $0x48] sm:$0xf] %v306
                %v308 = vld [vmem:[%s268 + $0x8c] sm:$0xf]
                %309 = vst [vmem:[%s269 + $0x4c] sm:$0xf] %v308
                %v310 = vld [vmem:[%s268 + $0x90] sm:$0xf]
                %311 = vst [vmem:[%s269 + $0x50] sm:$0xf] %v310
                %v312 = vld [vmem:[%s268 + $0x94] sm:$0xf]
                %313 = vst [vmem:[%s269 + $0x54] sm:$0xf] %v312
                %v314 = vld [vmem:[%s268 + $0x98] sm:$0xf]
                %315 = vst [vmem:[%s269 + $0x58] sm:$0xf] %v314
                %v316 = vld [vmem:[%s268 + $0x9c] sm:$0xf]
                %317 = vst [vmem:[%s269 + $0x5c] sm:$0xf] %v316
                %v318 = vld [vmem:[%s268 + $0xc0] sm:$0xf]
                %319 = vst [vmem:[%s269 + $0x60] sm:$0xf] %v318
                %v320 = vld [vmem:[%s268 + $0xc4] sm:$0xf]
                %321 = vst [vmem:[%s269 + $0x64] sm:$0xf] %v320
                %v322 = vld [vmem:[%s268 + $0xc8] sm:$0xf]
                %323 = vst [vmem:[%s269 + $0x68] sm:$0xf] %v322
                %v324 = vld [vmem:[%s268 + $0xcc] sm:$0xf]
                %325 = vst [vmem:[%s269 + $0x6c] sm:$0xf] %v324
                %v326 = vld [vmem:[%s268 + $0xd0] sm:$0xf]
                %327 = vst [vmem:[%s269 + $0x70] sm:$0xf] %v326
                %v328 = vld [vmem:[%s268 + $0xd4] sm:$0xf]
                %329 = vst [vmem:[%s269 + $0x74] sm:$0xf] %v328
                %v330 = vld [vmem:[%s268 + $0xd8] sm:$0xf]
                %331 = vst [vmem:[%s269 + $0x78] sm:$0xf] %v330
                %v332 = vld [vmem:[%s268 + $0xdc] sm:$0xf]
                %333 = vst [vmem:[%s269 + $0x7c] sm:$0xf] %v332
              $region49: #{interaction_block.1} parent=43 // loop_footer
                %s267 = sadd.s32 1, %s263
              $region50: #{interaction_block.1} parent=43 // loop_footer_branch
                %262 = sbr.rel target = $region46
              $region51: #{interaction_block.1} parent=43 // loop_exit
                _
            $region44: #{interaction_block.1} parent=35 // pred_fallthru
              _
          $region36: #{interaction_block.1} parent=31 // pred_fallthru
            _
          %417 = vnop
        $region32: #{interaction_block.1} parent=23 // pred_fallthru
          _
        // Predicated region
        $region70: #{interaction_block.1} parent=23 // pred_check
          %p418 = pneg %p103
        $region71: #{interaction_block.1} parent=23 // pred_check_branch
          %420 = sbr.rel (%p418) target = $region73
        $region72: #{interaction_block.1} parent=23 // pred_region
          %s421 = sand.u32 %s93, 1
          %s422 = sand.u32 %s93, 1
          %s423 = smul.addr %s422, 256
          %s424 = scalar_lea.vmem [#allocation3], %s423
          %s425 = smul.u32 4, %s22
          %s426 = smul.u32 8, %s23
          %s427 = smul.addr %s425, 16
          %s428 = sadd.s32 %s426, %s427
          %s429 = smul.addr %s428, 8
          %s430 = scalar_lea.vmem %s2, %s429
          // Predicated region
          $region74: #{interaction_block.1} parent=72 // pred_check
            _
          $region75: #{interaction_block.1} parent=72 // pred_check_branch
            %432 = sbr.rel (0) target = $region77
          $region76: #{interaction_block.1} parent=72 // pred_region
            // Predicated region
            $region78: #{interaction_block.1} parent=76 // pred_check
              _
            $region79: #{interaction_block.1} parent=76 // pred_check_branch
              %434 = sbr.rel (0) target = $region81
            $region80: #{interaction_block.1} parent=76 // pred_region
              // Predicated region
              $region93: #{interaction_block.1} parent=80 // pred_check
                _
              $region94: #{interaction_block.1} parent=80 // pred_check_branch
                %511 = sbr.rel (0) target = $region96
              $region95: #{interaction_block.1} parent=80 // pred_region
                loop: start=0, step=1, limit=1
                $region97: #{interaction_block.1} parent=95 // loop_pre_header
                  _
                $region98: #{interaction_block.1} parent=95 // loop_header
                  %s513 = sphi 0, %s517
                  %p514 = scmp.ge.s32.totalorder %s513, 1
                  %s518 = sphi %s430, %s430
                  %s519 = sphi %s424, %s424
                $region99: #{interaction_block.1} parent=95 // loop_header_branch
                  %516 = sbr.rel (%p514) target = $region103
                $region100: #{interaction_block.1} parent=95 // loop_body
                  %v520 = vld [vmem:[%s518] sm:$0xff]
                  %521 = vst [vmem:[%s519] sm:$0xff] %v520
                  %v522 = vld [vmem:[%s518 + $0x8] sm:$0xff]
                  %523 = vst [vmem:[%s519 + $0x8] sm:$0xff] %v522
                  %v524 = vld [vmem:[%s518 + $0x10] sm:$0xff]
                  %525 = vst [vmem:[%s519 + $0x10] sm:$0xff] %v524
                  %v526 = vld [vmem:[%s518 + $0x18] sm:$0xff]
                  %527 = vst [vmem:[%s519 + $0x18] sm:$0xff] %v526
                  %v528 = vld [vmem:[%s518 + $0x20] sm:$0xff]
                  %529 = vst [vmem:[%s519 + $0x20] sm:$0xff] %v528
                  %v530 = vld [vmem:[%s518 + $0x28] sm:$0xff]
                  %531 = vst [vmem:[%s519 + $0x28] sm:$0xff] %v530
                  %v532 = vld [vmem:[%s518 + $0x30] sm:$0xff]
                  %533 = vst [vmem:[%s519 + $0x30] sm:$0xff] %v532
                  %v534 = vld [vmem:[%s518 + $0x38] sm:$0xff]
                  %535 = vst [vmem:[%s519 + $0x38] sm:$0xff] %v534
                  %v536 = vld [vmem:[%s518 + $0x80] sm:$0xff]
                  %537 = vst [vmem:[%s519 + $0x40] sm:$0xff] %v536
                  %v538 = vld [vmem:[%s518 + $0x88] sm:$0xff]
                  %539 = vst [vmem:[%s519 + $0x48] sm:$0xff] %v538
                  %v540 = vld [vmem:[%s518 + $0x90] sm:$0xff]
                  %541 = vst [vmem:[%s519 + $0x50] sm:$0xff] %v540
                  %v542 = vld [vmem:[%s518 + $0x98] sm:$0xff]
                  %543 = vst [vmem:[%s519 + $0x58] sm:$0xff] %v542
                  %v544 = vld [vmem:[%s518 + $0xa0] sm:$0xff]
                  %545 = vst [vmem:[%s519 + $0x60] sm:$0xff] %v544
                  %v546 = vld [vmem:[%s518 + $0xa8] sm:$0xff]
                  %547 = vst [vmem:[%s519 + $0x68] sm:$0xff] %v546
                  %v548 = vld [vmem:[%s518 + $0xb0] sm:$0xff]
                  %549 = vst [vmem:[%s519 + $0x70] sm:$0xff] %v548
                  %v550 = vld [vmem:[%s518 + $0xb8] sm:$0xff]
                  %551 = vst [vmem:[%s519 + $0x78] sm:$0xff] %v550
                  %v552 = vld [vmem:[%s518 + $0x100] sm:$0xff]
                  %553 = vst [vmem:[%s519 + $0x80] sm:$0xff] %v552
                  %v554 = vld [vmem:[%s518 + $0x108] sm:$0xff]
                  %555 = vst [vmem:[%s519 + $0x88] sm:$0xff] %v554
                  %v556 = vld [vmem:[%s518 + $0x110] sm:$0xff]
                  %557 = vst [vmem:[%s519 + $0x90] sm:$0xff] %v556
                  %v558 = vld [vmem:[%s518 + $0x118] sm:$0xff]
                  %559 = vst [vmem:[%s519 + $0x98] sm:$0xff] %v558
                  %v560 = vld [vmem:[%s518 + $0x120] sm:$0xff]
                  %561 = vst [vmem:[%s519 + $0xa0] sm:$0xff] %v560
                  %v562 = vld [vmem:[%s518 + $0x128] sm:$0xff]
                  %563 = vst [vmem:[%s519 + $0xa8] sm:$0xff] %v562
                  %v564 = vld [vmem:[%s518 + $0x130] sm:$0xff]
                  %565 = vst [vmem:[%s519 + $0xb0] sm:$0xff] %v564
                  %v566 = vld [vmem:[%s518 + $0x138] sm:$0xff]
                  %567 = vst [vmem:[%s519 + $0xb8] sm:$0xff] %v566
                  %v568 = vld [vmem:[%s518 + $0x180] sm:$0xff]
                  %569 = vst [vmem:[%s519 + $0xc0] sm:$0xff] %v568
                  %v570 = vld [vmem:[%s518 + $0x188] sm:$0xff]
                  %571 = vst [vmem:[%s519 + $0xc8] sm:$0xff] %v570
                  %v572 = vld [vmem:[%s518 + $0x190] sm:$0xff]
                  %573 = vst [vmem:[%s519 + $0xd0] sm:$0xff] %v572
                  %v574 = vld [vmem:[%s518 + $0x198] sm:$0xff]
                  %575 = vst [vmem:[%s519 + $0xd8] sm:$0xff] %v574
                  %v576 = vld [vmem:[%s518 + $0x1a0] sm:$0xff]
                  %577 = vst [vmem:[%s519 + $0xe0] sm:$0xff] %v576
                  %v578 = vld [vmem:[%s518 + $0x1a8] sm:$0xff]
                  %579 = vst [vmem:[%s519 + $0xe8] sm:$0xff] %v578
                  %v580 = vld [vmem:[%s518 + $0x1b0] sm:$0xff]
                  %581 = vst [vmem:[%s519 + $0xf0] sm:$0xff] %v580
                  %v582 = vld [vmem:[%s518 + $0x1b8] sm:$0xff]
                  %583 = vst [vmem:[%s519 + $0xf8] sm:$0xff] %v582
                $region101: #{interaction_block.1} parent=95 // loop_footer
                  %s517 = sadd.s32 1, %s513
                $region102: #{interaction_block.1} parent=95 // loop_footer_branch
                  %512 = sbr.rel target = $region98
                $region103: #{interaction_block.1} parent=95 // loop_exit
                  _
              $region96: #{interaction_block.1} parent=80 // pred_fallthru
                _
              // Predicated region
              $region104: #{interaction_block.1} parent=80 // pred_check
                _
              $region105: #{interaction_block.1} parent=80 // pred_check_branch
                %585 = sbr.rel target = $region107
              $region106: #{interaction_block.1} parent=80 // pred_region
                _
              $region107: #{interaction_block.1} parent=80 // pred_fallthru
                _
            $region81: #{interaction_block.1} parent=76 // pred_fallthru
              _
            // Predicated region
            $region82: #{interaction_block.1} parent=76 // pred_check
              _
            $region83: #{interaction_block.1} parent=76 // pred_check_branch
              %436 = sbr.rel target = $region85
            $region84: #{interaction_block.1} parent=76 // pred_region
              loop: start=0, step=1, limit=1
              $region86: #{interaction_block.1} parent=84 // loop_pre_header
                _
              $region87: #{interaction_block.1} parent=84 // loop_header
                %s439 = sphi 0, %s443
                %p440 = scmp.ge.s32.totalorder %s439, 1
                %s444 = sphi %s430, %s430
                %s445 = sphi %s424, %s424
              $region88: #{interaction_block.1} parent=84 // loop_header_branch
                %442 = sbr.rel (%p440) target = $region92
              $region89: #{interaction_block.1} parent=84 // loop_body
                %v446 = vld [vmem:[%s444] sm:$0xff]
                %447 = vst [vmem:[%s445] sm:$0xff] %v446
                %v448 = vld [vmem:[%s444 + $0x8] sm:$0xff]
                %449 = vst [vmem:[%s445 + $0x8] sm:$0xff] %v448
                %v450 = vld [vmem:[%s444 + $0x10] sm:$0xff]
                %451 = vst [vmem:[%s445 + $0x10] sm:$0xff] %v450
                %v452 = vld [vmem:[%s444 + $0x18] sm:$0xff]
                %453 = vst [vmem:[%s445 + $0x18] sm:$0xff] %v452
                %v454 = vld [vmem:[%s444 + $0x20] sm:$0xff]
                %455 = vst [vmem:[%s445 + $0x20] sm:$0xff] %v454
                %v456 = vld [vmem:[%s444 + $0x28] sm:$0xff]
                %457 = vst [vmem:[%s445 + $0x28] sm:$0xff] %v456
                %v458 = vld [vmem:[%s444 + $0x30] sm:$0xff]
                %459 = vst [vmem:[%s445 + $0x30] sm:$0xff] %v458
                %v460 = vld [vmem:[%s444 + $0x38] sm:$0xff]
                %461 = vst [vmem:[%s445 + $0x38] sm:$0xff] %v460
                %v462 = vld [vmem:[%s444 + $0x80] sm:$0xff]
                %463 = vst [vmem:[%s445 + $0x40] sm:$0xff] %v462
                %v464 = vld [vmem:[%s444 + $0x88] sm:$0xff]
                %465 = vst [vmem:[%s445 + $0x48] sm:$0xff] %v464
                %v466 = vld [vmem:[%s444 + $0x90] sm:$0xff]
                %467 = vst [vmem:[%s445 + $0x50] sm:$0xff] %v466
                %v468 = vld [vmem:[%s444 + $0x98] sm:$0xff]
                %469 = vst [vmem:[%s445 + $0x58] sm:$0xff] %v468
                %v470 = vld [vmem:[%s444 + $0xa0] sm:$0xff]
                %471 = vst [vmem:[%s445 + $0x60] sm:$0xff] %v470
                %v472 = vld [vmem:[%s444 + $0xa8] sm:$0xff]
                %473 = vst [vmem:[%s445 + $0x68] sm:$0xff] %v472
                %v474 = vld [vmem:[%s444 + $0xb0] sm:$0xff]
                %475 = vst [vmem:[%s445 + $0x70] sm:$0xff] %v474
                %v476 = vld [vmem:[%s444 + $0xb8] sm:$0xff]
                %477 = vst [vmem:[%s445 + $0x78] sm:$0xff] %v476
                %v478 = vld [vmem:[%s444 + $0x100] sm:$0xff]
                %479 = vst [vmem:[%s445 + $0x80] sm:$0xff] %v478
                %v480 = vld [vmem:[%s444 + $0x108] sm:$0xff]
                %481 = vst [vmem:[%s445 + $0x88] sm:$0xff] %v480
                %v482 = vld [vmem:[%s444 + $0x110] sm:$0xff]
                %483 = vst [vmem:[%s445 + $0x90] sm:$0xff] %v482
                %v484 = vld [vmem:[%s444 + $0x118] sm:$0xff]
                %485 = vst [vmem:[%s445 + $0x98] sm:$0xff] %v484
                %v486 = vld [vmem:[%s444 + $0x120] sm:$0xff]
                %487 = vst [vmem:[%s445 + $0xa0] sm:$0xff] %v486
                %v488 = vld [vmem:[%s444 + $0x128] sm:$0xff]
                %489 = vst [vmem:[%s445 + $0xa8] sm:$0xff] %v488
                %v490 = vld [vmem:[%s444 + $0x130] sm:$0xff]
                %491 = vst [vmem:[%s445 + $0xb0] sm:$0xff] %v490
                %v492 = vld [vmem:[%s444 + $0x138] sm:$0xff]
                %493 = vst [vmem:[%s445 + $0xb8] sm:$0xff] %v492
                %v494 = vld [vmem:[%s444 + $0x180] sm:$0xff]
                %495 = vst [vmem:[%s445 + $0xc0] sm:$0xff] %v494
                %v496 = vld [vmem:[%s444 + $0x188] sm:$0xff]
                %497 = vst [vmem:[%s445 + $0xc8] sm:$0xff] %v496
                %v498 = vld [vmem:[%s444 + $0x190] sm:$0xff]
                %499 = vst [vmem:[%s445 + $0xd0] sm:$0xff] %v498
                %v500 = vld [vmem:[%s444 + $0x198] sm:$0xff]
                %501 = vst [vmem:[%s445 + $0xd8] sm:$0xff] %v500
                %v502 = vld [vmem:[%s444 + $0x1a0] sm:$0xff]
                %503 = vst [vmem:[%s445 + $0xe0] sm:$0xff] %v502
                %v504 = vld [vmem:[%s444 + $0x1a8] sm:$0xff]
                %505 = vst [vmem:[%s445 + $0xe8] sm:$0xff] %v504
                %v506 = vld [vmem:[%s444 + $0x1b0] sm:$0xff]
                %507 = vst [vmem:[%s445 + $0xf0] sm:$0xff] %v506
                %v508 = vld [vmem:[%s444 + $0x1b8] sm:$0xff]
                %509 = vst [vmem:[%s445 + $0xf8] sm:$0xff] %v508
              $region90: #{interaction_block.1} parent=84 // loop_footer
                %s443 = sadd.s32 1, %s439
              $region91: #{interaction_block.1} parent=84 // loop_footer_branch
                %438 = sbr.rel target = $region87
              $region92: #{interaction_block.1} parent=84 // loop_exit
                _
            $region85: #{interaction_block.1} parent=76 // pred_fallthru
              _
          $region77: #{interaction_block.1} parent=72 // pred_fallthru
            _
          %586 = vnop
        $region73: #{interaction_block.1} parent=23 // pred_fallthru
          _
        // Predicated region
        $region108: #{interaction_block.1} parent=23 // pred_check
          %p587 = pneg %p131
        $region109: #{interaction_block.1} parent=23 // pred_check_branch
          %589 = sbr.rel (%p587) target = $region111
        $region110: #{interaction_block.1} parent=23 // pred_region
          %s590 = sand.u32 %s121, 1
          %s591 = sand.u32 %s121, 1
          %s592 = smul.addr %s591, 256
          %s593 = scalar_lea.vmem [#allocation4], %s592
          %s594 = smul.u32 4, %s22
          %s595 = smul.u32 8, %s23
          %s596 = smul.addr %s594, 16
          %s597 = sadd.s32 %s595, %s596
          %s598 = smul.addr %s597, 8
          %s599 = scalar_lea.vmem %s3, %s598
          // Predicated region
          $region112: #{interaction_block.1} parent=110 // pred_check
            _
          $region113: #{interaction_block.1} parent=110 // pred_check_branch
            %601 = sbr.rel (0) target = $region115
          $region114: #{interaction_block.1} parent=110 // pred_region
            // Predicated region
            $region116: #{interaction_block.1} parent=114 // pred_check
              _
            $region117: #{interaction_block.1} parent=114 // pred_check_branch
              %603 = sbr.rel (0) target = $region119
            $region118: #{interaction_block.1} parent=114 // pred_region
              // Predicated region
              $region131: #{interaction_block.1} parent=118 // pred_check
                _
              $region132: #{interaction_block.1} parent=118 // pred_check_branch
                %680 = sbr.rel (0) target = $region134
              $region133: #{interaction_block.1} parent=118 // pred_region
                loop: start=0, step=1, limit=1
                $region135: #{interaction_block.1} parent=133 // loop_pre_header
                  _
                $region136: #{interaction_block.1} parent=133 // loop_header
                  %s682 = sphi 0, %s686
                  %p683 = scmp.ge.s32.totalorder %s682, 1
                  %s687 = sphi %s599, %s599
                  %s688 = sphi %s593, %s593
                $region137: #{interaction_block.1} parent=133 // loop_header_branch
                  %685 = sbr.rel (%p683) target = $region141
                $region138: #{interaction_block.1} parent=133 // loop_body
                  %v689 = vld [vmem:[%s687] sm:$0xff]
                  %690 = vst [vmem:[%s688] sm:$0xff] %v689
                  %v691 = vld [vmem:[%s687 + $0x8] sm:$0xff]
                  %692 = vst [vmem:[%s688 + $0x8] sm:$0xff] %v691
                  %v693 = vld [vmem:[%s687 + $0x10] sm:$0xff]
                  %694 = vst [vmem:[%s688 + $0x10] sm:$0xff] %v693
                  %v695 = vld [vmem:[%s687 + $0x18] sm:$0xff]
                  %696 = vst [vmem:[%s688 + $0x18] sm:$0xff] %v695
                  %v697 = vld [vmem:[%s687 + $0x20] sm:$0xff]
                  %698 = vst [vmem:[%s688 + $0x20] sm:$0xff] %v697
                  %v699 = vld [vmem:[%s687 + $0x28] sm:$0xff]
                  %700 = vst [vmem:[%s688 + $0x28] sm:$0xff] %v699
                  %v701 = vld [vmem:[%s687 + $0x30] sm:$0xff]
                  %702 = vst [vmem:[%s688 + $0x30] sm:$0xff] %v701
                  %v703 = vld [vmem:[%s687 + $0x38] sm:$0xff]
                  %704 = vst [vmem:[%s688 + $0x38] sm:$0xff] %v703
                  %v705 = vld [vmem:[%s687 + $0x80] sm:$0xff]
                  %706 = vst [vmem:[%s688 + $0x40] sm:$0xff] %v705
                  %v707 = vld [vmem:[%s687 + $0x88] sm:$0xff]
                  %708 = vst [vmem:[%s688 + $0x48] sm:$0xff] %v707
                  %v709 = vld [vmem:[%s687 + $0x90] sm:$0xff]
                  %710 = vst [vmem:[%s688 + $0x50] sm:$0xff] %v709
                  %v711 = vld [vmem:[%s687 + $0x98] sm:$0xff]
                  %712 = vst [vmem:[%s688 + $0x58] sm:$0xff] %v711
                  %v713 = vld [vmem:[%s687 + $0xa0] sm:$0xff]
                  %714 = vst [vmem:[%s688 + $0x60] sm:$0xff] %v713
                  %v715 = vld [vmem:[%s687 + $0xa8] sm:$0xff]
                  %716 = vst [vmem:[%s688 + $0x68] sm:$0xff] %v715
                  %v717 = vld [vmem:[%s687 + $0xb0] sm:$0xff]
                  %718 = vst [vmem:[%s688 + $0x70] sm:$0xff] %v717
                  %v719 = vld [vmem:[%s687 + $0xb8] sm:$0xff]
                  %720 = vst [vmem:[%s688 + $0x78] sm:$0xff] %v719
                  %v721 = vld [vmem:[%s687 + $0x100] sm:$0xff]
                  %722 = vst [vmem:[%s688 + $0x80] sm:$0xff] %v721
                  %v723 = vld [vmem:[%s687 + $0x108] sm:$0xff]
                  %724 = vst [vmem:[%s688 + $0x88] sm:$0xff] %v723
                  %v725 = vld [vmem:[%s687 + $0x110] sm:$0xff]
                  %726 = vst [vmem:[%s688 + $0x90] sm:$0xff] %v725
                  %v727 = vld [vmem:[%s687 + $0x118] sm:$0xff]
                  %728 = vst [vmem:[%s688 + $0x98] sm:$0xff] %v727
                  %v729 = vld [vmem:[%s687 + $0x120] sm:$0xff]
                  %730 = vst [vmem:[%s688 + $0xa0] sm:$0xff] %v729
                  %v731 = vld [vmem:[%s687 + $0x128] sm:$0xff]
                  %732 = vst [vmem:[%s688 + $0xa8] sm:$0xff] %v731
                  %v733 = vld [vmem:[%s687 + $0x130] sm:$0xff]
                  %734 = vst [vmem:[%s688 + $0xb0] sm:$0xff] %v733
                  %v735 = vld [vmem:[%s687 + $0x138] sm:$0xff]
                  %736 = vst [vmem:[%s688 + $0xb8] sm:$0xff] %v735
                  %v737 = vld [vmem:[%s687 + $0x180] sm:$0xff]
                  %738 = vst [vmem:[%s688 + $0xc0] sm:$0xff] %v737
                  %v739 = vld [vmem:[%s687 + $0x188] sm:$0xff]
                  %740 = vst [vmem:[%s688 + $0xc8] sm:$0xff] %v739
                  %v741 = vld [vmem:[%s687 + $0x190] sm:$0xff]
                  %742 = vst [vmem:[%s688 + $0xd0] sm:$0xff] %v741
                  %v743 = vld [vmem:[%s687 + $0x198] sm:$0xff]
                  %744 = vst [vmem:[%s688 + $0xd8] sm:$0xff] %v743
                  %v745 = vld [vmem:[%s687 + $0x1a0] sm:$0xff]
                  %746 = vst [vmem:[%s688 + $0xe0] sm:$0xff] %v745
                  %v747 = vld [vmem:[%s687 + $0x1a8] sm:$0xff]
                  %748 = vst [vmem:[%s688 + $0xe8] sm:$0xff] %v747
                  %v749 = vld [vmem:[%s687 + $0x1b0] sm:$0xff]
                  %750 = vst [vmem:[%s688 + $0xf0] sm:$0xff] %v749
                  %v751 = vld [vmem:[%s687 + $0x1b8] sm:$0xff]
                  %752 = vst [vmem:[%s688 + $0xf8] sm:$0xff] %v751
                $region139: #{interaction_block.1} parent=133 // loop_footer
                  %s686 = sadd.s32 1, %s682
                $region140: #{interaction_block.1} parent=133 // loop_footer_branch
                  %681 = sbr.rel target = $region136
                $region141: #{interaction_block.1} parent=133 // loop_exit
                  _
              $region134: #{interaction_block.1} parent=118 // pred_fallthru
                _
              // Predicated region
              $region142: #{interaction_block.1} parent=118 // pred_check
                _
              $region143: #{interaction_block.1} parent=118 // pred_check_branch
                %754 = sbr.rel target = $region145
              $region144: #{interaction_block.1} parent=118 // pred_region
                _
              $region145: #{interaction_block.1} parent=118 // pred_fallthru
                _
            $region119: #{interaction_block.1} parent=114 // pred_fallthru
              _
            // Predicated region
            $region120: #{interaction_block.1} parent=114 // pred_check
              _
            $region121: #{interaction_block.1} parent=114 // pred_check_branch
              %605 = sbr.rel target = $region123
            $region122: #{interaction_block.1} parent=114 // pred_region
              loop: start=0, step=1, limit=1
              $region124: #{interaction_block.1} parent=122 // loop_pre_header
                _
              $region125: #{interaction_block.1} parent=122 // loop_header
                %s608 = sphi 0, %s612
                %p609 = scmp.ge.s32.totalorder %s608, 1
                %s613 = sphi %s599, %s599
                %s614 = sphi %s593, %s593
              $region126: #{interaction_block.1} parent=122 // loop_header_branch
                %611 = sbr.rel (%p609) target = $region130
              $region127: #{interaction_block.1} parent=122 // loop_body
                %v615 = vld [vmem:[%s613] sm:$0xff]
                %616 = vst [vmem:[%s614] sm:$0xff] %v615
                %v617 = vld [vmem:[%s613 + $0x8] sm:$0xff]
                %618 = vst [vmem:[%s614 + $0x8] sm:$0xff] %v617
                %v619 = vld [vmem:[%s613 + $0x10] sm:$0xff]
                %620 = vst [vmem:[%s614 + $0x10] sm:$0xff] %v619
                %v621 = vld [vmem:[%s613 + $0x18] sm:$0xff]
                %622 = vst [vmem:[%s614 + $0x18] sm:$0xff] %v621
                %v623 = vld [vmem:[%s613 + $0x20] sm:$0xff]
                %624 = vst [vmem:[%s614 + $0x20] sm:$0xff] %v623
                %v625 = vld [vmem:[%s613 + $0x28] sm:$0xff]
                %626 = vst [vmem:[%s614 + $0x28] sm:$0xff] %v625
                %v627 = vld [vmem:[%s613 + $0x30] sm:$0xff]
                %628 = vst [vmem:[%s614 + $0x30] sm:$0xff] %v627
                %v629 = vld [vmem:[%s613 + $0x38] sm:$0xff]
                %630 = vst [vmem:[%s614 + $0x38] sm:$0xff] %v629
                %v631 = vld [vmem:[%s613 + $0x80] sm:$0xff]
                %632 = vst [vmem:[%s614 + $0x40] sm:$0xff] %v631
                %v633 = vld [vmem:[%s613 + $0x88] sm:$0xff]
                %634 = vst [vmem:[%s614 + $0x48] sm:$0xff] %v633
                %v635 = vld [vmem:[%s613 + $0x90] sm:$0xff]
                %636 = vst [vmem:[%s614 + $0x50] sm:$0xff] %v635
                %v637 = vld [vmem:[%s613 + $0x98] sm:$0xff]
                %638 = vst [vmem:[%s614 + $0x58] sm:$0xff] %v637
                %v639 = vld [vmem:[%s613 + $0xa0] sm:$0xff]
                %640 = vst [vmem:[%s614 + $0x60] sm:$0xff] %v639
                %v641 = vld [vmem:[%s613 + $0xa8] sm:$0xff]
                %642 = vst [vmem:[%s614 + $0x68] sm:$0xff] %v641
                %v643 = vld [vmem:[%s613 + $0xb0] sm:$0xff]
                %644 = vst [vmem:[%s614 + $0x70] sm:$0xff] %v643
                %v645 = vld [vmem:[%s613 + $0xb8] sm:$0xff]
                %646 = vst [vmem:[%s614 + $0x78] sm:$0xff] %v645
                %v647 = vld [vmem:[%s613 + $0x100] sm:$0xff]
                %648 = vst [vmem:[%s614 + $0x80] sm:$0xff] %v647
                %v649 = vld [vmem:[%s613 + $0x108] sm:$0xff]
                %650 = vst [vmem:[%s614 + $0x88] sm:$0xff] %v649
                %v651 = vld [vmem:[%s613 + $0x110] sm:$0xff]
                %652 = vst [vmem:[%s614 + $0x90] sm:$0xff] %v651
                %v653 = vld [vmem:[%s613 + $0x118] sm:$0xff]
                %654 = vst [vmem:[%s614 + $0x98] sm:$0xff] %v653
                %v655 = vld [vmem:[%s613 + $0x120] sm:$0xff]
                %656 = vst [vmem:[%s614 + $0xa0] sm:$0xff] %v655
                %v657 = vld [vmem:[%s613 + $0x128] sm:$0xff]
                %658 = vst [vmem:[%s614 + $0xa8] sm:$0xff] %v657
                %v659 = vld [vmem:[%s613 + $0x130] sm:$0xff]
                %660 = vst [vmem:[%s614 + $0xb0] sm:$0xff] %v659
                %v661 = vld [vmem:[%s613 + $0x138] sm:$0xff]
                %662 = vst [vmem:[%s614 + $0xb8] sm:$0xff] %v661
                %v663 = vld [vmem:[%s613 + $0x180] sm:$0xff]
                %664 = vst [vmem:[%s614 + $0xc0] sm:$0xff] %v663
                %v665 = vld [vmem:[%s613 + $0x188] sm:$0xff]
                %666 = vst [vmem:[%s614 + $0xc8] sm:$0xff] %v665
                %v667 = vld [vmem:[%s613 + $0x190] sm:$0xff]
                %668 = vst [vmem:[%s614 + $0xd0] sm:$0xff] %v667
                %v669 = vld [vmem:[%s613 + $0x198] sm:$0xff]
                %670 = vst [vmem:[%s614 + $0xd8] sm:$0xff] %v669
                %v671 = vld [vmem:[%s613 + $0x1a0] sm:$0xff]
                %672 = vst [vmem:[%s614 + $0xe0] sm:$0xff] %v671
                %v673 = vld [vmem:[%s613 + $0x1a8] sm:$0xff]
                %674 = vst [vmem:[%s614 + $0xe8] sm:$0xff] %v673
                %v675 = vld [vmem:[%s613 + $0x1b0] sm:$0xff]
                %676 = vst [vmem:[%s614 + $0xf0] sm:$0xff] %v675
                %v677 = vld [vmem:[%s613 + $0x1b8] sm:$0xff]
                %678 = vst [vmem:[%s614 + $0xf8] sm:$0xff] %v677
              $region128: #{interaction_block.1} parent=122 // loop_footer
                %s612 = sadd.s32 1, %s608
              $region129: #{interaction_block.1} parent=122 // loop_footer_branch
                %607 = sbr.rel target = $region125
              $region130: #{interaction_block.1} parent=122 // loop_exit
                _
            $region123: #{interaction_block.1} parent=114 // pred_fallthru
              _
          $region115: #{interaction_block.1} parent=110 // pred_fallthru
            _
          %755 = vnop
        $region111: #{interaction_block.1} parent=23 // pred_fallthru
          _
      $region24: #{interaction_block.1} parent=5 // pred_fallthru
        _
      %p756 = scmp.le.s32.totalorder 1, %s15
      %p757 = scmp.lt.s32.totalorder %s15, 5
      %p758 = pnand %p756, %p757
      %p759 = pneg %p758
      // Predicated region
      $region146: #{interaction_block.1} parent=5 // pred_check
        _
      $region147: #{interaction_block.1} parent=5 // pred_check_branch
        %761 = sbr.rel (%p758) target = $region149
      $region148: #{interaction_block.1} parent=5 // pred_region
        %s762 = ssub.s32 %s15, 1
        %s763 = sand.u32 %s68, 1
        %s764 = sand.u32 %s68, 1
        %s765 = smul.addr %s764, 128
        %s766 = scalar_lea.vmem [#allocation2], %s765
        // Predicated region
        $region150: #{interaction_block.1} parent=148 // pred_check
          %p767 = pneg %p81
        $region151: #{interaction_block.1} parent=148 // pred_check_branch
          %769 = sbr.rel (%p767) target = $region153
        $region152: #{interaction_block.1} parent=148 // pred_region
          _
        $region153: #{interaction_block.1} parent=148 // pred_fallthru
          _
        %s770 = sand.u32 %s96, 1
        %s771 = sand.u32 %s96, 1
        %s772 = smul.addr %s771, 256
        %s773 = scalar_lea.vmem [#allocation3], %s772
        // Predicated region
        $region154: #{interaction_block.1} parent=148 // pred_check
          %p774 = pneg %p109
        $region155: #{interaction_block.1} parent=148 // pred_check_branch
          %776 = sbr.rel (%p774) target = $region157
        $region156: #{interaction_block.1} parent=148 // pred_region
          _
        $region157: #{interaction_block.1} parent=148 // pred_fallthru
          _
        %s777 = sand.u32 %s124, 1
        %s778 = sand.u32 %s124, 1
        %s779 = smul.addr %s778, 256
        %s780 = scalar_lea.vmem [#allocation4], %s779
        // Predicated region
        $region158: #{interaction_block.1} parent=148 // pred_check
          %p781 = pneg %p137
        $region159: #{interaction_block.1} parent=148 // pred_check_branch
          %783 = sbr.rel (%p781) target = $region161
        $region160: #{interaction_block.1} parent=148 // pred_region
          _
        $region161: #{interaction_block.1} parent=148 // pred_fallthru
          _
        %s784 = smul.u32 4, %s24
        %p785 = scmp.lt.s32.totalorder %s784, 7
        %s786 = scalar_select %p785, %s784, 7
        %s787 = smul.addr %s786, 2
        %s788 = smul.addr %s787, 4
        %s789 = scalar_lea.vmem %s0, %s788
        %p790 = pneg %p53
        %p791 = pneg %p50
        %s792 = sand.u32 %s68, 1
        %s793 = sand.u32 %s68, 1
        %s794 = smul.addr %s793, 128
        %s795 = scalar_lea.vmem [#allocation2], %s794
        %p796 = pneg %p81
        %p797 = pneg %p78
        %s798 = sand.u32 %s96, 1
        %s799 = sand.u32 %s96, 1
        %s800 = smul.addr %s799, 256
        %s801 = scalar_lea.vmem [#allocation3], %s800
        %p802 = pneg %p109
        %p803 = pneg %p106
        %s804 = sand.u32 %s124, 1
        %s805 = sand.u32 %s124, 1
        %s806 = smul.addr %s805, 256
        %s807 = scalar_lea.vmem [#allocation4], %s806
        %p808 = pneg %p137
        %p809 = pneg %p134
        %p810 = pneg %p158
        %p811 = pneg %p155
        %p812 = pneg %p179
        %p813 = pneg %p176
        %p814 = pneg %p207
        %p815 = pneg %p204
        %s816 = sand.u32 %s194, 1
        %s817 = scalar_lea.sflag [#allocation6], %s816
        %s818 = sand.u32 %s194, 1
        %s819 = smul.addr %s818, 32
        %s820 = scalar_lea.vmem [#allocation5], %s819
        %s821 = smul.u32 4, %s24
        %p822 = scmp.lt.s32.totalorder %s821, 7
        %s823 = scalar_select %p822, %s821, 7
        %s824 = smul.addr %s823, 2
        %s825 = smul.addr %s824, 4
        %s826 = scalar_lea.vmem %s0, %s825
        %s827 = smul.u32 4, %s24
        %s828 = smul.u32 4, %s24
        %s829 = smul.u32 8, %s25
        %s830 = smul.u32 4, %s24
        %s831 = smul.u32 8, %s25
        %s832 = smul.u32 4, %s24
        %s833 = smul.u32 8, %s25
        %s834 = smul.u32 4, %s24
        %v836 = vld [vmem:[%s4] sm:$0xf]
        %v837 = vld [vmem:[%s4 + $0x4] sm:$0xf]
        %v838 = vld [vmem:[%s4 + $0x8] sm:$0xf]
        %v839 = vld [vmem:[%s4 + $0xc] sm:$0xf]
        %v840 = vld [vmem:[%s4 + $0x10] sm:$0xf]
        %v841 = vld [vmem:[%s4 + $0x14] sm:$0xf]
        %v842 = vld [vmem:[%s4 + $0x18] sm:$0xf]
        %v843 = vld [vmem:[%s4 + $0x1c] sm:$0xf]
        %v844 = vld [vmem:[%s4 + $0x20] sm:$0xf]
        %v845 = vld [vmem:[%s4 + $0x24] sm:$0xf]
        %v846 = vld [vmem:[%s4 + $0x28] sm:$0xf]
        %v847 = vld [vmem:[%s4 + $0x2c] sm:$0xf]
        %v848 = vld [vmem:[%s4 + $0x30] sm:$0xf]
        %v849 = vld [vmem:[%s4 + $0x34] sm:$0xf]
        %v850 = vld [vmem:[%s4 + $0x38] sm:$0xf]
        %v851 = vld [vmem:[%s4 + $0x3c] sm:$0xf]
        %v852 = vld [vmem:[%s4 + $0x40] sm:$0xf]
        %v853 = vld [vmem:[%s4 + $0x44] sm:$0xf]
        %v854 = vld [vmem:[%s4 + $0x48] sm:$0xf]
        %v855 = vld [vmem:[%s4 + $0x4c] sm:$0xf]
        %v856 = vld [vmem:[%s4 + $0x50] sm:$0xf]
        %v857 = vld [vmem:[%s4 + $0x54] sm:$0xf]
        %v858 = vld [vmem:[%s4 + $0x58] sm:$0xf]
        %v859 = vld [vmem:[%s4 + $0x5c] sm:$0xf]
        %v860 = vld [vmem:[%s4 + $0x60] sm:$0xf]
        %v861 = vld [vmem:[%s4 + $0x64] sm:$0xf]
        %v862 = vld [vmem:[%s4 + $0x68] sm:$0xf]
        %v863 = vld [vmem:[%s4 + $0x6c] sm:$0xf]
        %v864 = vld [vmem:[%s4 + $0x70] sm:$0xf]
        %v865 = vld [vmem:[%s4 + $0x74] sm:$0xf]
        %v866 = vld [vmem:[%s4 + $0x78] sm:$0xf]
        %v867 = vld [vmem:[%s4 + $0x7c] sm:$0xf]
        %v868 = vld [vmem:[%s4 + $0x80] sm:$0xf]
        %v869 = vld [vmem:[%s4 + $0x84] sm:$0xf]
        %v870 = vld [vmem:[%s4 + $0x88] sm:$0xf]
        %v871 = vld [vmem:[%s4 + $0x8c] sm:$0xf]
        %v872 = vld [vmem:[%s4 + $0x90] sm:$0xf]
        %v873 = vld [vmem:[%s4 + $0x94] sm:$0xf]
        %v874 = vld [vmem:[%s4 + $0x98] sm:$0xf]
        %v875 = vld [vmem:[%s4 + $0x9c] sm:$0xf]
        %v876 = vld [vmem:[%s4 + $0xa0] sm:$0xf]
        %v877 = vld [vmem:[%s4 + $0xa4] sm:$0xf]
        %v878 = vld [vmem:[%s4 + $0xa8] sm:$0xf]
        %v879 = vld [vmem:[%s4 + $0xac] sm:$0xf]
        %v880 = vld [vmem:[%s4 + $0xb0] sm:$0xf]
        %v881 = vld [vmem:[%s4 + $0xb4] sm:$0xf]
        %v882 = vld [vmem:[%s4 + $0xb8] sm:$0xf]
        %v883 = vld [vmem:[%s4 + $0xbc] sm:$0xf]
        %v884 = vld [vmem:[%s4 + $0xc0] sm:$0xf]
        %v885 = vld [vmem:[%s4 + $0xc4] sm:$0xf]
        %v886 = vld [vmem:[%s4 + $0xc8] sm:$0xf]
        %v887 = vld [vmem:[%s4 + $0xcc] sm:$0xf]
        %v888 = vld [vmem:[%s4 + $0xd0] sm:$0xf]
        %v889 = vld [vmem:[%s4 + $0xd4] sm:$0xf]
        %v890 = vld [vmem:[%s4 + $0xd8] sm:$0xf]
        %v891 = vld [vmem:[%s4 + $0xdc] sm:$0xf]
        %v892 = vld [vmem:[%s5] sm:$0x1]
        %v893 = vld [vmem:[%s5 + $0x1] sm:$0x1]
        %v894 = vld [vmem:[%s5 + $0x2] sm:$0x1]
        %v895 = vld [vmem:[%s5 + $0x3] sm:$0x1]
        %v896 = vld [vmem:[%s826] sm:$0xf]
        %v897 = vld [vmem:[%s826 + $0x4] sm:$0xf]
        %v898 = vld [vmem:[%s826 + $0x8] sm:$0xf]
        %v899 = vld [vmem:[%s826 + $0xc] sm:$0xf]
        %v900 = vld [vmem:[%s826 + $0x10] sm:$0xf]
        %v901 = vld [vmem:[%s826 + $0x14] sm:$0xf]
        %v902 = vld [vmem:[%s826 + $0x18] sm:$0xf]
        %v903 = vld [vmem:[%s826 + $0x1c] sm:$0xf]
        %v912 = vunpack.c.l.b16 %v896
        %v913 = vunpack.c.l.b16 %v897
        %v914 = vunpack.c.l.b16 %v898
        %v915 = vunpack.c.l.b16 %v899
        %v916 = vunpack.c.l.b16 %v900
        %v917 = vunpack.c.l.b16 %v901
        %v918 = vunpack.c.l.b16 %v902
        %v919 = vunpack.c.l.b16 %v903
        %v920 = vpack.c.b16 %v913, %v912
        %v921 = vpack.c.b16 %v915, %v914
        %v922 = vpack.c.b16 %v917, %v916
        %v923 = vpack.c.b16 %v919, %v918
        %v928 = vunpack.c.l.b16 %v836
        %v929 = vunpack.c.l.b16 %v837
        %v930 = vunpack.c.l.b16 %v838
        %v931 = vunpack.c.l.b16 %v839
        %v932 = vpack.c.b16 %v929, %v928
        %v933 = vpack.c.b16 %v931, %v930
        %vm936 = vcmask 261120
        %v938 = vsel %vm936, %v920, 0
        %v941 = vsel %vm936, %v921, 0
        %v944 = vsel %vm936, %v922, 0
        %v947 = vsel %vm936, %v923, 0
        %949 = vmatprep.subr.bf16.mxu0 0
        %950 = vmatpush1.bf16.msra.mxu0 %v932
        %951 = vmatprep.subr.bf16.mxu0 0
        %952 = vmatpush1.bf16.msra.mxu0 %v933
        %953 = vmatprep.subr.bf16.mxu0 0
        %954 = vmatpush1.bf16.msra.mxu0 0
        %955 = vmatprep.subr.bf16.mxu0 0
        %956 = vmatpush1.bf16.msra.mxu0 0
        %957 = vmatprep.subr.bf16.mxu0 0
        %958 = vmatpush1.bf16.msra.mxu0 0
        %959 = vmatprep.subr.bf16.mxu0 0
        %960 = vmatpush1.bf16.msra.mxu0 0
        %961 = vmatprep.subr.bf16.mxu0 0
        %962 = vmatpush1.bf16.msra.mxu0 0
        %963 = vmatprep.subr.bf16.mxu0 0
        %964 = vmatpush1.bf16.msra.mxu0 0
        %965 = vmatprep.subr.bf16.mxu0 0
        %966 = vmatpush1.bf16.msra.mxu0 0
        %967 = vmatprep.subr.bf16.mxu0 0
        %968 = vmatpush1.bf16.msra.mxu0 0
        %969 = vmatprep.subr.bf16.mxu0 0
        %970 = vmatpush1.bf16.msra.mxu0 0
        %971 = vmatprep.subr.bf16.mxu0 0
        %972 = vmatpush1.bf16.msra.mxu0 0
        %973 = vmatprep.subr.bf16.mxu0 0
        %974 = vmatpush1.bf16.msra.mxu0 0
        %975 = vmatprep.subr.bf16.mxu0 0
        %976 = vmatpush1.bf16.msra.mxu0 0
        %977 = vmatprep.subr.bf16.mxu0 0
        %978 = vmatpush1.bf16.msra.mxu0 0
        %979 = vmatprep.subr.bf16.mxu0 0
        %980 = vmatpush1.bf16.msra.mxu0 0
        %981 = vmatprep.mubr.bf16.mxu0 0
        %982 = vmatmul.mubr.bf16.gmra.mrb[0].mxu0 %v938
        %v983 = vpop.f32.mrb[0].mxu0
        %v984 = vadd.f32 0.0, %v983
        %v985 = vpop.f32.mrb[0].mxu0
        %v986 = vpop.f32.mrb[0].mxu0
        %v987 = vadd.f32 0.0, %v986
        %v988 = vpop.f32.mrb[0].mxu0
        %989 = vmatprep.mubr.bf16.mxu0 0
        %990 = vmatmul.mubr.bf16.gmra.mrb[0].mxu0 %v941
        %v991 = vpop.f32.mrb[0].mxu0
        %v992 = vadd.f32 0.0, %v991
        %v993 = vpop.f32.mrb[0].mxu0
        %v994 = vpop.f32.mrb[0].mxu0
        %v995 = vadd.f32 0.0, %v994
        %v996 = vpop.f32.mrb[0].mxu0
        %997 = vmatprep.mubr.bf16.mxu0 0
        %998 = vmatmul.mubr.bf16.gmra.mrb[0].mxu0 %v944
        %v999 = vpop.f32.mrb[0].mxu0
        %v1000 = vadd.f32 0.0, %v999
        %v1001 = vpop.f32.mrb[0].mxu0
        %v1002 = vpop.f32.mrb[0].mxu0
        %v1003 = vadd.f32 0.0, %v1002
        %v1004 = vpop.f32.mrb[0].mxu0
        %1005 = vmatprep.mubr.bf16.mxu0 0
        %1006 = vmatmul.mubr.bf16.gmra.mrb[0].mxu0 %v947
        %v1007 = vpop.f32.mrb[0].mxu0
        %v1008 = vadd.f32 0.0, %v1007
        %v1009 = vpop.f32.mrb[0].mxu0
        %v1010 = vpop.f32.mrb[0].mxu0
        %v1011 = vadd.f32 0.0, %v1010
        %v1012 = vpop.f32.mrb[0].mxu0
        %1013 = vdwg.mxu0
        %v1014 = vpack.c.bf16 %v987, %v984
        %v1015 = vpack.c.bf16 %v995, %v992
        %v1016 = vpack.c.bf16 %v1003, %v1000
        %v1017 = vpack.c.bf16 %v1011, %v1008
        %v1018 = vld [vmem:[%s766] sm:$0xf]
        %v1019 = vld [vmem:[%s766 + $0x4] sm:$0xf]
        %v1020 = vld [vmem:[%s766 + $0x8] sm:$0xf]
        %v1021 = vld [vmem:[%s766 + $0xc] sm:$0xf]
        %v1022 = vld [vmem:[%s766 + $0x10] sm:$0xf]
        %v1023 = vld [vmem:[%s766 + $0x14] sm:$0xf]
        %v1024 = vld [vmem:[%s766 + $0x18] sm:$0xf]
        %v1025 = vld [vmem:[%s766 + $0x1c] sm:$0xf]
        %v1026 = vld [vmem:[%s766 + $0x20] sm:$0xf]
        %v1027 = vld [vmem:[%s766 + $0x24] sm:$0xf]
        %v1028 = vld [vmem:[%s766 + $0x28] sm:$0xf]
        %v1029 = vld [vmem:[%s766 + $0x2c] sm:$0xf]
        %v1030 = vld [vmem:[%s766 + $0x30] sm:$0xf]
        %v1031 = vld [vmem:[%s766 + $0x34] sm:$0xf]
        %v1032 = vld [vmem:[%s766 + $0x38] sm:$0xf]
        %v1033 = vld [vmem:[%s766 + $0x3c] sm:$0xf]
        %v1034 = vld [vmem:[%s766 + $0x40] sm:$0xf]
        %v1035 = vld [vmem:[%s766 + $0x44] sm:$0xf]
        %v1036 = vld [vmem:[%s766 + $0x48] sm:$0xf]
        %v1037 = vld [vmem:[%s766 + $0x4c] sm:$0xf]
        %v1038 = vld [vmem:[%s766 + $0x50] sm:$0xf]
        %v1039 = vld [vmem:[%s766 + $0x54] sm:$0xf]
        %v1040 = vld [vmem:[%s766 + $0x58] sm:$0xf]
        %v1041 = vld [vmem:[%s766 + $0x5c] sm:$0xf]
        %v1042 = vld [vmem:[%s766 + $0x60] sm:$0xf]
        %v1043 = vld [vmem:[%s766 + $0x64] sm:$0xf]
        %v1044 = vld [vmem:[%s766 + $0x68] sm:$0xf]
        %v1045 = vld [vmem:[%s766 + $0x6c] sm:$0xf]
        %v1046 = vld [vmem:[%s766 + $0x70] sm:$0xf]
        %v1047 = vld [vmem:[%s766 + $0x74] sm:$0xf]
        %v1048 = vld [vmem:[%s766 + $0x78] sm:$0xf]
        %v1049 = vld [vmem:[%s766 + $0x7c] sm:$0xf]
        %v1050 = vlaneseq
        %v1051 = vshrl.u32 %v1050, 7
        %v1052 = vsub.s32 0, %v1051
        %v1053 = vrot.slane %v892, %v1052
        %v1086 = vunpack.c.l.b16 %v1018
        %v1087 = vunpack.c.l.b16 %v1019
        %v1088 = vunpack.c.l.b16 %v1020
        %v1089 = vunpack.c.l.b16 %v1021
        %v1090 = vunpack.c.l.b16 %v1022
        %v1091 = vunpack.c.l.b16 %v1023
        %v1092 = vunpack.c.l.b16 %v1024
        %v1093 = vunpack.c.l.b16 %v1025
        %v1094 = vunpack.c.l.b16 %v1026
        %v1095 = vunpack.c.l.b16 %v1027
        %v1096 = vunpack.c.l.b16 %v1028
        %v1097 = vunpack.c.l.b16 %v1029
        %v1098 = vunpack.c.l.b16 %v1030
        %v1099 = vunpack.c.l.b16 %v1031
        %v1100 = vunpack.c.l.b16 %v1032
        %v1101 = vunpack.c.l.b16 %v1033
        %v1102 = vunpack.c.l.b16 %v1034
        %v1103 = vunpack.c.l.b16 %v1035
        %v1104 = vunpack.c.l.b16 %v1036
        %v1105 = vunpack.c.l.b16 %v1037
        %v1106 = vunpack.c.l.b16 %v1038
        %v1107 = vunpack.c.l.b16 %v1039
        %v1108 = vunpack.c.l.b16 %v1040
        %v1109 = vunpack.c.l.b16 %v1041
        %v1110 = vunpack.c.l.b16 %v1042
        %v1111 = vunpack.c.l.b16 %v1043
        %v1112 = vunpack.c.l.b16 %v1044
        %v1113 = vunpack.c.l.b16 %v1045
        %v1114 = vunpack.c.l.b16 %v1046
        %v1115 = vunpack.c.l.b16 %v1047
        %v1116 = vunpack.c.l.b16 %v1048
        %v1117 = vunpack.c.l.b16 %v1049
        %v1118 = vpack.c.b16 %v1087, %v1086
        %v1119 = vpack.c.b16 %v1089, %v1088
        %v1120 = vpack.c.b16 %v1091, %v1090
        %v1121 = vpack.c.b16 %v1093, %v1092
        %v1122 = vpack.c.b16 %v1095, %v1094
        %v1123 = vpack.c.b16 %v1097, %v1096
        %v1124 = vpack.c.b16 %v1099, %v1098
        %v1125 = vpack.c.b16 %v1101, %v1100
        %v1126 = vpack.c.b16 %v1103, %v1102
        %v1127 = vpack.c.b16 %v1105, %v1104
        %v1128 = vpack.c.b16 %v1107, %v1106
        %v1129 = vpack.c.b16 %v1109, %v1108
        %v1130 = vpack.c.b16 %v1111, %v1110
        %v1131 = vpack.c.b16 %v1113, %v1112
        %v1132 = vpack.c.b16 %v1115, %v1114
        %v1133 = vpack.c.b16 %v1117, %v1116
        %v1138 = vunpack.c.l.b16 %v840
        %v1139 = vunpack.c.l.b16 %v841
        %v1140 = vunpack.c.l.b16 %v842
        %v1141 = vunpack.c.l.b16 %v843
        %v1142 = vpack.c.b16 %v1139, %v1138
        %v1143 = vpack.c.b16 %v1141, %v1140
        %v1147 = vsel %vm936, %v1118, 0
        %v1150 = vsel %vm936, %v1119, 0
        %v1153 = vsel %vm936, %v1120, 0
        %v1156 = vsel %vm936, %v1121, 0
        %v1159 = vsel %vm936, %v1122, 0
        %v1162 = vsel %vm936, %v1123, 0
        %v1165 = vsel %vm936, %v1124, 0
        %v1168 = vsel %vm936, %v1125, 0
        %v1171 = vsel %vm936, %v1126, 0
        %v1174 = vsel %vm936, %v1127, 0
        %v1177 = vsel %vm936, %v1128, 0
        %v1180 = vsel %vm936, %v1129, 0
        %v1183 = vsel %vm936, %v1130, 0
        %v1186 = vsel %vm936, %v1131, 0
        %v1189 = vsel %vm936, %v1132, 0
        %v1192 = vsel %vm936, %v1133, 0
        %1194 = vmatprep.subr.bf16.mxu0 0
        %1195 = vmatpush1.bf16.msra.mxu0 %v1142
        %1196 = vmatprep.subr.bf16.mxu0 0
        %1197 = vmatpush1.bf16.msra.mxu0 %v1143
        %1198 = vmatprep.subr.bf16.mxu0 0
        %1199 = vmatpush1.bf16.msra.mxu0 0
        %1200 = vmatprep.subr.bf16.mxu0 0
        %1201 = vmatpush1.bf16.msra.mxu0 0
        %1202 = vmatprep.subr.bf16.mxu0 0
        %1203 = vmatpush1.bf16.msra.mxu0 0
        %1204 = vmatprep.subr.bf16.mxu0 0
        %1205 = vmatpush1.bf16.msra.mxu0 0
        %1206 = vmatprep.subr.bf16.mxu0 0
        %1207 = vmatpush1.bf16.msra.mxu0 0
        %1208 = vmatprep.subr.bf16.mxu0 0
        %1209 = vmatpush1.bf16.msra.mxu0 0
        %1210 = vmatprep.subr.bf16.mxu0 0
        %1211 = vmatpush1.bf16.msra.mxu0 0
        %1212 = vmatprep.subr.bf16.mxu0 0
        %1213 = vmatpush1.bf16.msra.mxu0 0
        %1214 = vmatprep.subr.bf16.mxu0 0
        %1215 = vmatpush1.bf16.msra.mxu0 0
        %1216 = vmatprep.subr.bf16.mxu0 0
        %1217 = vmatpush1.bf16.msra.mxu0 0
        %1218 = vmatprep.subr.bf16.mxu0 0
        %1219 = vmatpush1.bf16.msra.mxu0 0
        %1220 = vmatprep.subr.bf16.mxu0 0
        %1221 = vmatpush1.bf16.msra.mxu0 0
        %1222 = vmatprep.subr.bf16.mxu0 0
        %1223 = vmatpush1.bf16.msra.mxu0 0
        %1224 = vmatprep.subr.bf16.mxu0 0
        %1225 = vmatpush1.bf16.msra.mxu0 0
        %1226 = vmatprep.mubr.bf16.mxu0 0
        %1227 = vmatmul.mubr.bf16.gmra.mrb[0].mxu0 %v1147
        %v1228 = vpop.f32.mrb[0].mxu0
        %v1229 = vadd.f32 %v1053, %v1228
        %v1230 = vpop.f32.mrb[0].mxu0
        %v1231 = vpop.f32.mrb[0].mxu0
        %v1232 = vadd.f32 %v1053, %v1231
        %v1233 = vpop.f32.mrb[0].mxu0
        %1234 = vmatprep.mubr.bf16.mxu0 0
        %1235 = vmatmul.mubr.bf16.gmra.mrb[0].mxu0 %v1150
        %v1236 = vpop.f32.mrb[0].mxu0
        %v1237 = vadd.f32 %v1053, %v1236
        %v1238 = vpop.f32.mrb[0].mxu0
        %v1239 = vpop.f32.mrb[0].mxu0
        %v1240 = vadd.f32 %v1053, %v1239
        %v1241 = vpop.f32.mrb[0].mxu0
        %1242 = vmatprep.mubr.bf16.mxu0 0
        %1243 = vmatmul.mubr.bf16.gmra.mrb[0].mxu0 %v1153
        %v1244 = vpop.f32.mrb[0].mxu0
        %v1245 = vadd.f32 %v1053, %v1244
        %v1246 = vpop.f32.mrb[0].mxu0
        %v1247 = vpop.f32.mrb[0].mxu0
        %v1248 = vadd.f32 %v1053, %v1247
        %v1249 = vpop.f32.mrb[0].mxu0
        %1250 = vmatprep.mubr.bf16.mxu0 0
        %1251 = vmatmul.mubr.bf16.gmra.mrb[0].mxu0 %v1156
        %v1252 = vpop.f32.mrb[0].mxu0
        %v1253 = vadd.f32 %v1053, %v1252
        %v1254 = vpop.f32.mrb[0].mxu0
        %v1255 = vpop.f32.mrb[0].mxu0
        %v1256 = vadd.f32 %v1053, %v1255
        %v1257 = vpop.f32.mrb[0].mxu0
        %1258 = vmatprep.mubr.bf16.mxu0 0
        %1259 = vmatmul.mubr.bf16.gmra.mrb[0].mxu0 %v1159
        %v1260 = vpop.f32.mrb[0].mxu0
        %v1261 = vadd.f32 %v1053, %v1260
        %v1262 = vpop.f32.mrb[0].mxu0
        %v1263 = vpop.f32.mrb[0].mxu0
        %v1264 = vadd.f32 %v1053, %v1263
        %v1265 = vpop.f32.mrb[0].mxu0
        %1266 = vmatprep.mubr.bf16.mxu0 0
        %1267 = vmatmul.mubr.bf16.gmra.mrb[0].mxu0 %v1162
        %v1268 = vpop.f32.mrb[0].mxu0
        %v1269 = vadd.f32 %v1053, %v1268
        %v1270 = vpop.f32.mrb[0].mxu0
        %v1271 = vpop.f32.mrb[0].mxu0
        %v1272 = vadd.f32 %v1053, %v1271
        %v1273 = vpop.f32.mrb[0].mxu0
        %1274 = vmatprep.mubr.bf16.mxu0 0
        %1275 = vmatmul.mubr.bf16.gmra.mrb[0].mxu0 %v1165
        %v1276 = vpop.f32.mrb[0].mxu0
        %v1277 = vadd.f32 %v1053, %v1276
        %v1278 = vpop.f32.mrb[0].mxu0
        %v1279 = vpop.f32.mrb[0].mxu0
        %v1280 = vadd.f32 %v1053, %v1279
        %v1281 = vpop.f32.mrb[0].mxu0
        %1282 = vmatprep.mubr.bf16.mxu0 0
        %1283 = vmatmul.mubr.bf16.gmra.mrb[0].mxu0 %v1168
        %v1284 = vpop.f32.mrb[0].mxu0
        %v1285 = vadd.f32 %v1053, %v1284
        %v1286 = vpop.f32.mrb[0].mxu0
        %v1287 = vpop.f32.mrb[0].mxu0
        %v1288 = vadd.f32 %v1053, %v1287
        %v1289 = vpop.f32.mrb[0].mxu0
        %1290 = vmatprep.mubr.bf16.mxu0 0
        %1291 = vmatmul.mubr.bf16.gmra.mrb[0].mxu0 %v1171
        %v1292 = vpop.f32.mrb[0].mxu0
        %v1293 = vadd.f32 %v1053, %v1292
        %v1294 = vpop.f32.mrb[0].mxu0
        %v1295 = vpop.f32.mrb[0].mxu0
        %v1296 = vadd.f32 %v1053, %v1295
        %v1297 = vpop.f32.mrb[0].mxu0
        %1298 = vmatprep.mubr.bf16.mxu0 0
        %1299 = vmatmul.mubr.bf16.gmra.mrb[0].mxu0 %v1174
        %v1300 = vpop.f32.mrb[0].mxu0
        %v1301 = vadd.f32 %v1053, %v1300
        %v1302 = vpop.f32.mrb[0].mxu0
        %v1303 = vpop.f32.mrb[0].mxu0
        %v1304 = vadd.f32 %v1053, %v1303
        %v1305 = vpop.f32.mrb[0].mxu0
        %1306 = vmatprep.mubr.bf16.mxu0 0
        %1307 = vmatmul.mubr.bf16.gmra.mrb[0].mxu0 %v1177
        %v1308 = vpop.f32.mrb[0].mxu0
        %v1309 = vadd.f32 %v1053, %v1308
        %v1310 = vpop.f32.mrb[0].mxu0
        %v1311 = vpop.f32.mrb[0].mxu0
        %v1312 = vadd.f32 %v1053, %v1311
        %v1313 = vpop.f32.mrb[0].mxu0
        %1314 = vmatprep.mubr.bf16.mxu0 0
        %1315 = vmatmul.mubr.bf16.gmra.mrb[0].mxu0 %v1180
        %v1316 = vpop.f32.mrb[0].mxu0
        %v1317 = vadd.f32 %v1053, %v1316
        %v1318 = vpop.f32.mrb[0].mxu0
        %v1319 = vpop.f32.mrb[0].mxu0
        %v1320 = vadd.f32 %v1053, %v1319
        %v1321 = vpop.f32.mrb[0].mxu0
        %1322 = vmatprep.mubr.bf16.mxu0 0
        %1323 = vmatmul.mubr.bf16.gmra.mrb[0].mxu0 %v1183
        %v1324 = vpop.f32.mrb[0].mxu0
        %v1325 = vadd.f32 %v1053, %v1324
        %v1326 = vpop.f32.mrb[0].mxu0
        %v1327 = vpop.f32.mrb[0].mxu0
        %v1328 = vadd.f32 %v1053, %v1327
        %v1329 = vpop.f32.mrb[0].mxu0
        %1330 = vmatprep.mubr.bf16.mxu0 0
        %1331 = vmatmul.mubr.bf16.gmra.mrb[0].mxu0 %v1186
        %v1332 = vpop.f32.mrb[0].mxu0
        %v1333 = vadd.f32 %v1053, %v1332
        %v1334 = vpop.f32.mrb[0].mxu0
        %v1335 = vpop.f32.mrb[0].mxu0
        %v1336 = vadd.f32 %v1053, %v1335
        %v1337 = vpop.f32.mrb[0].mxu0
        %1338 = vmatprep.mubr.bf16.mxu0 0
        %1339 = vmatmul.mubr.bf16.gmra.mrb[0].mxu0 %v1189
        %v1340 = vpop.f32.mrb[0].mxu0
        %v1341 = vadd.f32 %v1053, %v1340
        %v1342 = vpop.f32.mrb[0].mxu0
        %v1343 = vpop.f32.mrb[0].mxu0
        %v1344 = vadd.f32 %v1053, %v1343
        %v1345 = vpop.f32.mrb[0].mxu0
        %1346 = vmatprep.mubr.bf16.mxu0 0
        %1347 = vmatmul.mubr.bf16.gmra.mrb[0].mxu0 %v1192
        %v1348 = vpop.f32.mrb[0].mxu0
        %v1349 = vadd.f32 %v1053, %v1348
        %v1350 = vpop.f32.mrb[0].mxu0
        %v1351 = vpop.f32.mrb[0].mxu0
        %v1352 = vadd.f32 %v1053, %v1351
        %v1353 = vpop.f32.mrb[0].mxu0
        %1354 = vdwg.mxu0
        %v1355 = vmax.f32 %v1229, 0.0
        %v1356 = vmax.f32 %v1232, 0.0
        %v1357 = vmax.f32 %v1237, 0.0
        %v1358 = vmax.f32 %v1240, 0.0
        %v1359 = vmax.f32 %v1245, 0.0
        %v1360 = vmax.f32 %v1248, 0.0
        %v1361 = vmax.f32 %v1253, 0.0
        %v1362 = vmax.f32 %v1256, 0.0
        %v1363 = vmax.f32 %v1261, 0.0
        %v1364 = vmax.f32 %v1264, 0.0
        %v1365 = vmax.f32 %v1269, 0.0
        %v1366 = vmax.f32 %v1272, 0.0
        %v1367 = vmax.f32 %v1277, 0.0
        %v1368 = vmax.f32 %v1280, 0.0
        %v1369 = vmax.f32 %v1285, 0.0
        %v1370 = vmax.f32 %v1288, 0.0
        %v1371 = vmax.f32 %v1293, 0.0
        %v1372 = vmax.f32 %v1296, 0.0
        %v1373 = vmax.f32 %v1301, 0.0
        %v1374 = vmax.f32 %v1304, 0.0
        %v1375 = vmax.f32 %v1309, 0.0
        %v1376 = vmax.f32 %v1312, 0.0
        %v1377 = vmax.f32 %v1317, 0.0
        %v1378 = vmax.f32 %v1320, 0.0
        %v1379 = vmax.f32 %v1325, 0.0
        %v1380 = vmax.f32 %v1328, 0.0
        %v1381 = vmax.f32 %v1333, 0.0
        %v1382 = vmax.f32 %v1336, 0.0
        %v1383 = vmax.f32 %v1341, 0.0
        %v1384 = vmax.f32 %v1344, 0.0
        %v1385 = vmax.f32 %v1349, 0.0
        %v1386 = vmax.f32 %v1352, 0.0
        %vm1387 = vcmp.ne.f32.partialorder %v1229, %v1229
        %vm1388 = vcmp.ne.f32.partialorder %v1232, %v1232
        %vm1389 = vcmp.ne.f32.partialorder %v1237, %v1237
        %vm1390 = vcmp.ne.f32.partialorder %v1240, %v1240
        %vm1391 = vcmp.ne.f32.partialorder %v1245, %v1245
        %vm1392 = vcmp.ne.f32.partialorder %v1248, %v1248
        %vm1393 = vcmp.ne.f32.partialorder %v1253, %v1253
        %vm1394 = vcmp.ne.f32.partialorder %v1256, %v1256
        %vm1395 = vcmp.ne.f32.partialorder %v1261, %v1261
        %vm1396 = vcmp.ne.f32.partialorder %v1264, %v1264
        %vm1397 = vcmp.ne.f32.partialorder %v1269, %v1269
        %vm1398 = vcmp.ne.f32.partialorder %v1272, %v1272
        %vm1399 = vcmp.ne.f32.partialorder %v1277, %v1277
        %vm1400 = vcmp.ne.f32.partialorder %v1280, %v1280
        %vm1401 = vcmp.ne.f32.partialorder %v1285, %v1285
        %vm1402 = vcmp.ne.f32.partialorder %v1288, %v1288
        %vm1403 = vcmp.ne.f32.partialorder %v1293, %v1293
        %vm1404 = vcmp.ne.f32.partialorder %v1296, %v1296
        %vm1405 = vcmp.ne.f32.partialorder %v1301, %v1301
        %vm1406 = vcmp.ne.f32.partialorder %v1304, %v1304
        %vm1407 = vcmp.ne.f32.partialorder %v1309, %v1309
        %vm1408 = vcmp.ne.f32.partialorder %v1312, %v1312
        %vm1409 = vcmp.ne.f32.partialorder %v1317, %v1317
        %vm1410 = vcmp.ne.f32.partialorder %v1320, %v1320
        %vm1411 = vcmp.ne.f32.partialorder %v1325, %v1325
        %vm1412 = vcmp.ne.f32.partialorder %v1328, %v1328
        %vm1413 = vcmp.ne.f32.partialorder %v1333, %v1333
        %vm1414 = vcmp.ne.f32.partialorder %v1336, %v1336
        %vm1415 = vcmp.ne.f32.partialorder %v1341, %v1341
        %vm1416 = vcmp.ne.f32.partialorder %v1344, %v1344
        %vm1417 = vcmp.ne.f32.partialorder %v1349, %v1349
        %vm1418 = vcmp.ne.f32.partialorder %v1352, %v1352
        %v1419 = vadd.f32 %v1229, 0.0
        %v1420 = vadd.f32 %v1232, 0.0
        %v1421 = vadd.f32 %v1237, 0.0
        %v1422 = vadd.f32 %v1240, 0.0
        %v1423 = vadd.f32 %v1245, 0.0
        %v1424 = vadd.f32 %v1248, 0.0
        %v1425 = vadd.f32 %v1253, 0.0
        %v1426 = vadd.f32 %v1256, 0.0
        %v1427 = vadd.f32 %v1261, 0.0
        %v1428 = vadd.f32 %v1264, 0.0
        %v1429 = vadd.f32 %v1269, 0.0
        %v1430 = vadd.f32 %v1272, 0.0
        %v1431 = vadd.f32 %v1277, 0.0
        %v1432 = vadd.f32 %v1280, 0.0
        %v1433 = vadd.f32 %v1285, 0.0
        %v1434 = vadd.f32 %v1288, 0.0
        %v1435 = vadd.f32 %v1293, 0.0
        %v1436 = vadd.f32 %v1296, 0.0
        %v1437 = vadd.f32 %v1301, 0.0
        %v1438 = vadd.f32 %v1304, 0.0
        %v1439 = vadd.f32 %v1309, 0.0
        %v1440 = vadd.f32 %v1312, 0.0
        %v1441 = vadd.f32 %v1317, 0.0
        %v1442 = vadd.f32 %v1320, 0.0
        %v1443 = vadd.f32 %v1325, 0.0
        %v1444 = vadd.f32 %v1328, 0.0
        %v1445 = vadd.f32 %v1333, 0.0
        %v1446 = vadd.f32 %v1336, 0.0
        %v1447 = vadd.f32 %v1341, 0.0
        %v1448 = vadd.f32 %v1344, 0.0
        %v1449 = vadd.f32 %v1349, 0.0
        %v1450 = vadd.f32 %v1352, 0.0
        %v1451 = vand.u32 2147483647, %v1229
        %v1452 = vand.u32 2147483647, %v1232
        %v1453 = vand.u32 2147483647, %v1237
        %v1454 = vand.u32 2147483647, %v1240
        %v1455 = vand.u32 2147483647, %v1245
        %v1456 = vand.u32 2147483647, %v1248
        %v1457 = vand.u32 2147483647, %v1253
        %v1458 = vand.u32 2147483647, %v1256
        %v1459 = vand.u32 2147483647, %v1261
        %v1460 = vand.u32 2147483647, %v1264
        %v1461 = vand.u32 2147483647, %v1269
        %v1462 = vand.u32 2147483647, %v1272
        %v1463 = vand.u32 2147483647, %v1277
        %v1464 = vand.u32 2147483647, %v1280
        %v1465 = vand.u32 2147483647, %v1285
        %v1466 = vand.u32 2147483647, %v1288
        %v1467 = vand.u32 2147483647, %v1293
        %v1468 = vand.u32 2147483647, %v1296
        %v1469 = vand.u32 2147483647, %v1301
        %v1470 = vand.u32 2147483647, %v1304
        %v1471 = vand.u32 2147483647, %v1309
        %v1472 = vand.u32 2147483647, %v1312
        %v1473 = vand.u32 2147483647, %v1317
        %v1474 = vand.u32 2147483647, %v1320
        %v1475 = vand.u32 2147483647, %v1325
        %v1476 = vand.u32 2147483647, %v1328
        %v1477 = vand.u32 2147483647, %v1333
        %v1478 = vand.u32 2147483647, %v1336
        %v1479 = vand.u32 2147483647, %v1341
        %v1480 = vand.u32 2147483647, %v1344
        %v1481 = vand.u32 2147483647, %v1349
        %v1482 = vand.u32 2147483647, %v1352
        %v1483 = vsub.f32 0.0, %v1451
        %v1484 = vsub.f32 0.0, %v1452
        %v1485 = vsub.f32 0.0, %v1453
        %v1486 = vsub.f32 0.0, %v1454
        %v1487 = vsub.f32 0.0, %v1455
        %v1488 = vsub.f32 0.0, %v1456
        %v1489 = vsub.f32 0.0, %v1457
        %v1490 = vsub.f32 0.0, %v1458
        %v1491 = vsub.f32 0.0, %v1459
        %v1492 = vsub.f32 0.0, %v1460
        %v1493 = vsub.f32 0.0, %v1461
        %v1494 = vsub.f32 0.0, %v1462
        %v1495 = vsub.f32 0.0, %v1463
        %v1496 = vsub.f32 0.0, %v1464
        %v1497 = vsub.f32 0.0, %v1465
        %v1498 = vsub.f32 0.0, %v1466
        %v1499 = vsub.f32 0.0, %v1467
        %v1500 = vsub.f32 0.0, %v1468
        %v1501 = vsub.f32 0.0, %v1469
        %v1502 = vsub.f32 0.0, %v1470
        %v1503 = vsub.f32 0.0, %v1471
        %v1504 = vsub.f32 0.0, %v1472
        %v1505 = vsub.f32 0.0, %v1473
        %v1506 = vsub.f32 0.0, %v1474
        %v1507 = vsub.f32 0.0, %v1475
        %v1508 = vsub.f32 0.0, %v1476
        %v1509 = vsub.f32 0.0, %v1477
        %v1510 = vsub.f32 0.0, %v1478
        %v1511 = vsub.f32 0.0, %v1479
        %v1512 = vsub.f32 0.0, %v1480
        %v1513 = vsub.f32 0.0, %v1481
        %v1514 = vsub.f32 0.0, %v1482
        %v1515 = vmul.f32 %v1483, 1.442695
        %v1516 = vpow.pop %v1515
        %v1517 = vmul.f32 %v1484, 1.442695
        %v1518 = vpow.pop %v1517
        %v1519 = vmul.f32 %v1485, 1.442695
        %v1520 = vpow.pop %v1519
        %v1521 = vmul.f32 %v1486, 1.442695
        %v1522 = vpow.pop %v1521
        %v1523 = vmul.f32 %v1487, 1.442695
        %v1524 = vpow.pop %v1523
        %v1525 = vmul.f32 %v1488, 1.442695
        %v1526 = vpow.pop %v1525
        %v1527 = vmul.f32 %v1489, 1.442695
        %v1528 = vpow.pop %v1527
        %v1529 = vmul.f32 %v1490, 1.442695
        %v1530 = vpow.pop %v1529
        %v1531 = vmul.f32 %v1491, 1.442695
        %v1532 = vpow.pop %v1531
        %v1533 = vmul.f32 %v1492, 1.442695
        %v1534 = vpow.pop %v1533
        %v1535 = vmul.f32 %v1493, 1.442695
        %v1536 = vpow.pop %v1535
        %v1537 = vmul.f32 %v1494, 1.442695
        %v1538 = vpow.pop %v1537
        %v1539 = vmul.f32 %v1495, 1.442695
        %v1540 = vpow.pop %v1539
        %v1541 = vmul.f32 %v1496, 1.442695
        %v1542 = vpow.pop %v1541
        %v1543 = vmul.f32 %v1497, 1.442695
        %v1544 = vpow.pop %v1543
        %v1545 = vmul.f32 %v1498, 1.442695
        %v1546 = vpow.pop %v1545
        %v1547 = vmul.f32 %v1499, 1.442695
        %v1548 = vpow.pop %v1547
        %v1549 = vmul.f32 %v1500, 1.442695
        %v1550 = vpow.pop %v1549
        %v1551 = vmul.f32 %v1501, 1.442695
        %v1552 = vpow.pop %v1551
        %v1553 = vmul.f32 %v1502, 1.442695
        %v1554 = vpow.pop %v1553
        %v1555 = vmul.f32 %v1503, 1.442695
        %v1556 = vpow.pop %v1555
        %v1557 = vmul.f32 %v1504, 1.442695
        %v1558 = vpow.pop %v1557
        %v1559 = vmul.f32 %v1505, 1.442695
        %v1560 = vpow.pop %v1559
        %v1561 = vmul.f32 %v1506, 1.442695
        %v1562 = vpow.pop %v1561
        %v1563 = vmul.f32 %v1507, 1.442695
        %v1564 = vpow.pop %v1563
        %v1565 = vmul.f32 %v1508, 1.442695
        %v1566 = vpow.pop %v1565
        %v1567 = vmul.f32 %v1509, 1.442695
        %v1568 = vpow.pop %v1567
        %v1569 = vmul.f32 %v1510, 1.442695
        %v1570 = vpow.pop %v1569
        %v1571 = vmul.f32 %v1511, 1.442695
        %v1572 = vpow.pop %v1571
        %v1573 = vmul.f32 %v1512, 1.442695
        %v1574 = vpow.pop %v1573
        %v1575 = vmul.f32 %v1513, 1.442695
        %v1576 = vpow.pop %v1575
        %v1577 = vmul.f32 %v1514, 1.442695
        %v1578 = vpow.pop %v1577
        %v1579 = vadd.f32 %v1516, 1.0
        %v1580 = vlog2.pop %v1579
        %v1581 = vmul.f32 %v1580, 0.6931472
        %v1582 = vmul.f32 -0.5, %v1516
        %v1583 = vadd.f32 %v1582, 1.0
        %v1584 = vmul.f32 %v1583, %v1516
        %v1585 = vand.u32 2147483647, %v1516
        %vm1586 = vcmp.lt.f32.partialorder %v1585, 0.0004427343
        %v1587 = vsel %vm1586, %v1584, %v1581
        %v1588 = vadd.f32 %v1518, 1.0
        %v1589 = vlog2.pop %v1588
        %v1590 = vmul.f32 %v1589, 0.6931472
        %v1591 = vmul.f32 -0.5, %v1518
        %v1592 = vadd.f32 %v1591, 1.0
        %v1593 = vmul.f32 %v1592, %v1518
        %v1594 = vand.u32 2147483647, %v1518
        %vm1595 = vcmp.lt.f32.partialorder %v1594, 0.0004427343
        %v1596 = vsel %vm1595, %v1593, %v1590
        %v1597 = vadd.f32 %v1520, 1.0
        %v1598 = vlog2.pop %v1597
        %v1599 = vmul.f32 %v1598, 0.6931472
        %v1600 = vmul.f32 -0.5, %v1520
        %v1601 = vadd.f32 %v1600, 1.0
        %v1602 = vmul.f32 %v1601, %v1520
        %v1603 = vand.u32 2147483647, %v1520
        %vm1604 = vcmp.lt.f32.partialorder %v1603, 0.0004427343
        %v1605 = vsel %vm1604, %v1602, %v1599
        %v1606 = vadd.f32 %v1522, 1.0
        %v1607 = vlog2.pop %v1606
        %v1608 = vmul.f32 %v1607, 0.6931472
        %v1609 = vmul.f32 -0.5, %v1522
        %v1610 = vadd.f32 %v1609, 1.0
        %v1611 = vmul.f32 %v1610, %v1522
        %v1612 = vand.u32 2147483647, %v1522
        %vm1613 = vcmp.lt.f32.partialorder %v1612, 0.0004427343
        %v1614 = vsel %vm1613, %v1611, %v1608
        %v1615 = vadd.f32 %v1524, 1.0
        %v1616 = vlog2.pop %v1615
        %v1617 = vmul.f32 %v1616, 0.6931472
        %v1618 = vmul.f32 -0.5, %v1524
        %v1619 = vadd.f32 %v1618, 1.0
        %v1620 = vmul.f32 %v1619, %v1524
        %v1621 = vand.u32 2147483647, %v1524
        %vm1622 = vcmp.lt.f32.partialorder %v1621, 0.0004427343
        %v1623 = vsel %vm1622, %v1620, %v1617
        %v1624 = vadd.f32 %v1526, 1.0
        %v1625 = vlog2.pop %v1624
        %v1626 = vmul.f32 %v1625, 0.6931472
        %v1627 = vmul.f32 -0.5, %v1526
        %v1628 = vadd.f32 %v1627, 1.0
        %v1629 = vmul.f32 %v1628, %v1526
        %v1630 = vand.u32 2147483647, %v1526
        %vm1631 = vcmp.lt.f32.partialorder %v1630, 0.0004427343
        %v1632 = vsel %vm1631, %v1629, %v1626
        %v1633 = vadd.f32 %v1528, 1.0
        %v1634 = vlog2.pop %v1633
        %v1635 = vmul.f32 %v1634, 0.6931472
        %v1636 = vmul.f32 -0.5, %v1528
        %v1637 = vadd.f32 %v1636, 1.0
        %v1638 = vmul.f32 %v1637, %v1528
        %v1639 = vand.u32 2147483647, %v1528
        %vm1640 = vcmp.lt.f32.partialorder %v1639, 0.0004427343
        %v1641 = vsel %vm1640, %v1638, %v1635
        %v1642 = vadd.f32 %v1530, 1.0
        %v1643 = vlog2.pop %v1642
        %v1644 = vmul.f32 %v1643, 0.6931472
        %v1645 = vmul.f32 -0.5, %v1530
        %v1646 = vadd.f32 %v1645, 1.0
        %v1647 = vmul.f32 %v1646, %v1530
        %v1648 = vand.u32 2147483647, %v1530
        %vm1649 = vcmp.lt.f32.partialorder %v1648, 0.0004427343
        %v1650 = vsel %vm1649, %v1647, %v1644
        %v1651 = vadd.f32 %v1532, 1.0
        %v1652 = vlog2.pop %v1651
        %v1653 = vmul.f32 %v1652, 0.6931472
        %v1654 = vmul.f32 -0.5, %v1532
        %v1655 = vadd.f32 %v1654, 1.0
        %v1656 = vmul.f32 %v1655, %v1532
        %v1657 = vand.u32 2147483647, %v1532
        %vm1658 = vcmp.lt.f32.partialorder %v1657, 0.0004427343
        %v1659 = vsel %vm1658, %v1656, %v1653
        %v1660 = vadd.f32 %v1534, 1.0
        %v1661 = vlog2.pop %v1660
        %v1662 = vmul.f32 %v1661, 0.6931472
        %v1663 = vmul.f32 -0.5, %v1534
        %v1664 = vadd.f32 %v1663, 1.0
        %v1665 = vmul.f32 %v1664, %v1534
        %v1666 = vand.u32 2147483647, %v1534
        %vm1667 = vcmp.lt.f32.partialorder %v1666, 0.0004427343
        %v1668 = vsel %vm1667, %v1665, %v1662
        %v1669 = vadd.f32 %v1536, 1.0
        %v1670 = vlog2.pop %v1669
        %v1671 = vmul.f32 %v1670, 0.6931472
        %v1672 = vmul.f32 -0.5, %v1536
        %v1673 = vadd.f32 %v1672, 1.0
        %v1674 = vmul.f32 %v1673, %v1536
        %v1675 = vand.u32 2147483647, %v1536
        %vm1676 = vcmp.lt.f32.partialorder %v1675, 0.0004427343
        %v1677 = vsel %vm1676, %v1674, %v1671
        %v1678 = vadd.f32 %v1538, 1.0
        %v1679 = vlog2.pop %v1678
        %v1680 = vmul.f32 %v1679, 0.6931472
        %v1681 = vmul.f32 -0.5, %v1538
        %v1682 = vadd.f32 %v1681, 1.0
        %v1683 = vmul.f32 %v1682, %v1538
        %v1684 = vand.u32 2147483647, %v1538
        %vm1685 = vcmp.lt.f32.partialorder %v1684, 0.0004427343
        %v1686 = vsel %vm1685, %v1683, %v1680
        %v1687 = vadd.f32 %v1540, 1.0
        %v1688 = vlog2.pop %v1687
        %v1689 = vmul.f32 %v1688, 0.6931472
        %v1690 = vmul.f32 -0.5, %v1540
        %v1691 = vadd.f32 %v1690, 1.0
        %v1692 = vmul.f32 %v1691, %v1540
        %v1693 = vand.u32 2147483647, %v1540
        %vm1694 = vcmp.lt.f32.partialorder %v1693, 0.0004427343
        %v1695 = vsel %vm1694, %v1692, %v1689
        %v1696 = vadd.f32 %v1542, 1.0
        %v1697 = vlog2.pop %v1696
        %v1698 = vmul.f32 %v1697, 0.6931472
        %v1699 = vmul.f32 -0.5, %v1542
        %v1700 = vadd.f32 %v1699, 1.0
        %v1701 = vmul.f32 %v1700, %v1542
        %v1702 = vand.u32 2147483647, %v1542
        %vm1703 = vcmp.lt.f32.partialorder %v1702, 0.0004427343
        %v1704 = vsel %vm1703, %v1701, %v1698
        %v1705 = vadd.f32 %v1544, 1.0
        %v1706 = vlog2.pop %v1705
        %v1707 = vmul.f32 %v1706, 0.6931472
        %v1708 = vmul.f32 -0.5, %v1544
        %v1709 = vadd.f32 %v1708, 1.0
        %v1710 = vmul.f32 %v1709, %v1544
        %v1711 = vand.u32 2147483647, %v1544
        %vm1712 = vcmp.lt.f32.partialorder %v1711, 0.0004427343
        %v1713 = vsel %vm1712, %v1710, %v1707
        %v1714 = vadd.f32 %v1546, 1.0
        %v1715 = vlog2.pop %v1714
        %v1716 = vmul.f32 %v1715, 0.6931472
        %v1717 = vmul.f32 -0.5, %v1546
        %v1718 = vadd.f32 %v1717, 1.0
        %v1719 = vmul.f32 %v1718, %v1546
        %v1720 = vand.u32 2147483647, %v1546
        %vm1721 = vcmp.lt.f32.partialorder %v1720, 0.0004427343
        %v1722 = vsel %vm1721, %v1719, %v1716
        %v1723 = vadd.f32 %v1548, 1.0
        %v1724 = vlog2.pop %v1723
        %v1725 = vmul.f32 %v1724, 0.6931472
        %v1726 = vmul.f32 -0.5, %v1548
        %v1727 = vadd.f32 %v1726, 1.0
        %v1728 = vmul.f32 %v1727, %v1548
        %v1729 = vand.u32 2147483647, %v1548
        %vm1730 = vcmp.lt.f32.partialorder %v1729, 0.0004427343
        %v1731 = vsel %vm1730, %v1728, %v1725
        %v1732 = vadd.f32 %v1550, 1.0
        %v1733 = vlog2.pop %v1732
        %v1734 = vmul.f32 %v1733, 0.6931472
        %v1735 = vmul.f32 -0.5, %v1550
        %v1736 = vadd.f32 %v1735, 1.0
        %v1737 = vmul.f32 %v1736, %v1550
        %v1738 = vand.u32 2147483647, %v1550
        %vm1739 = vcmp.lt.f32.partialorder %v1738, 0.0004427343
        %v1740 = vsel %vm1739, %v1737, %v1734
        %v1741 = vadd.f32 %v1552, 1.0
        %v1742 = vlog2.pop %v1741
        %v1743 = vmul.f32 %v1742, 0.6931472
        %v1744 = vmul.f32 -0.5, %v1552
        %v1745 = vadd.f32 %v1744, 1.0
        %v1746 = vmul.f32 %v1745, %v1552
        %v1747 = vand.u32 2147483647, %v1552
        %vm1748 = vcmp.lt.f32.partialorder %v1747, 0.0004427343
        %v1749 = vsel %vm1748, %v1746, %v1743
        %v1750 = vadd.f32 %v1554, 1.0
        %v1751 = vlog2.pop %v1750
        %v1752 = vmul.f32 %v1751, 0.6931472
        %v1753 = vmul.f32 -0.5, %v1554
        %v1754 = vadd.f32 %v1753, 1.0
        %v1755 = vmul.f32 %v1754, %v1554
        %v1756 = vand.u32 2147483647, %v1554
        %vm1757 = vcmp.lt.f32.partialorder %v1756, 0.0004427343
        %v1758 = vsel %vm1757, %v1755, %v1752
        %v1759 = vadd.f32 %v1556, 1.0
        %v1760 = vlog2.pop %v1759
        %v1761 = vmul.f32 %v1760, 0.6931472
        %v1762 = vmul.f32 -0.5, %v1556
        %v1763 = vadd.f32 %v1762, 1.0
        %v1764 = vmul.f32 %v1763, %v1556
        %v1765 = vand.u32 2147483647, %v1556
        %vm1766 = vcmp.lt.f32.partialorder %v1765, 0.0004427343
        %v1767 = vsel %vm1766, %v1764, %v1761
        %v1768 = vadd.f32 %v1558, 1.0
        %v1769 = vlog2.pop %v1768
        %v1770 = vmul.f32 %v1769, 0.6931472
        %v1771 = vmul.f32 -0.5, %v1558
        %v1772 = vadd.f32 %v1771, 1.0
        %v1773 = vmul.f32 %v1772, %v1558
        %v1774 = vand.u32 2147483647, %v1558
        %vm1775 = vcmp.lt.f32.partialorder %v1774, 0.0004427343
        %v1776 = vsel %vm1775, %v1773, %v1770
        %v1777 = vadd.f32 %v1560, 1.0
        %v1778 = vlog2.pop %v1777
        %v1779 = vmul.f32 %v1778, 0.6931472
        %v1780 = vmul.f32 -0.5, %v1560
        %v1781 = vadd.f32 %v1780, 1.0
        %v1782 = vmul.f32 %v1781, %v1560
        %v1783 = vand.u32 2147483647, %v1560
        %vm1784 = vcmp.lt.f32.partialorder %v1783, 0.0004427343
        %v1785 = vsel %vm1784, %v1782, %v1779
        %v1786 = vadd.f32 %v1562, 1.0
        %v1787 = vlog2.pop %v1786
        %v1788 = vmul.f32 %v1787, 0.6931472
        %v1789 = vmul.f32 -0.5, %v1562
        %v1790 = vadd.f32 %v1789, 1.0
        %v1791 = vmul.f32 %v1790, %v1562
        %v1792 = vand.u32 2147483647, %v1562
        %vm1793 = vcmp.lt.f32.partialorder %v1792, 0.0004427343
        %v1794 = vsel %vm1793, %v1791, %v1788
        %v1795 = vadd.f32 %v1564, 1.0
        %v1796 = vlog2.pop %v1795
        %v1797 = vmul.f32 %v1796, 0.6931472
        %v1798 = vmul.f32 -0.5, %v1564
        %v1799 = vadd.f32 %v1798, 1.0
        %v1800 = vmul.f32 %v1799, %v1564
        %v1801 = vand.u32 2147483647, %v1564
        %vm1802 = vcmp.lt.f32.partialorder %v1801, 0.0004427343
        %v1803 = vsel %vm1802, %v1800, %v1797
        %v1804 = vadd.f32 %v1566, 1.0
        %v1805 = vlog2.pop %v1804
        %v1806 = vmul.f32 %v1805, 0.6931472
        %v1807 = vmul.f32 -0.5, %v1566
        %v1808 = vadd.f32 %v1807, 1.0
        %v1809 = vmul.f32 %v1808, %v1566
        %v1810 = vand.u32 2147483647, %v1566
        %vm1811 = vcmp.lt.f32.partialorder %v1810, 0.0004427343
        %v1812 = vsel %vm1811, %v1809, %v1806
        %v1813 = vadd.f32 %v1568, 1.0
        %v1814 = vlog2.pop %v1813
        %v1815 = vmul.f32 %v1814, 0.6931472
        %v1816 = vmul.f32 -0.5, %v1568
        %v1817 = vadd.f32 %v1816, 1.0
        %v1818 = vmul.f32 %v1817, %v1568
        %v1819 = vand.u32 2147483647, %v1568
        %vm1820 = vcmp.lt.f32.partialorder %v1819, 0.0004427343
        %v1821 = vsel %vm1820, %v1818, %v1815
        %v1822 = vadd.f32 %v1570, 1.0
        %v1823 = vlog2.pop %v1822
        %v1824 = vmul.f32 %v1823, 0.6931472
        %v1825 = vmul.f32 -0.5, %v1570
        %v1826 = vadd.f32 %v1825, 1.0
        %v1827 = vmul.f32 %v1826, %v1570
        %v1828 = vand.u32 2147483647, %v1570
        %vm1829 = vcmp.lt.f32.partialorder %v1828, 0.0004427343
        %v1830 = vsel %vm1829, %v1827, %v1824
        %v1831 = vadd.f32 %v1572, 1.0
        %v1832 = vlog2.pop %v1831
        %v1833 = vmul.f32 %v1832, 0.6931472
        %v1834 = vmul.f32 -0.5, %v1572
        %v1835 = vadd.f32 %v1834, 1.0
        %v1836 = vmul.f32 %v1835, %v1572
        %v1837 = vand.u32 2147483647, %v1572
        %vm1838 = vcmp.lt.f32.partialorder %v1837, 0.0004427343
        %v1839 = vsel %vm1838, %v1836, %v1833
        %v1840 = vadd.f32 %v1574, 1.0
        %v1841 = vlog2.pop %v1840
        %v1842 = vmul.f32 %v1841, 0.6931472
        %v1843 = vmul.f32 -0.5, %v1574
        %v1844 = vadd.f32 %v1843, 1.0
        %v1845 = vmul.f32 %v1844, %v1574
        %v1846 = vand.u32 2147483647, %v1574
        %vm1847 = vcmp.lt.f32.partialorder %v1846, 0.0004427343
        %v1848 = vsel %vm1847, %v1845, %v1842
        %v1849 = vadd.f32 %v1576, 1.0
        %v1850 = vlog2.pop %v1849
        %v1851 = vmul.f32 %v1850, 0.6931472
        %v1852 = vmul.f32 -0.5, %v1576
        %v1853 = vadd.f32 %v1852, 1.0
        %v1854 = vmul.f32 %v1853, %v1576
        %v1855 = vand.u32 2147483647, %v1576
        %vm1856 = vcmp.lt.f32.partialorder %v1855, 0.0004427343
        %v1857 = vsel %vm1856, %v1854, %v1851
        %v1858 = vadd.f32 %v1578, 1.0
        %v1859 = vlog2.pop %v1858
        %v1860 = vmul.f32 %v1859, 0.6931472
        %v1861 = vmul.f32 -0.5, %v1578
        %v1862 = vadd.f32 %v1861, 1.0
        %v1863 = vmul.f32 %v1862, %v1578
        %v1864 = vand.u32 2147483647, %v1578
        %vm1865 = vcmp.lt.f32.partialorder %v1864, 0.0004427343
        %v1866 = vsel %vm1865, %v1863, %v1860
        %v1867 = vadd.f32 %v1355, %v1587
        %v1868 = vadd.f32 %v1356, %v1596
        %v1869 = vadd.f32 %v1357, %v1605
        %v1870 = vadd.f32 %v1358, %v1614
        %v1871 = vadd.f32 %v1359, %v1623
        %v1872 = vadd.f32 %v1360, %v1632
        %v1873 = vadd.f32 %v1361, %v1641
        %v1874 = vadd.f32 %v1362, %v1650
        %v1875 = vadd.f32 %v1363, %v1659
        %v1876 = vadd.f32 %v1364, %v1668
        %v1877 = vadd.f32 %v1365, %v1677
        %v1878 = vadd.f32 %v1366, %v1686
        %v1879 = vadd.f32 %v1367, %v1695
        %v1880 = vadd.f32 %v1368, %v1704
        %v1881 = vadd.f32 %v1369, %v1713
        %v1882 = vadd.f32 %v1370, %v1722
        %v1883 = vadd.f32 %v1371, %v1731
        %v1884 = vadd.f32 %v1372, %v1740
        %v1885 = vadd.f32 %v1373, %v1749
        %v1886 = vadd.f32 %v1374, %v1758
        %v1887 = vadd.f32 %v1375, %v1767
        %v1888 = vadd.f32 %v1376, %v1776
        %v1889 = vadd.f32 %v1377, %v1785
        %v1890 = vadd.f32 %v1378, %v1794
        %v1891 = vadd.f32 %v1379, %v1803
        %v1892 = vadd.f32 %v1380, %v1812
        %v1893 = vadd.f32 %v1381, %v1821
        %v1894 = vadd.f32 %v1382, %v1830
        %v1895 = vadd.f32 %v1383, %v1839
        %v1896 = vadd.f32 %v1384, %v1848
        %v1897 = vadd.f32 %v1385, %v1857
        %v1898 = vadd.f32 %v1386, %v1866
        %v1899 = vsel %vm1387, %v1419, %v1867
        %v1900 = vsel %vm1388, %v1420, %v1868
        %v1901 = vsel %vm1389, %v1421, %v1869
        %v1902 = vsel %vm1390, %v1422, %v1870
        %v1903 = vsel %vm1391, %v1423, %v1871
        %v1904 = vsel %vm1392, %v1424, %v1872
        %v1905 = vsel %vm1393, %v1425, %v1873
        %v1906 = vsel %vm1394, %v1426, %v1874
        %v1907 = vsel %vm1395, %v1427, %v1875
        %v1908 = vsel %vm1396, %v1428, %v1876
        %v1909 = vsel %vm1397, %v1429, %v1877
        %v1910 = vsel %vm1398, %v1430, %v1878
        %v1911 = vsel %vm1399, %v1431, %v1879
        %v1912 = vsel %vm1400, %v1432, %v1880
        %v1913 = vsel %vm1401, %v1433, %v1881
        %v1914 = vsel %vm1402, %v1434, %v1882
        %v1915 = vsel %vm1403, %v1435, %v1883
        %v1916 = vsel %vm1404, %v1436, %v1884
        %v1917 = vsel %vm1405, %v1437, %v1885
        %v1918 = vsel %vm1406, %v1438, %v1886
        %v1919 = vsel %vm1407, %v1439, %v1887
        %v1920 = vsel %vm1408, %v1440, %v1888
        %v1921 = vsel %vm1409, %v1441, %v1889
        %v1922 = vsel %vm1410, %v1442, %v1890
        %v1923 = vsel %vm1411, %v1443, %v1891
        %v1924 = vsel %vm1412, %v1444, %v1892
        %v1925 = vsel %vm1413, %v1445, %v1893
        %v1926 = vsel %vm1414, %v1446, %v1894
        %v1927 = vsel %vm1415, %v1447, %v1895
        %v1928 = vsel %vm1416, %v1448, %v1896
        %v1929 = vsel %vm1417, %v1449, %v1897
        %v1930 = vsel %vm1418, %v1450, %v1898
        %v1931 = vsub.f32 %v1899, 0.6931472
        %v1932 = vsub.f32 %v1900, 0.6931472
        %v1933 = vsub.f32 %v1901, 0.6931472
        %v1934 = vsub.f32 %v1902, 0.6931472
        %v1935 = vsub.f32 %v1903, 0.6931472
        %v1936 = vsub.f32 %v1904, 0.6931472
        %v1937 = vsub.f32 %v1905, 0.6931472
        %v1938 = vsub.f32 %v1906, 0.6931472
        %v1939 = vsub.f32 %v1907, 0.6931472
        %v1940 = vsub.f32 %v1908, 0.6931472
        %v1941 = vsub.f32 %v1909, 0.6931472
        %v1942 = vsub.f32 %v1910, 0.6931472
        %v1943 = vsub.f32 %v1911, 0.6931472
        %v1944 = vsub.f32 %v1912, 0.6931472
        %v1945 = vsub.f32 %v1913, 0.6931472
        %v1946 = vsub.f32 %v1914, 0.6931472
        %v1947 = vsub.f32 %v1915, 0.6931472
        %v1948 = vsub.f32 %v1916, 0.6931472
        %v1949 = vsub.f32 %v1917, 0.6931472
        %v1950 = vsub.f32 %v1918, 0.6931472
        %v1951 = vsub.f32 %v1919, 0.6931472
        %v1952 = vsub.f32 %v1920, 0.6931472
        %v1953 = vsub.f32 %v1921, 0.6931472
        %v1954 = vsub.f32 %v1922, 0.6931472
        %v1955 = vsub.f32 %v1923, 0.6931472
        %v1956 = vsub.f32 %v1924, 0.6931472
        %v1957 = vsub.f32 %v1925, 0.6931472
        %v1958 = vsub.f32 %v1926, 0.6931472
        %v1959 = vsub.f32 %v1927, 0.6931472
        %v1960 = vsub.f32 %v1928, 0.6931472
        %v1961 = vsub.f32 %v1929, 0.6931472
        %v1962 = vsub.f32 %v1930, 0.6931472
        %v1963 = vpack.c.bf16 %v1932, %v1931
        %v1964 = vpack.c.bf16 %v1934, %v1933
        %v1965 = vpack.c.bf16 %v1936, %v1935
        %v1966 = vpack.c.bf16 %v1938, %v1937
        %v1967 = vpack.c.bf16 %v1940, %v1939
        %v1968 = vpack.c.bf16 %v1942, %v1941
        %v1969 = vpack.c.bf16 %v1944, %v1943
        %v1970 = vpack.c.bf16 %v1946, %v1945
        %v1971 = vpack.c.bf16 %v1948, %v1947
        %v1972 = vpack.c.bf16 %v1950, %v1949
        %v1973 = vpack.c.bf16 %v1952, %v1951
        %v1974 = vpack.c.bf16 %v1954, %v1953
        %v1975 = vpack.c.bf16 %v1956, %v1955
        %v1976 = vpack.c.bf16 %v1958, %v1957
        %v1977 = vpack.c.bf16 %v1960, %v1959
        %v1978 = vpack.c.bf16 %v1962, %v1961
        %v1979 = vlaneseq
        %v1980 = vshrl.u32 %v1979, 7
        %v1981 = vsub.s32 0, %v1980
        %v1982 = vrot.slane %v893, %v1981
        %v1999 = vunpack.c.l.b16 %v844
        %v2000 = vunpack.c.l.b16 %v845
        %v2001 = vunpack.c.l.b16 %v846
        %v2002 = vunpack.c.l.b16 %v847
        %v2003 = vunpack.c.l.b16 %v848
        %v2004 = vunpack.c.l.b16 %v849
        %v2005 = vunpack.c.l.b16 %v850
        %v2006 = vunpack.c.l.b16 %v851
        %v2007 = vunpack.c.l.b16 %v852
        %v2008 = vunpack.c.l.b16 %v853
        %v2009 = vunpack.c.l.b16 %v854
        %v2010 = vunpack.c.l.b16 %v855
        %v2011 = vunpack.c.l.b16 %v856
        %v2012 = vunpack.c.l.b16 %v857
        %v2013 = vunpack.c.l.b16 %v858
        %v2014 = vunpack.c.l.b16 %v859
        %v2015 = vpack.c.b16 %v2000, %v1999
        %v2016 = vpack.c.b16 %v2002, %v2001
        %v2017 = vpack.c.b16 %v2004, %v2003
        %v2018 = vpack.c.b16 %v2006, %v2005
        %v2019 = vpack.c.b16 %v2008, %v2007
        %v2020 = vpack.c.b16 %v2010, %v2009
        %v2021 = vpack.c.b16 %v2012, %v2011
        %v2022 = vpack.c.b16 %v2014, %v2013
        %2031 = vmatprep.subr.bf16.mxu0 0
        %2032 = vmatpush1.bf16.msra.mxu0 %v2015
        %2033 = vmatprep.subr.bf16.mxu0 0
        %2034 = vmatpush1.bf16.msra.mxu0 %v2016
        %2035 = vmatprep.subr.bf16.mxu0 0
        %2036 = vmatpush1.bf16.msra.mxu0 %v2017
        %2037 = vmatprep.subr.bf16.mxu0 0
        %2038 = vmatpush1.bf16.msra.mxu0 %v2018
        %2039 = vmatprep.subr.bf16.mxu0 0
        %2040 = vmatpush1.bf16.msra.mxu0 %v2019
        %2041 = vmatprep.subr.bf16.mxu0 0
        %2042 = vmatpush1.bf16.msra.mxu0 %v2020
        %2043 = vmatprep.subr.bf16.mxu0 0
        %2044 = vmatpush1.bf16.msra.mxu0 %v2021
        %2045 = vmatprep.subr.bf16.mxu0 0
        %2046 = vmatpush1.bf16.msra.mxu0 %v2022
        %2047 = vmatprep.subr.bf16.mxu0 0
        %2048 = vmatpush1.bf16.msra.mxu0 0
        %2049 = vmatprep.subr.bf16.mxu0 0
        %2050 = vmatpush1.bf16.msra.mxu0 0
        %2051 = vmatprep.subr.bf16.mxu0 0
        %2052 = vmatpush1.bf16.msra.mxu0 0
        %2053 = vmatprep.subr.bf16.mxu0 0
        %2054 = vmatpush1.bf16.msra.mxu0 0
        %2055 = vmatprep.subr.bf16.mxu0 0
        %2056 = vmatpush1.bf16.msra.mxu0 0
        %2057 = vmatprep.subr.bf16.mxu0 0
        %2058 = vmatpush1.bf16.msra.mxu0 0
        %2059 = vmatprep.subr.bf16.mxu0 0
        %2060 = vmatpush1.bf16.msra.mxu0 0
        %2061 = vmatprep.subr.bf16.mxu0 0
        %2062 = vmatpush1.bf16.msra.mxu0 0
        %2063 = vmatprep.mubr.bf16.mxu0 0
        %2064 = vmatmul.mubr.bf16.gmra.mrb[0].mxu0 %v1963
        %v2065 = vpop.f32.mrb[0].mxu0
        %v2066 = vadd.f32 %v1982, %v2065
        %v2067 = vpop.f32.mrb[0].mxu0
        %v2068 = vpop.f32.mrb[0].mxu0
        %v2069 = vadd.f32 %v1982, %v2068
        %v2070 = vpop.f32.mrb[0].mxu0
        %2071 = vmatprep.mubr.bf16.mxu0 0
        %2072 = vmatmul.mubr.bf16.gmra.mrb[0].mxu0 %v1964
        %v2073 = vpop.f32.mrb[0].mxu0
        %v2074 = vadd.f32 %v1982, %v2073
        %v2075 = vpop.f32.mrb[0].mxu0
        %v2076 = vpop.f32.mrb[0].mxu0
        %v2077 = vadd.f32 %v1982, %v2076
        %v2078 = vpop.f32.mrb[0].mxu0
        %2079 = vmatprep.mubr.bf16.mxu0 0
        %2080 = vmatmul.mubr.bf16.gmra.mrb[0].mxu0 %v1965
        %v2081 = vpop.f32.mrb[0].mxu0
        %v2082 = vadd.f32 %v1982, %v2081
        %v2083 = vpop.f32.mrb[0].mxu0
        %v2084 = vpop.f32.mrb[0].mxu0
        %v2085 = vadd.f32 %v1982, %v2084
        %v2086 = vpop.f32.mrb[0].mxu0
        %2087 = vmatprep.mubr.bf16.mxu0 0
        %2088 = vmatmul.mubr.bf16.gmra.mrb[0].mxu0 %v1966
        %v2089 = vpop.f32.mrb[0].mxu0
        %v2090 = vadd.f32 %v1982, %v2089
        %v2091 = vpop.f32.mrb[0].mxu0
        %v2092 = vpop.f32.mrb[0].mxu0
        %v2093 = vadd.f32 %v1982, %v2092
        %v2094 = vpop.f32.mrb[0].mxu0
        %2095 = vmatprep.mubr.bf16.mxu0 0
        %2096 = vmatmul.mubr.bf16.gmra.mrb[0].mxu0 %v1967
        %v2097 = vpop.f32.mrb[0].mxu0
        %v2098 = vadd.f32 %v1982, %v2097
        %v2099 = vpop.f32.mrb[0].mxu0
        %v2100 = vpop.f32.mrb[0].mxu0
        %v2101 = vadd.f32 %v1982, %v2100
        %v2102 = vpop.f32.mrb[0].mxu0
        %2103 = vmatprep.mubr.bf16.mxu0 0
        %2104 = vmatmul.mubr.bf16.gmra.mrb[0].mxu0 %v1968
        %v2105 = vpop.f32.mrb[0].mxu0
        %v2106 = vadd.f32 %v1982, %v2105
        %v2107 = vpop.f32.mrb[0].mxu0
        %v2108 = vpop.f32.mrb[0].mxu0
        %v2109 = vadd.f32 %v1982, %v2108
        %v2110 = vpop.f32.mrb[0].mxu0
        %2111 = vmatprep.mubr.bf16.mxu0 0
        %2112 = vmatmul.mubr.bf16.gmra.mrb[0].mxu0 %v1969
        %v2113 = vpop.f32.mrb[0].mxu0
        %v2114 = vadd.f32 %v1982, %v2113
        %v2115 = vpop.f32.mrb[0].mxu0
        %v2116 = vpop.f32.mrb[0].mxu0
        %v2117 = vadd.f32 %v1982, %v2116
        %v2118 = vpop.f32.mrb[0].mxu0
        %2119 = vmatprep.mubr.bf16.mxu0 0
        %2120 = vmatmul.mubr.bf16.gmra.mrb[0].mxu0 %v1970
        %v2121 = vpop.f32.mrb[0].mxu0
        %v2122 = vadd.f32 %v1982, %v2121
        %v2123 = vpop.f32.mrb[0].mxu0
        %v2124 = vpop.f32.mrb[0].mxu0
        %v2125 = vadd.f32 %v1982, %v2124
        %v2126 = vpop.f32.mrb[0].mxu0
        %2127 = vmatprep.mubr.bf16.mxu0 0
        %2128 = vmatmul.mubr.bf16.gmra.mrb[0].mxu0 %v1971
        %v2129 = vpop.f32.mrb[0].mxu0
        %v2130 = vadd.f32 %v1982, %v2129
        %v2131 = vpop.f32.mrb[0].mxu0
        %v2132 = vpop.f32.mrb[0].mxu0
        %v2133 = vadd.f32 %v1982, %v2132
        %v2134 = vpop.f32.mrb[0].mxu0
        %2135 = vmatprep.mubr.bf16.mxu0 0
        %2136 = vmatmul.mubr.bf16.gmra.mrb[0].mxu0 %v1972
        %v2137 = vpop.f32.mrb[0].mxu0
        %v2138 = vadd.f32 %v1982, %v2137
        %v2139 = vpop.f32.mrb[0].mxu0
        %v2140 = vpop.f32.mrb[0].mxu0
        %v2141 = vadd.f32 %v1982, %v2140
        %v2142 = vpop.f32.mrb[0].mxu0
        %2143 = vmatprep.mubr.bf16.mxu0 0
        %2144 = vmatmul.mubr.bf16.gmra.mrb[0].mxu0 %v1973
        %v2145 = vpop.f32.mrb[0].mxu0
        %v2146 = vadd.f32 %v1982, %v2145
        %v2147 = vpop.f32.mrb[0].mxu0
        %v2148 = vpop.f32.mrb[0].mxu0
        %v2149 = vadd.f32 %v1982, %v2148
        %v2150 = vpop.f32.mrb[0].mxu0
        %2151 = vmatprep.mubr.bf16.mxu0 0
        %2152 = vmatmul.mubr.bf16.gmra.mrb[0].mxu0 %v1974
        %v2153 = vpop.f32.mrb[0].mxu0
        %v2154 = vadd.f32 %v1982, %v2153
        %v2155 = vpop.f32.mrb[0].mxu0
        %v2156 = vpop.f32.mrb[0].mxu0
        %v2157 = vadd.f32 %v1982, %v2156
        %v2158 = vpop.f32.mrb[0].mxu0
        %2159 = vmatprep.mubr.bf16.mxu0 0
        %2160 = vmatmul.mubr.bf16.gmra.mrb[0].mxu0 %v1975
        %v2161 = vpop.f32.mrb[0].mxu0
        %v2162 = vadd.f32 %v1982, %v2161
        %v2163 = vpop.f32.mrb[0].mxu0
        %v2164 = vpop.f32.mrb[0].mxu0
        %v2165 = vadd.f32 %v1982, %v2164
        %v2166 = vpop.f32.mrb[0].mxu0
        %2167 = vmatprep.mubr.bf16.mxu0 0
        %2168 = vmatmul.mubr.bf16.gmra.mrb[0].mxu0 %v1976
        %v2169 = vpop.f32.mrb[0].mxu0
        %v2170 = vadd.f32 %v1982, %v2169
        %v2171 = vpop.f32.mrb[0].mxu0
        %v2172 = vpop.f32.mrb[0].mxu0
        %v2173 = vadd.f32 %v1982, %v2172
        %v2174 = vpop.f32.mrb[0].mxu0
        %2175 = vmatprep.mubr.bf16.mxu0 0
        %2176 = vmatmul.mubr.bf16.gmra.mrb[0].mxu0 %v1977
        %v2177 = vpop.f32.mrb[0].mxu0
        %v2178 = vadd.f32 %v1982, %v2177
        %v2179 = vpop.f32.mrb[0].mxu0
        %v2180 = vpop.f32.mrb[0].mxu0
        %v2181 = vadd.f32 %v1982, %v2180
        %v2182 = vpop.f32.mrb[0].mxu0
        %2183 = vmatprep.mubr.bf16.mxu0 0
        %2184 = vmatmul.mubr.bf16.gmra.mrb[0].mxu0 %v1978
        %v2185 = vpop.f32.mrb[0].mxu0
        %v2186 = vadd.f32 %v1982, %v2185
        %v2187 = vpop.f32.mrb[0].mxu0
        %v2188 = vpop.f32.mrb[0].mxu0
        %v2189 = vadd.f32 %v1982, %v2188
        %v2190 = vpop.f32.mrb[0].mxu0
        %2191 = vdwg.mxu0
        %v2192 = vld [vmem:[%s773] sm:$0xff]
        %v2193 = vld [vmem:[%s773 + $0x8] sm:$0xff]
        %v2194 = vld [vmem:[%s773 + $0x10] sm:$0xff]
        %v2195 = vld [vmem:[%s773 + $0x18] sm:$0xff]
        %v2196 = vld [vmem:[%s773 + $0x20] sm:$0xff]
        %v2197 = vld [vmem:[%s773 + $0x28] sm:$0xff]
        %v2198 = vld [vmem:[%s773 + $0x30] sm:$0xff]
        %v2199 = vld [vmem:[%s773 + $0x38] sm:$0xff]
        %v2200 = vld [vmem:[%s773 + $0x40] sm:$0xff]
        %v2201 = vld [vmem:[%s773 + $0x48] sm:$0xff]
        %v2202 = vld [vmem:[%s773 + $0x50] sm:$0xff]
        %v2203 = vld [vmem:[%s773 + $0x58] sm:$0xff]
        %v2204 = vld [vmem:[%s773 + $0x60] sm:$0xff]
        %v2205 = vld [vmem:[%s773 + $0x68] sm:$0xff]
        %v2206 = vld [vmem:[%s773 + $0x70] sm:$0xff]
        %v2207 = vld [vmem:[%s773 + $0x78] sm:$0xff]
        %v2208 = vld [vmem:[%s773 + $0x80] sm:$0xff]
        %v2209 = vld [vmem:[%s773 + $0x88] sm:$0xff]
        %v2210 = vld [vmem:[%s773 + $0x90] sm:$0xff]
        %v2211 = vld [vmem:[%s773 + $0x98] sm:$0xff]
        %v2212 = vld [vmem:[%s773 + $0xa0] sm:$0xff]
        %v2213 = vld [vmem:[%s773 + $0xa8] sm:$0xff]
        %v2214 = vld [vmem:[%s773 + $0xb0] sm:$0xff]
        %v2215 = vld [vmem:[%s773 + $0xb8] sm:$0xff]
        %v2216 = vld [vmem:[%s773 + $0xc0] sm:$0xff]
        %v2217 = vld [vmem:[%s773 + $0xc8] sm:$0xff]
        %v2218 = vld [vmem:[%s773 + $0xd0] sm:$0xff]
        %v2219 = vld [vmem:[%s773 + $0xd8] sm:$0xff]
        %v2220 = vld [vmem:[%s773 + $0xe0] sm:$0xff]
        %v2221 = vld [vmem:[%s773 + $0xe8] sm:$0xff]
        %v2222 = vld [vmem:[%s773 + $0xf0] sm:$0xff]
        %v2223 = vld [vmem:[%s773 + $0xf8] sm:$0xff]
        %v2224 = vadd.s32 %v2200, 16
        %v2225 = vadd.s32 %v2201, 16
        %v2226 = vadd.s32 %v2202, 16
        %v2227 = vadd.s32 %v2203, 16
        %v2228 = vadd.s32 %v2204, 16
        %v2229 = vadd.s32 %v2205, 16
        %v2230 = vadd.s32 %v2206, 16
        %v2231 = vadd.s32 %v2207, 16
        %v2232 = vadd.s32 %v2208, 32
        %v2233 = vadd.s32 %v2209, 32
        %v2234 = vadd.s32 %v2210, 32
        %v2235 = vadd.s32 %v2211, 32
        %v2236 = vadd.s32 %v2212, 32
        %v2237 = vadd.s32 %v2213, 32
        %v2238 = vadd.s32 %v2214, 32
        %v2239 = vadd.s32 %v2215, 32
        %v2240 = vadd.s32 %v2216, 48
        %v2241 = vadd.s32 %v2217, 48
        %v2242 = vadd.s32 %v2218, 48
        %v2243 = vadd.s32 %v2219, 48
        %v2244 = vadd.s32 %v2220, 48
        %v2245 = vadd.s32 %v2221, 48
        %v2246 = vadd.s32 %v2222, 48
        %v2247 = vadd.s32 %v2223, 48
        %v2248 = vlaneseq
        %v2249 = vand.u32 %v2248, 127
        %v2250 = vld [vmem:[%s780] sm:$0xff]
        %v2251 = vld [vmem:[%s780 + $0x8] sm:$0xff]
        %v2252 = vld [vmem:[%s780 + $0x10] sm:$0xff]
        %v2253 = vld [vmem:[%s780 + $0x18] sm:$0xff]
        %v2254 = vld [vmem:[%s780 + $0x20] sm:$0xff]
        %v2255 = vld [vmem:[%s780 + $0x28] sm:$0xff]
        %v2256 = vld [vmem:[%s780 + $0x30] sm:$0xff]
        %v2257 = vld [vmem:[%s780 + $0x38] sm:$0xff]
        %v2258 = vld [vmem:[%s780 + $0x40] sm:$0xff]
        %v2259 = vld [vmem:[%s780 + $0x48] sm:$0xff]
        %v2260 = vld [vmem:[%s780 + $0x50] sm:$0xff]
        %v2261 = vld [vmem:[%s780 + $0x58] sm:$0xff]
        %v2262 = vld [vmem:[%s780 + $0x60] sm:$0xff]
        %v2263 = vld [vmem:[%s780 + $0x68] sm:$0xff]
        %v2264 = vld [vmem:[%s780 + $0x70] sm:$0xff]
        %v2265 = vld [vmem:[%s780 + $0x78] sm:$0xff]
        %v2266 = vld [vmem:[%s780 + $0x80] sm:$0xff]
        %v2267 = vld [vmem:[%s780 + $0x88] sm:$0xff]
        %v2268 = vld [vmem:[%s780 + $0x90] sm:$0xff]
        %v2269 = vld [vmem:[%s780 + $0x98] sm:$0xff]
        %v2270 = vld [vmem:[%s780 + $0xa0] sm:$0xff]
        %v2271 = vld [vmem:[%s780 + $0xa8] sm:$0xff]
        %v2272 = vld [vmem:[%s780 + $0xb0] sm:$0xff]
        %v2273 = vld [vmem:[%s780 + $0xb8] sm:$0xff]
        %v2274 = vld [vmem:[%s780 + $0xc0] sm:$0xff]
        %v2275 = vld [vmem:[%s780 + $0xc8] sm:$0xff]
        %v2276 = vld [vmem:[%s780 + $0xd0] sm:$0xff]
        %v2277 = vld [vmem:[%s780 + $0xd8] sm:$0xff]
        %v2278 = vld [vmem:[%s780 + $0xe0] sm:$0xff]
        %v2279 = vld [vmem:[%s780 + $0xe8] sm:$0xff]
        %v2280 = vld [vmem:[%s780 + $0xf0] sm:$0xff]
        %v2281 = vld [vmem:[%s780 + $0xf8] sm:$0xff]
        %v2282 = vpack.c.bf16 %v2250, %v2250
        %v2283 = vpack.c.bf16 %v2251, %v2251
        %v2284 = vpack.c.bf16 %v2252, %v2252
        %v2285 = vpack.c.bf16 %v2253, %v2253
        %v2286 = vpack.c.bf16 %v2254, %v2254
        %v2287 = vpack.c.bf16 %v2255, %v2255
        %v2288 = vpack.c.bf16 %v2256, %v2256
        %v2289 = vpack.c.bf16 %v2257, %v2257
        %v2290 = vpack.c.bf16 %v2258, %v2258
        %v2291 = vpack.c.bf16 %v2259, %v2259
        %v2292 = vpack.c.bf16 %v2260, %v2260
        %v2293 = vpack.c.bf16 %v2261, %v2261
        %v2294 = vpack.c.bf16 %v2262, %v2262
        %v2295 = vpack.c.bf16 %v2263, %v2263
        %v2296 = vpack.c.bf16 %v2264, %v2264
        %v2297 = vpack.c.bf16 %v2265, %v2265
        %v2298 = vpack.c.bf16 %v2266, %v2266
        %v2299 = vpack.c.bf16 %v2267, %v2267
        %v2300 = vpack.c.bf16 %v2268, %v2268
        %v2301 = vpack.c.bf16 %v2269, %v2269
        %v2302 = vpack.c.bf16 %v2270, %v2270
        %v2303 = vpack.c.bf16 %v2271, %v2271
        %v2304 = vpack.c.bf16 %v2272, %v2272
        %v2305 = vpack.c.bf16 %v2273, %v2273
        %v2306 = vpack.c.bf16 %v2274, %v2274
        %v2307 = vpack.c.bf16 %v2275, %v2275
        %v2308 = vpack.c.bf16 %v2276, %v2276
        %v2309 = vpack.c.bf16 %v2277, %v2277
        %v2310 = vpack.c.bf16 %v2278, %v2278
        %v2311 = vpack.c.bf16 %v2279, %v2279
        %v2312 = vpack.c.bf16 %v2280, %v2280
        %v2313 = vpack.c.bf16 %v2281, %v2281
        %2314 = vset.pattern.permute.xlu0 0
        %2315 = vperm.xlu0 %2314, %v2192
        %v2316 = vpop.permute.xlu0 %2315
        %2317 = vset.pattern.permute.xlu0 0
        %2318 = vperm.xlu0 %2317, %v2193
        %v2319 = vpop.permute.xlu0 %2318
        %2320 = vset.pattern.permute.xlu0 0
        %2321 = vperm.xlu0 %2320, %v2194
        %v2322 = vpop.permute.xlu0 %2321
        %2323 = vset.pattern.permute.xlu0 0
        %2324 = vperm.xlu0 %2323, %v2195
        %v2325 = vpop.permute.xlu0 %2324
        %2326 = vset.pattern.permute.xlu0 0
        %2327 = vperm.xlu0 %2326, %v2196
        %v2328 = vpop.permute.xlu0 %2327
        %2329 = vset.pattern.permute.xlu0 0
        %2330 = vperm.xlu0 %2329, %v2197
        %v2331 = vpop.permute.xlu0 %2330
        %2332 = vset.pattern.permute.xlu0 0
        %2333 = vperm.xlu0 %2332, %v2198
        %v2334 = vpop.permute.xlu0 %2333
        %2335 = vset.pattern.permute.xlu0 0
        %2336 = vperm.xlu0 %2335, %v2199
        %v2337 = vpop.permute.xlu0 %2336
        %2338 = vset.pattern.permute.xlu0 0
        %2339 = vperm.xlu0 %2338, %v2224
        %v2340 = vpop.permute.xlu0 %2339
        %2341 = vset.pattern.permute.xlu0 0
        %2342 = vperm.xlu0 %2341, %v2225
        %v2343 = vpop.permute.xlu0 %2342
        %2344 = vset.pattern.permute.xlu0 0
        %2345 = vperm.xlu0 %2344, %v2226
        %v2346 = vpop.permute.xlu0 %2345
        %2347 = vset.pattern.permute.xlu0 0
        %2348 = vperm.xlu0 %2347, %v2227
        %v2349 = vpop.permute.xlu0 %2348
        %2350 = vset.pattern.permute.xlu0 0
        %2351 = vperm.xlu0 %2350, %v2228
        %v2352 = vpop.permute.xlu0 %2351
        %2353 = vset.pattern.permute.xlu0 0
        %2354 = vperm.xlu0 %2353, %v2229
        %v2355 = vpop.permute.xlu0 %2354
        %2356 = vset.pattern.permute.xlu0 0
        %2357 = vperm.xlu0 %2356, %v2230
        %v2358 = vpop.permute.xlu0 %2357
        %2359 = vset.pattern.permute.xlu0 0
        %2360 = vperm.xlu0 %2359, %v2231
        %v2361 = vpop.permute.xlu0 %2360
        %2362 = vset.pattern.permute.xlu0 0
        %2363 = vperm.xlu0 %2362, %v2232
        %v2364 = vpop.permute.xlu0 %2363
        %2365 = vset.pattern.permute.xlu0 0
        %2366 = vperm.xlu0 %2365, %v2233
        %v2367 = vpop.permute.xlu0 %2366
        %2368 = vset.pattern.permute.xlu0 0
        %2369 = vperm.xlu0 %2368, %v2234
        %v2370 = vpop.permute.xlu0 %2369
        %2371 = vset.pattern.permute.xlu0 0
        %2372 = vperm.xlu0 %2371, %v2235
        %v2373 = vpop.permute.xlu0 %2372
        %2374 = vset.pattern.permute.xlu0 0
        %2375 = vperm.xlu0 %2374, %v2236
        %v2376 = vpop.permute.xlu0 %2375
        %2377 = vset.pattern.permute.xlu0 0
        %2378 = vperm.xlu0 %2377, %v2237
        %v2379 = vpop.permute.xlu0 %2378
        %2380 = vset.pattern.permute.xlu0 0
        %2381 = vperm.xlu0 %2380, %v2238
        %v2382 = vpop.permute.xlu0 %2381
        %2383 = vset.pattern.permute.xlu0 0
        %2384 = vperm.xlu0 %2383, %v2239
        %v2385 = vpop.permute.xlu0 %2384
        %2386 = vset.pattern.permute.xlu0 0
        %2387 = vperm.xlu0 %2386, %v2240
        %v2388 = vpop.permute.xlu0 %2387
        %2389 = vset.pattern.permute.xlu0 0
        %2390 = vperm.xlu0 %2389, %v2241
        %v2391 = vpop.permute.xlu0 %2390
        %2392 = vset.pattern.permute.xlu0 0
        %2393 = vperm.xlu0 %2392, %v2242
        %v2394 = vpop.permute.xlu0 %2393
        %2395 = vset.pattern.permute.xlu0 0
        %2396 = vperm.xlu0 %2395, %v2243
        %v2397 = vpop.permute.xlu0 %2396
        %2398 = vset.pattern.permute.xlu0 0
        %2399 = vperm.xlu0 %2398, %v2244
        %v2400 = vpop.permute.xlu0 %2399
        %2401 = vset.pattern.permute.xlu0 0
        %2402 = vperm.xlu0 %2401, %v2245
        %v2403 = vpop.permute.xlu0 %2402
        %2404 = vset.pattern.permute.xlu0 0
        %2405 = vperm.xlu0 %2404, %v2246
        %v2406 = vpop.permute.xlu0 %2405
        %2407 = vset.pattern.permute.xlu0 0
        %2408 = vperm.xlu0 %2407, %v2247
        %v2409 = vpop.permute.xlu0 %2408
        %vm2410 = vcmp.eq.s32.totalorder %v2316, %v2249
        %vm2411 = vcmp.eq.s32.totalorder %v2319, %v2249
        %vm2412 = vcmp.eq.s32.totalorder %v2322, %v2249
        %vm2413 = vcmp.eq.s32.totalorder %v2325, %v2249
        %vm2414 = vcmp.eq.s32.totalorder %v2328, %v2249
        %vm2415 = vcmp.eq.s32.totalorder %v2331, %v2249
        %vm2416 = vcmp.eq.s32.totalorder %v2334, %v2249
        %vm2417 = vcmp.eq.s32.totalorder %v2337, %v2249
        %vm2418 = vcmp.eq.s32.totalorder %v2340, %v2249
        %vm2419 = vcmp.eq.s32.totalorder %v2343, %v2249
        %vm2420 = vcmp.eq.s32.totalorder %v2346, %v2249
        %vm2421 = vcmp.eq.s32.totalorder %v2349, %v2249
        %vm2422 = vcmp.eq.s32.totalorder %v2352, %v2249
        %vm2423 = vcmp.eq.s32.totalorder %v2355, %v2249
        %vm2424 = vcmp.eq.s32.totalorder %v2358, %v2249
        %vm2425 = vcmp.eq.s32.totalorder %v2361, %v2249
        %vm2426 = vcmp.eq.s32.totalorder %v2364, %v2249
        %vm2427 = vcmp.eq.s32.totalorder %v2367, %v2249
        %vm2428 = vcmp.eq.s32.totalorder %v2370, %v2249
        %vm2429 = vcmp.eq.s32.totalorder %v2373, %v2249
        %vm2430 = vcmp.eq.s32.totalorder %v2376, %v2249
        %vm2431 = vcmp.eq.s32.totalorder %v2379, %v2249
        %vm2432 = vcmp.eq.s32.totalorder %v2382, %v2249
        %vm2433 = vcmp.eq.s32.totalorder %v2385, %v2249
        %vm2434 = vcmp.eq.s32.totalorder %v2388, %v2249
        %vm2435 = vcmp.eq.s32.totalorder %v2391, %v2249
        %vm2436 = vcmp.eq.s32.totalorder %v2394, %v2249
        %vm2437 = vcmp.eq.s32.totalorder %v2397, %v2249
        %vm2438 = vcmp.eq.s32.totalorder %v2400, %v2249
        %vm2439 = vcmp.eq.s32.totalorder %v2403, %v2249
        %vm2440 = vcmp.eq.s32.totalorder %v2406, %v2249
        %vm2441 = vcmp.eq.s32.totalorder %v2409, %v2249
        %v2442 = vsel %vm2410, 1, 0
        %v2443 = vsel %vm2411, 1, 0
        %v2444 = vsel %vm2412, 1, 0
        %v2445 = vsel %vm2413, 1, 0
        %v2446 = vsel %vm2414, 1, 0
        %v2447 = vsel %vm2415, 1, 0
        %v2448 = vsel %vm2416, 1, 0
        %v2449 = vsel %vm2417, 1, 0
        %v2450 = vsel %vm2418, 1, 0
        %v2451 = vsel %vm2419, 1, 0
        %v2452 = vsel %vm2420, 1, 0
        %v2453 = vsel %vm2421, 1, 0
        %v2454 = vsel %vm2422, 1, 0
        %v2455 = vsel %vm2423, 1, 0
        %v2456 = vsel %vm2424, 1, 0
        %v2457 = vsel %vm2425, 1, 0
        %v2458 = vsel %vm2426, 1, 0
        %v2459 = vsel %vm2427, 1, 0
        %v2460 = vsel %vm2428, 1, 0
        %v2461 = vsel %vm2429, 1, 0
        %v2462 = vsel %vm2430, 1, 0
        %v2463 = vsel %vm2431, 1, 0
        %v2464 = vsel %vm2432, 1, 0
        %v2465 = vsel %vm2433, 1, 0
        %v2466 = vsel %vm2434, 1, 0
        %v2467 = vsel %vm2435, 1, 0
        %v2468 = vsel %vm2436, 1, 0
        %v2469 = vsel %vm2437, 1, 0
        %v2470 = vsel %vm2438, 1, 0
        %v2471 = vsel %vm2439, 1, 0
        %v2472 = vsel %vm2440, 1, 0
        %v2473 = vsel %vm2441, 1, 0
        %v2474 = vcvt.s32.f32 %v2442
        %v2475 = vcvt.s32.f32 %v2443
        %v2476 = vcvt.s32.f32 %v2444
        %v2477 = vcvt.s32.f32 %v2445
        %v2478 = vcvt.s32.f32 %v2446
        %v2479 = vcvt.s32.f32 %v2447
        %v2480 = vcvt.s32.f32 %v2448
        %v2481 = vcvt.s32.f32 %v2449
        %v2482 = vcvt.s32.f32 %v2450
        %v2483 = vcvt.s32.f32 %v2451
        %v2484 = vcvt.s32.f32 %v2452
        %v2485 = vcvt.s32.f32 %v2453
        %v2486 = vcvt.s32.f32 %v2454
        %v2487 = vcvt.s32.f32 %v2455
        %v2488 = vcvt.s32.f32 %v2456
        %v2489 = vcvt.s32.f32 %v2457
        %v2490 = vcvt.s32.f32 %v2458
        %v2491 = vcvt.s32.f32 %v2459
        %v2492 = vcvt.s32.f32 %v2460
        %v2493 = vcvt.s32.f32 %v2461
        %v2494 = vcvt.s32.f32 %v2462
        %v2495 = vcvt.s32.f32 %v2463
        %v2496 = vcvt.s32.f32 %v2464
        %v2497 = vcvt.s32.f32 %v2465
        %v2498 = vcvt.s32.f32 %v2466
        %v2499 = vcvt.s32.f32 %v2467
        %v2500 = vcvt.s32.f32 %v2468
        %v2501 = vcvt.s32.f32 %v2469
        %v2502 = vcvt.s32.f32 %v2470
        %v2503 = vcvt.s32.f32 %v2471
        %v2504 = vcvt.s32.f32 %v2472
        %v2505 = vcvt.s32.f32 %v2473
        %v2506 = vpack.c.bf16 %v2474, %v2474
        %v2507 = vpack.c.bf16 %v2475, %v2475
        %v2508 = vpack.c.bf16 %v2476, %v2476
        %v2509 = vpack.c.bf16 %v2477, %v2477
        %v2510 = vpack.c.bf16 %v2478, %v2478
        %v2511 = vpack.c.bf16 %v2479, %v2479
        %v2512 = vpack.c.bf16 %v2480, %v2480
        %v2513 = vpack.c.bf16 %v2481, %v2481
        %v2514 = vpack.c.bf16 %v2482, %v2482
        %v2515 = vpack.c.bf16 %v2483, %v2483
        %v2516 = vpack.c.bf16 %v2484, %v2484
        %v2517 = vpack.c.bf16 %v2485, %v2485
        %v2518 = vpack.c.bf16 %v2486, %v2486
        %v2519 = vpack.c.bf16 %v2487, %v2487
        %v2520 = vpack.c.bf16 %v2488, %v2488
        %v2521 = vpack.c.bf16 %v2489, %v2489
        %v2522 = vpack.c.bf16 %v2490, %v2490
        %v2523 = vpack.c.bf16 %v2491, %v2491
        %v2524 = vpack.c.bf16 %v2492, %v2492
        %v2525 = vpack.c.bf16 %v2493, %v2493
        %v2526 = vpack.c.bf16 %v2494, %v2494
        %v2527 = vpack.c.bf16 %v2495, %v2495
        %v2528 = vpack.c.bf16 %v2496, %v2496
        %v2529 = vpack.c.bf16 %v2497, %v2497
        %v2530 = vpack.c.bf16 %v2498, %v2498
        %v2531 = vpack.c.bf16 %v2499, %v2499
        %v2532 = vpack.c.bf16 %v2500, %v2500
        %v2533 = vpack.c.bf16 %v2501, %v2501
        %v2534 = vpack.c.bf16 %v2502, %v2502
        %v2535 = vpack.c.bf16 %v2503, %v2503
        %v2536 = vpack.c.bf16 %v2504, %v2504
        %v2537 = vpack.c.bf16 %v2505, %v2505
        %2539 = vset.pattern.permute.xlu0 0
        %2540 = vperm.xlu0 %2539, %v2282
        %v2541 = vpop.permute.xlu0 %2540
        %2544 = vset.pattern.permute.xlu0 0
        %2545 = vperm.xlu0 %2544, %v2283
        %v2546 = vpop.permute.xlu0 %2545
        %2549 = vset.pattern.permute.xlu0 0
        %2550 = vperm.xlu0 %2549, %v2284
        %v2551 = vpop.permute.xlu0 %2550
        %2554 = vset.pattern.permute.xlu0 0
        %2555 = vperm.xlu0 %2554, %v2285
        %v2556 = vpop.permute.xlu0 %2555
        %2559 = vset.pattern.permute.xlu0 0
        %2560 = vperm.xlu0 %2559, %v2286
        %v2561 = vpop.permute.xlu0 %2560
        %2564 = vset.pattern.permute.xlu0 0
        %2565 = vperm.xlu0 %2564, %v2287
        %v2566 = vpop.permute.xlu0 %2565
        %2569 = vset.pattern.permute.xlu0 0
        %2570 = vperm.xlu0 %2569, %v2288
        %v2571 = vpop.permute.xlu0 %2570
        %2574 = vset.pattern.permute.xlu0 0
        %2575 = vperm.xlu0 %2574, %v2289
        %v2576 = vpop.permute.xlu0 %2575
        %2579 = vset.pattern.permute.xlu0 0
        %2580 = vperm.xlu0 %2579, %v2290
        %v2581 = vpop.permute.xlu0 %2580
        %2584 = vset.pattern.permute.xlu0 0
        %2585 = vperm.xlu0 %2584, %v2291
        %v2586 = vpop.permute.xlu0 %2585
        %2589 = vset.pattern.permute.xlu0 0
        %2590 = vperm.xlu0 %2589, %v2292
        %v2591 = vpop.permute.xlu0 %2590
        %2594 = vset.pattern.permute.xlu0 0
        %2595 = vperm.xlu0 %2594, %v2293
        %v2596 = vpop.permute.xlu0 %2595
        %2599 = vset.pattern.permute.xlu0 0
        %2600 = vperm.xlu0 %2599, %v2294
        %v2601 = vpop.permute.xlu0 %2600
        %2604 = vset.pattern.permute.xlu0 0
        %2605 = vperm.xlu0 %2604, %v2295
        %v2606 = vpop.permute.xlu0 %2605
        %2609 = vset.pattern.permute.xlu0 0
        %2610 = vperm.xlu0 %2609, %v2296
        %v2611 = vpop.permute.xlu0 %2610
        %2614 = vset.pattern.permute.xlu0 0
        %2615 = vperm.xlu0 %2614, %v2297
        %v2616 = vpop.permute.xlu0 %2615
        %2619 = vset.pattern.permute.xlu0 0
        %2620 = vperm.xlu0 %2619, %v2298
        %v2621 = vpop.permute.xlu0 %2620
        %2624 = vset.pattern.permute.xlu0 0
        %2625 = vperm.xlu0 %2624, %v2299
        %v2626 = vpop.permute.xlu0 %2625
        %2629 = vset.pattern.permute.xlu0 0
        %2630 = vperm.xlu0 %2629, %v2300
        %v2631 = vpop.permute.xlu0 %2630
        %2634 = vset.pattern.permute.xlu0 0
        %2635 = vperm.xlu0 %2634, %v2301
        %v2636 = vpop.permute.xlu0 %2635
        %2639 = vset.pattern.permute.xlu0 0
        %2640 = vperm.xlu0 %2639, %v2302
        %v2641 = vpop.permute.xlu0 %2640
        %2644 = vset.pattern.permute.xlu0 0
        %2645 = vperm.xlu0 %2644, %v2303
        %v2646 = vpop.permute.xlu0 %2645
        %2649 = vset.pattern.permute.xlu0 0
        %2650 = vperm.xlu0 %2649, %v2304
        %v2651 = vpop.permute.xlu0 %2650
        %2654 = vset.pattern.permute.xlu0 0
        %2655 = vperm.xlu0 %2654, %v2305
        %v2656 = vpop.permute.xlu0 %2655
        %2659 = vset.pattern.permute.xlu0 0
        %2660 = vperm.xlu0 %2659, %v2306
        %v2661 = vpop.permute.xlu0 %2660
        %2664 = vset.pattern.permute.xlu0 0
        %2665 = vperm.xlu0 %2664, %v2307
        %v2666 = vpop.permute.xlu0 %2665
        %2669 = vset.pattern.permute.xlu0 0
        %2670 = vperm.xlu0 %2669, %v2308
        %v2671 = vpop.permute.xlu0 %2670
        %2674 = vset.pattern.permute.xlu0 0
        %2675 = vperm.xlu0 %2674, %v2309
        %v2676 = vpop.permute.xlu0 %2675
        %2679 = vset.pattern.permute.xlu0 0
        %2680 = vperm.xlu0 %2679, %v2310
        %v2681 = vpop.permute.xlu0 %2680
        %2684 = vset.pattern.permute.xlu0 0
        %2685 = vperm.xlu0 %2684, %v2311
        %v2686 = vpop.permute.xlu0 %2685
        %2689 = vset.pattern.permute.xlu0 0
        %2690 = vperm.xlu0 %2689, %v2312
        %v2691 = vpop.permute.xlu0 %2690
        %2694 = vset.pattern.permute.xlu0 0
        %2695 = vperm.xlu0 %2694, %v2313
        %v2696 = vpop.permute.xlu0 %2695
        %v2698 = vmul.bf16 %v2506, %v2541
        %v2699 = vmul.bf16 %v2507, %v2546
        %v2700 = vmul.bf16 %v2508, %v2551
        %v2701 = vmul.bf16 %v2509, %v2556
        %v2702 = vmul.bf16 %v2510, %v2561
        %v2703 = vmul.bf16 %v2511, %v2566
        %v2704 = vmul.bf16 %v2512, %v2571
        %v2705 = vmul.bf16 %v2513, %v2576
        %v2706 = vmul.bf16 %v2514, %v2581
        %v2707 = vmul.bf16 %v2515, %v2586
        %v2708 = vmul.bf16 %v2516, %v2591
        %v2709 = vmul.bf16 %v2517, %v2596
        %v2710 = vmul.bf16 %v2518, %v2601
        %v2711 = vmul.bf16 %v2519, %v2606
        %v2712 = vmul.bf16 %v2520, %v2611
        %v2713 = vmul.bf16 %v2521, %v2616
        %v2714 = vmul.bf16 %v2522, %v2621
        %v2715 = vmul.bf16 %v2523, %v2626
        %v2716 = vmul.bf16 %v2524, %v2631
        %v2717 = vmul.bf16 %v2525, %v2636
        %v2718 = vmul.bf16 %v2526, %v2641
        %v2719 = vmul.bf16 %v2527, %v2646
        %v2720 = vmul.bf16 %v2528, %v2651
        %v2721 = vmul.bf16 %v2529, %v2656
        %v2722 = vmul.bf16 %v2530, %v2661
        %v2723 = vmul.bf16 %v2531, %v2666
        %v2724 = vmul.bf16 %v2532, %v2671
        %v2725 = vmul.bf16 %v2533, %v2676
        %v2726 = vmul.bf16 %v2534, %v2681
        %v2727 = vmul.bf16 %v2535, %v2686
        %v2728 = vmul.bf16 %v2536, %v2691
        %v2729 = vmul.bf16 %v2537, %v2696
        %v2762 = vunpack.c.l.b16 %v2698
        %v2763 = vunpack.c.l.b16 %v2699
        %v2764 = vunpack.c.l.b16 %v2700
        %v2765 = vunpack.c.l.b16 %v2701
        %v2766 = vunpack.c.l.b16 %v2702
        %v2767 = vunpack.c.l.b16 %v2703
        %v2768 = vunpack.c.l.b16 %v2704
        %v2769 = vunpack.c.l.b16 %v2705
        %v2770 = vunpack.c.l.b16 %v2706
        %v2771 = vunpack.c.l.b16 %v2707
        %v2772 = vunpack.c.l.b16 %v2708
        %v2773 = vunpack.c.l.b16 %v2709
        %v2774 = vunpack.c.l.b16 %v2710
        %v2775 = vunpack.c.l.b16 %v2711
        %v2776 = vunpack.c.l.b16 %v2712
        %v2777 = vunpack.c.l.b16 %v2713
        %v2778 = vunpack.c.l.b16 %v2714
        %v2779 = vunpack.c.l.b16 %v2715
        %v2780 = vunpack.c.l.b16 %v2716
        %v2781 = vunpack.c.l.b16 %v2717
        %v2782 = vunpack.c.l.b16 %v2718
        %v2783 = vunpack.c.l.b16 %v2719
        %v2784 = vunpack.c.l.b16 %v2720
        %v2785 = vunpack.c.l.b16 %v2721
        %v2786 = vunpack.c.l.b16 %v2722
        %v2787 = vunpack.c.l.b16 %v2723
        %v2788 = vunpack.c.l.b16 %v2724
        %v2789 = vunpack.c.l.b16 %v2725
        %v2790 = vunpack.c.l.b16 %v2726
        %v2791 = vunpack.c.l.b16 %v2727
        %v2792 = vunpack.c.l.b16 %v2728
        %v2793 = vunpack.c.l.b16 %v2729
        %v2794 = vpack.c.b16 %v2763, %v2762
        %v2795 = vpack.c.b16 %v2765, %v2764
        %v2796 = vpack.c.b16 %v2767, %v2766
        %v2797 = vpack.c.b16 %v2769, %v2768
        %v2798 = vpack.c.b16 %v2771, %v2770
        %v2799 = vpack.c.b16 %v2773, %v2772
        %v2800 = vpack.c.b16 %v2775, %v2774
        %v2801 = vpack.c.b16 %v2777, %v2776
        %v2802 = vpack.c.b16 %v2779, %v2778
        %v2803 = vpack.c.b16 %v2781, %v2780
        %v2804 = vpack.c.b16 %v2783, %v2782
        %v2805 = vpack.c.b16 %v2785, %v2784
        %v2806 = vpack.c.b16 %v2787, %v2786
        %v2807 = vpack.c.b16 %v2789, %v2788
        %v2808 = vpack.c.b16 %v2791, %v2790
        %v2809 = vpack.c.b16 %v2793, %v2792
        %vm2810 = vcmask 523264
        %v2812 = vsel %vm2810, %v2794, 0
        %v2815 = vsel %vm2810, %v2795, 0
        %v2818 = vsel %vm2810, %v2796, 0
        %v2821 = vsel %vm2810, %v2797, 0
        %v2824 = vsel %vm2810, %v2798, 0
        %v2827 = vsel %vm2810, %v2799, 0
        %v2830 = vsel %vm2810, %v2800, 0
        %v2833 = vsel %vm2810, %v2801, 0
        %v2836 = vsel %vm2810, %v2802, 0
        %v2839 = vsel %vm2810, %v2803, 0
        %v2842 = vsel %vm2810, %v2804, 0
        %v2845 = vsel %vm2810, %v2805, 0
        %v2848 = vsel %vm2810, %v2806, 0
        %v2851 = vsel %vm2810, %v2807, 0
        %v2854 = vsel %vm2810, %v2808, 0
        %v2857 = vsel %vm2810, %v2809, 0
        %2859 = vmatprep.subr.bf16.mxu0 0
        %2860 = vmatpush1.bf16.msra.mxu0 %v1014
        %2861 = vmatprep.subr.bf16.mxu0 0
        %2862 = vmatpush1.bf16.msra.mxu0 %v1015
        %2863 = vmatprep.subr.bf16.mxu0 0
        %2864 = vmatpush1.bf16.msra.mxu0 %v1016
        %2865 = vmatprep.subr.bf16.mxu0 0
        %2866 = vmatpush1.bf16.msra.mxu0 %v1017
        %2867 = vmatprep.subr.bf16.mxu0 0
        %2868 = vmatpush1.bf16.msra.mxu0 0
        %2869 = vmatprep.subr.bf16.mxu0 0
        %2870 = vmatpush1.bf16.msra.mxu0 0
        %2871 = vmatprep.subr.bf16.mxu0 0
        %2872 = vmatpush1.bf16.msra.mxu0 0
        %2873 = vmatprep.subr.bf16.mxu0 0
        %2874 = vmatpush1.bf16.msra.mxu0 0
        %2875 = vmatprep.subr.bf16.mxu0 0
        %2876 = vmatpush1.bf16.msra.mxu0 0
        %2877 = vmatprep.subr.bf16.mxu0 0
        %2878 = vmatpush1.bf16.msra.mxu0 0
        %2879 = vmatprep.subr.bf16.mxu0 0
        %2880 = vmatpush1.bf16.msra.mxu0 0
        %2881 = vmatprep.subr.bf16.mxu0 0
        %2882 = vmatpush1.bf16.msra.mxu0 0
        %2883 = vmatprep.subr.bf16.mxu0 0
        %2884 = vmatpush1.bf16.msra.mxu0 0
        %2885 = vmatprep.subr.bf16.mxu0 0
        %2886 = vmatpush1.bf16.msra.mxu0 0
        %2887 = vmatprep.subr.bf16.mxu0 0
        %2888 = vmatpush1.bf16.msra.mxu0 0
        %2889 = vmatprep.subr.bf16.mxu0 0
        %2890 = vmatpush1.bf16.msra.mxu0 0
        %2891 = vmatprep.mubr.bf16.mxu0 0
        %2892 = vmatmul.mubr.bf16.gmra.mrb[0].mxu0 %v2812
        %v2893 = vpop.f32.mrb[0].mxu0
        %v2894 = vadd.f32 0.0, %v2893
        %v2895 = vpop.f32.mrb[0].mxu0
        %v2896 = vpop.f32.mrb[0].mxu0
        %v2897 = vadd.f32 0.0, %v2896
        %v2898 = vpop.f32.mrb[0].mxu0
        %2899 = vmatprep.mubr.bf16.mxu0 0
        %2900 = vmatmul.mubr.bf16.gmra.mrb[0].mxu0 %v2815
        %v2901 = vpop.f32.mrb[0].mxu0
        %v2902 = vadd.f32 0.0, %v2901
        %v2903 = vpop.f32.mrb[0].mxu0
        %v2904 = vpop.f32.mrb[0].mxu0
        %v2905 = vadd.f32 0.0, %v2904
        %v2906 = vpop.f32.mrb[0].mxu0
        %2907 = vmatprep.mubr.bf16.mxu0 0
        %2908 = vmatmul.mubr.bf16.gmra.mrb[0].mxu0 %v2818
        %v2909 = vpop.f32.mrb[0].mxu0
        %v2910 = vadd.f32 0.0, %v2909
        %v2911 = vpop.f32.mrb[0].mxu0
        %v2912 = vpop.f32.mrb[0].mxu0
        %v2913 = vadd.f32 0.0, %v2912
        %v2914 = vpop.f32.mrb[0].mxu0
        %2915 = vmatprep.mubr.bf16.mxu0 0
        %2916 = vmatmul.mubr.bf16.gmra.mrb[0].mxu0 %v2821
        %v2917 = vpop.f32.mrb[0].mxu0
        %v2918 = vadd.f32 0.0, %v2917
        %v2919 = vpop.f32.mrb[0].mxu0
        %v2920 = vpop.f32.mrb[0].mxu0
        %v2921 = vadd.f32 0.0, %v2920
        %v2922 = vpop.f32.mrb[0].mxu0
        %2923 = vmatprep.mubr.bf16.mxu0 0
        %2924 = vmatmul.mubr.bf16.gmra.mrb[0].mxu0 %v2824
        %v2925 = vpop.f32.mrb[0].mxu0
        %v2926 = vadd.f32 0.0, %v2925
        %v2927 = vpop.f32.mrb[0].mxu0
        %v2928 = vpop.f32.mrb[0].mxu0
        %v2929 = vadd.f32 0.0, %v2928
        %v2930 = vpop.f32.mrb[0].mxu0
        %2931 = vmatprep.mubr.bf16.mxu0 0
        %2932 = vmatmul.mubr.bf16.gmra.mrb[0].mxu0 %v2827
        %v2933 = vpop.f32.mrb[0].mxu0
        %v2934 = vadd.f32 0.0, %v2933
        %v2935 = vpop.f32.mrb[0].mxu0
        %v2936 = vpop.f32.mrb[0].mxu0
        %v2937 = vadd.f32 0.0, %v2936
        %v2938 = vpop.f32.mrb[0].mxu0
        %2939 = vmatprep.mubr.bf16.mxu0 0
        %2940 = vmatmul.mubr.bf16.gmra.mrb[0].mxu0 %v2830
        %v2941 = vpop.f32.mrb[0].mxu0
        %v2942 = vadd.f32 0.0, %v2941
        %v2943 = vpop.f32.mrb[0].mxu0
        %v2944 = vpop.f32.mrb[0].mxu0
        %v2945 = vadd.f32 0.0, %v2944
        %v2946 = vpop.f32.mrb[0].mxu0
        %2947 = vmatprep.mubr.bf16.mxu0 0
        %2948 = vmatmul.mubr.bf16.gmra.mrb[0].mxu0 %v2833
        %v2949 = vpop.f32.mrb[0].mxu0
        %v2950 = vadd.f32 0.0, %v2949
        %v2951 = vpop.f32.mrb[0].mxu0
        %v2952 = vpop.f32.mrb[0].mxu0
        %v2953 = vadd.f32 0.0, %v2952
        %v2954 = vpop.f32.mrb[0].mxu0
        %2955 = vmatprep.mubr.bf16.mxu0 0
        %2956 = vmatmul.mubr.bf16.gmra.mrb[0].mxu0 %v2836
        %v2957 = vpop.f32.mrb[0].mxu0
        %v2958 = vadd.f32 0.0, %v2957
        %v2959 = vpop.f32.mrb[0].mxu0
        %v2960 = vpop.f32.mrb[0].mxu0
        %v2961 = vadd.f32 0.0, %v2960
        %v2962 = vpop.f32.mrb[0].mxu0
        %2963 = vmatprep.mubr.bf16.mxu0 0
        %2964 = vmatmul.mubr.bf16.gmra.mrb[0].mxu0 %v2839
        %v2965 = vpop.f32.mrb[0].mxu0
        %v2966 = vadd.f32 0.0, %v2965
        %v2967 = vpop.f32.mrb[0].mxu0
        %v2968 = vpop.f32.mrb[0].mxu0
        %v2969 = vadd.f32 0.0, %v2968
        %v2970 = vpop.f32.mrb[0].mxu0
        %2971 = vmatprep.mubr.bf16.mxu0 0
        %2972 = vmatmul.mubr.bf16.gmra.mrb[0].mxu0 %v2842
        %v2973 = vpop.f32.mrb[0].mxu0
        %v2974 = vadd.f32 0.0, %v2973
        %v2975 = vpop.f32.mrb[0].mxu0
        %v2976 = vpop.f32.mrb[0].mxu0
        %v2977 = vadd.f32 0.0, %v2976
        %v2978 = vpop.f32.mrb[0].mxu0
        %2979 = vmatprep.mubr.bf16.mxu0 0
        %2980 = vmatmul.mubr.bf16.gmra.mrb[0].mxu0 %v2845
        %v2981 = vpop.f32.mrb[0].mxu0
        %v2982 = vadd.f32 0.0, %v2981
        %v2983 = vpop.f32.mrb[0].mxu0
        %v2984 = vpop.f32.mrb[0].mxu0
        %v2985 = vadd.f32 0.0, %v2984
        %v2986 = vpop.f32.mrb[0].mxu0
        %2987 = vmatprep.mubr.bf16.mxu0 0
        %2988 = vmatmul.mubr.bf16.gmra.mrb[0].mxu0 %v2848
        %v2989 = vpop.f32.mrb[0].mxu0
        %v2990 = vadd.f32 0.0, %v2989
        %v2991 = vpop.f32.mrb[0].mxu0
        %v2992 = vpop.f32.mrb[0].mxu0
        %v2993 = vadd.f32 0.0, %v2992
        %v2994 = vpop.f32.mrb[0].mxu0
        %2995 = vmatprep.mubr.bf16.mxu0 0
        %2996 = vmatmul.mubr.bf16.gmra.mrb[0].mxu0 %v2851
        %v2997 = vpop.f32.mrb[0].mxu0
        %v2998 = vadd.f32 0.0, %v2997
        %v2999 = vpop.f32.mrb[0].mxu0
        %v3000 = vpop.f32.mrb[0].mxu0
        %v3001 = vadd.f32 0.0, %v3000
        %v3002 = vpop.f32.mrb[0].mxu0
        %3003 = vmatprep.mubr.bf16.mxu0 0
        %3004 = vmatmul.mubr.bf16.gmra.mrb[0].mxu0 %v2854
        %v3005 = vpop.f32.mrb[0].mxu0
        %v3006 = vadd.f32 0.0, %v3005
        %v3007 = vpop.f32.mrb[0].mxu0
        %v3008 = vpop.f32.mrb[0].mxu0
        %v3009 = vadd.f32 0.0, %v3008
        %v3010 = vpop.f32.mrb[0].mxu0
        %3011 = vmatprep.mubr.bf16.mxu0 0
        %3012 = vmatmul.mubr.bf16.gmra.mrb[0].mxu0 %v2857
        %v3013 = vpop.f32.mrb[0].mxu0
        %v3014 = vadd.f32 0.0, %v3013
        %v3015 = vpop.f32.mrb[0].mxu0
        %v3016 = vpop.f32.mrb[0].mxu0
        %v3017 = vadd.f32 0.0, %v3016
        %v3018 = vpop.f32.mrb[0].mxu0
        %3019 = vdwg.mxu0
        %v3020 = vmul.f32 %v2894, %v2066
        %v3021 = vmul.f32 %v2897, %v2069
        %v3022 = vmul.f32 %v2902, %v2074
        %v3023 = vmul.f32 %v2905, %v2077
        %v3024 = vmul.f32 %v2910, %v2082
        %v3025 = vmul.f32 %v2913, %v2085
        %v3026 = vmul.f32 %v2918, %v2090
        %v3027 = vmul.f32 %v2921, %v2093
        %v3028 = vmul.f32 %v2926, %v2098
        %v3029 = vmul.f32 %v2929, %v2101
        %v3030 = vmul.f32 %v2934, %v2106
        %v3031 = vmul.f32 %v2937, %v2109
        %v3032 = vmul.f32 %v2942, %v2114
        %v3033 = vmul.f32 %v2945, %v2117
        %v3034 = vmul.f32 %v2950, %v2122
        %v3035 = vmul.f32 %v2953, %v2125
        %v3036 = vmul.f32 %v2958, %v2130
        %v3037 = vmul.f32 %v2961, %v2133
        %v3038 = vmul.f32 %v2966, %v2138
        %v3039 = vmul.f32 %v2969, %v2141
        %v3040 = vmul.f32 %v2974, %v2146
        %v3041 = vmul.f32 %v2977, %v2149
        %v3042 = vmul.f32 %v2982, %v2154
        %v3043 = vmul.f32 %v2985, %v2157
        %v3044 = vmul.f32 %v2990, %v2162
        %v3045 = vmul.f32 %v2993, %v2165
        %v3046 = vmul.f32 %v2998, %v2170
        %v3047 = vmul.f32 %v3001, %v2173
        %v3048 = vmul.f32 %v3006, %v2178
        %v3049 = vmul.f32 %v3009, %v2181
        %v3050 = vmul.f32 %v3014, %v2186
        %v3051 = vmul.f32 %v3017, %v2189
        %v3052 = vrot.slane %v3020, 4
        %v3053 = vadd.f32 %v3020, %v3052
        %v3054 = vrot.slane %v3053, 2
        %v3055 = vadd.f32 %v3053, %v3054
        %v3056 = vrot.slane %v3055, 1
        %v3057 = vadd.f32 %v3055, %v3056
        %v3058 = vrot.slane %v3021, 4
        %v3059 = vadd.f32 %v3021, %v3058
        %v3060 = vrot.slane %v3059, 2
        %v3061 = vadd.f32 %v3059, %v3060
        %v3062 = vrot.slane %v3061, 1
        %v3063 = vadd.f32 %v3061, %v3062
        %v3064 = vrot.slane %v3022, 4
        %v3065 = vadd.f32 %v3022, %v3064
        %v3066 = vrot.slane %v3065, 2
        %v3067 = vadd.f32 %v3065, %v3066
        %v3068 = vrot.slane %v3067, 1
        %v3069 = vadd.f32 %v3067, %v3068
        %v3070 = vrot.slane %v3023, 4
        %v3071 = vadd.f32 %v3023, %v3070
        %v3072 = vrot.slane %v3071, 2
        %v3073 = vadd.f32 %v3071, %v3072
        %v3074 = vrot.slane %v3073, 1
        %v3075 = vadd.f32 %v3073, %v3074
        %v3076 = vrot.slane %v3024, 4
        %v3077 = vadd.f32 %v3024, %v3076
        %v3078 = vrot.slane %v3077, 2
        %v3079 = vadd.f32 %v3077, %v3078
        %v3080 = vrot.slane %v3079, 1
        %v3081 = vadd.f32 %v3079, %v3080
        %v3082 = vrot.slane %v3025, 4
        %v3083 = vadd.f32 %v3025, %v3082
        %v3084 = vrot.slane %v3083, 2
        %v3085 = vadd.f32 %v3083, %v3084
        %v3086 = vrot.slane %v3085, 1
        %v3087 = vadd.f32 %v3085, %v3086
        %v3088 = vrot.slane %v3026, 4
        %v3089 = vadd.f32 %v3026, %v3088
        %v3090 = vrot.slane %v3089, 2
        %v3091 = vadd.f32 %v3089, %v3090
        %v3092 = vrot.slane %v3091, 1
        %v3093 = vadd.f32 %v3091, %v3092
        %v3094 = vrot.slane %v3027, 4
        %v3095 = vadd.f32 %v3027, %v3094
        %v3096 = vrot.slane %v3095, 2
        %v3097 = vadd.f32 %v3095, %v3096
        %v3098 = vrot.slane %v3097, 1
        %v3099 = vadd.f32 %v3097, %v3098
        %v3100 = vrot.slane %v3028, 4
        %v3101 = vadd.f32 %v3028, %v3100
        %v3102 = vrot.slane %v3101, 2
        %v3103 = vadd.f32 %v3101, %v3102
        %v3104 = vrot.slane %v3103, 1
        %v3105 = vadd.f32 %v3103, %v3104
        %v3106 = vrot.slane %v3029, 4
        %v3107 = vadd.f32 %v3029, %v3106
        %v3108 = vrot.slane %v3107, 2
        %v3109 = vadd.f32 %v3107, %v3108
        %v3110 = vrot.slane %v3109, 1
        %v3111 = vadd.f32 %v3109, %v3110
        %v3112 = vrot.slane %v3030, 4
        %v3113 = vadd.f32 %v3030, %v3112
        %v3114 = vrot.slane %v3113, 2
        %v3115 = vadd.f32 %v3113, %v3114
        %v3116 = vrot.slane %v3115, 1
        %v3117 = vadd.f32 %v3115, %v3116
        %v3118 = vrot.slane %v3031, 4
        %v3119 = vadd.f32 %v3031, %v3118
        %v3120 = vrot.slane %v3119, 2
        %v3121 = vadd.f32 %v3119, %v3120
        %v3122 = vrot.slane %v3121, 1
        %v3123 = vadd.f32 %v3121, %v3122
        %v3124 = vrot.slane %v3032, 4
        %v3125 = vadd.f32 %v3032, %v3124
        %v3126 = vrot.slane %v3125, 2
        %v3127 = vadd.f32 %v3125, %v3126
        %v3128 = vrot.slane %v3127, 1
        %v3129 = vadd.f32 %v3127, %v3128
        %v3130 = vrot.slane %v3033, 4
        %v3131 = vadd.f32 %v3033, %v3130
        %v3132 = vrot.slane %v3131, 2
        %v3133 = vadd.f32 %v3131, %v3132
        %v3134 = vrot.slane %v3133, 1
        %v3135 = vadd.f32 %v3133, %v3134
        %v3136 = vrot.slane %v3034, 4
        %v3137 = vadd.f32 %v3034, %v3136
        %v3138 = vrot.slane %v3137, 2
        %v3139 = vadd.f32 %v3137, %v3138
        %v3140 = vrot.slane %v3139, 1
        %v3141 = vadd.f32 %v3139, %v3140
        %v3142 = vrot.slane %v3035, 4
        %v3143 = vadd.f32 %v3035, %v3142
        %v3144 = vrot.slane %v3143, 2
        %v3145 = vadd.f32 %v3143, %v3144
        %v3146 = vrot.slane %v3145, 1
        %v3147 = vadd.f32 %v3145, %v3146
        %v3148 = vrot.slane %v3036, 4
        %v3149 = vadd.f32 %v3036, %v3148
        %v3150 = vrot.slane %v3149, 2
        %v3151 = vadd.f32 %v3149, %v3150
        %v3152 = vrot.slane %v3151, 1
        %v3153 = vadd.f32 %v3151, %v3152
        %v3154 = vrot.slane %v3037, 4
        %v3155 = vadd.f32 %v3037, %v3154
        %v3156 = vrot.slane %v3155, 2
        %v3157 = vadd.f32 %v3155, %v3156
        %v3158 = vrot.slane %v3157, 1
        %v3159 = vadd.f32 %v3157, %v3158
        %v3160 = vrot.slane %v3038, 4
        %v3161 = vadd.f32 %v3038, %v3160
        %v3162 = vrot.slane %v3161, 2
        %v3163 = vadd.f32 %v3161, %v3162
        %v3164 = vrot.slane %v3163, 1
        %v3165 = vadd.f32 %v3163, %v3164
        %v3166 = vrot.slane %v3039, 4
        %v3167 = vadd.f32 %v3039, %v3166
        %v3168 = vrot.slane %v3167, 2
        %v3169 = vadd.f32 %v3167, %v3168
        %v3170 = vrot.slane %v3169, 1
        %v3171 = vadd.f32 %v3169, %v3170
        %v3172 = vrot.slane %v3040, 4
        %v3173 = vadd.f32 %v3040, %v3172
        %v3174 = vrot.slane %v3173, 2
        %v3175 = vadd.f32 %v3173, %v3174
        %v3176 = vrot.slane %v3175, 1
        %v3177 = vadd.f32 %v3175, %v3176
        %v3178 = vrot.slane %v3041, 4
        %v3179 = vadd.f32 %v3041, %v3178
        %v3180 = vrot.slane %v3179, 2
        %v3181 = vadd.f32 %v3179, %v3180
        %v3182 = vrot.slane %v3181, 1
        %v3183 = vadd.f32 %v3181, %v3182
        %v3184 = vrot.slane %v3042, 4
        %v3185 = vadd.f32 %v3042, %v3184
        %v3186 = vrot.slane %v3185, 2
        %v3187 = vadd.f32 %v3185, %v3186
        %v3188 = vrot.slane %v3187, 1
        %v3189 = vadd.f32 %v3187, %v3188
        %v3190 = vrot.slane %v3043, 4
        %v3191 = vadd.f32 %v3043, %v3190
        %v3192 = vrot.slane %v3191, 2
        %v3193 = vadd.f32 %v3191, %v3192
        %v3194 = vrot.slane %v3193, 1
        %v3195 = vadd.f32 %v3193, %v3194
        %v3196 = vrot.slane %v3044, 4
        %v3197 = vadd.f32 %v3044, %v3196
        %v3198 = vrot.slane %v3197, 2
        %v3199 = vadd.f32 %v3197, %v3198
        %v3200 = vrot.slane %v3199, 1
        %v3201 = vadd.f32 %v3199, %v3200
        %v3202 = vrot.slane %v3045, 4
        %v3203 = vadd.f32 %v3045, %v3202
        %v3204 = vrot.slane %v3203, 2
        %v3205 = vadd.f32 %v3203, %v3204
        %v3206 = vrot.slane %v3205, 1
        %v3207 = vadd.f32 %v3205, %v3206
        %v3208 = vrot.slane %v3046, 4
        %v3209 = vadd.f32 %v3046, %v3208
        %v3210 = vrot.slane %v3209, 2
        %v3211 = vadd.f32 %v3209, %v3210
        %v3212 = vrot.slane %v3211, 1
        %v3213 = vadd.f32 %v3211, %v3212
        %v3214 = vrot.slane %v3047, 4
        %v3215 = vadd.f32 %v3047, %v3214
        %v3216 = vrot.slane %v3215, 2
        %v3217 = vadd.f32 %v3215, %v3216
        %v3218 = vrot.slane %v3217, 1
        %v3219 = vadd.f32 %v3217, %v3218
        %v3220 = vrot.slane %v3048, 4
        %v3221 = vadd.f32 %v3048, %v3220
        %v3222 = vrot.slane %v3221, 2
        %v3223 = vadd.f32 %v3221, %v3222
        %v3224 = vrot.slane %v3223, 1
        %v3225 = vadd.f32 %v3223, %v3224
        %v3226 = vrot.slane %v3049, 4
        %v3227 = vadd.f32 %v3049, %v3226
        %v3228 = vrot.slane %v3227, 2
        %v3229 = vadd.f32 %v3227, %v3228
        %v3230 = vrot.slane %v3229, 1
        %v3231 = vadd.f32 %v3229, %v3230
        %v3232 = vrot.slane %v3050, 4
        %v3233 = vadd.f32 %v3050, %v3232
        %v3234 = vrot.slane %v3233, 2
        %v3235 = vadd.f32 %v3233, %v3234
        %v3236 = vrot.slane %v3235, 1
        %v3237 = vadd.f32 %v3235, %v3236
        %v3238 = vrot.slane %v3051, 4
        %v3239 = vadd.f32 %v3051, %v3238
        %v3240 = vrot.slane %v3239, 2
        %v3241 = vadd.f32 %v3239, %v3240
        %v3242 = vrot.slane %v3241, 1
        %v3243 = vadd.f32 %v3241, %v3242
        %v3244 = vpack.c.bf16 %v3057, %v3057
        %v3245 = vpack.c.bf16 %v3063, %v3063
        %v3246 = vpack.c.bf16 %v3069, %v3069
        %v3247 = vpack.c.bf16 %v3075, %v3075
        %v3248 = vpack.c.bf16 %v3081, %v3081
        %v3249 = vpack.c.bf16 %v3087, %v3087
        %v3250 = vpack.c.bf16 %v3093, %v3093
        %v3251 = vpack.c.bf16 %v3099, %v3099
        %v3252 = vpack.c.bf16 %v3105, %v3105
        %v3253 = vpack.c.bf16 %v3111, %v3111
        %v3254 = vpack.c.bf16 %v3117, %v3117
        %v3255 = vpack.c.bf16 %v3123, %v3123
        %v3256 = vpack.c.bf16 %v3129, %v3129
        %v3257 = vpack.c.bf16 %v3135, %v3135
        %v3258 = vpack.c.bf16 %v3141, %v3141
        %v3259 = vpack.c.bf16 %v3147, %v3147
        %v3260 = vpack.c.bf16 %v3153, %v3153
        %v3261 = vpack.c.bf16 %v3159, %v3159
        %v3262 = vpack.c.bf16 %v3165, %v3165
        %v3263 = vpack.c.bf16 %v3171, %v3171
        %v3264 = vpack.c.bf16 %v3177, %v3177
        %v3265 = vpack.c.bf16 %v3183, %v3183
        %v3266 = vpack.c.bf16 %v3189, %v3189
        %v3267 = vpack.c.bf16 %v3195, %v3195
        %v3268 = vpack.c.bf16 %v3201, %v3201
        %v3269 = vpack.c.bf16 %v3207, %v3207
        %v3270 = vpack.c.bf16 %v3213, %v3213
        %v3271 = vpack.c.bf16 %v3219, %v3219
        %v3272 = vpack.c.bf16 %v3225, %v3225
        %v3273 = vpack.c.bf16 %v3231, %v3231
        %v3274 = vpack.c.bf16 %v3237, %v3237
        %v3275 = vpack.c.bf16 %v3243, %v3243
        %v3276 = vlaneseq
        %v3277 = vshrl.u32 %v3276, 7
        %v3278 = vsub.s32 0, %v3277
        %v3279 = vrot.slane %v894, %v3278
        %v3312 = vunpack.c.l.b16 %v3244
        %v3313 = vunpack.c.l.b16 %v3245
        %v3314 = vunpack.c.l.b16 %v3246
        %v3315 = vunpack.c.l.b16 %v3247
        %v3316 = vunpack.c.l.b16 %v3248
        %v3317 = vunpack.c.l.b16 %v3249
        %v3318 = vunpack.c.l.b16 %v3250
        %v3319 = vunpack.c.l.b16 %v3251
        %v3320 = vunpack.c.l.b16 %v3252
        %v3321 = vunpack.c.l.b16 %v3253
        %v3322 = vunpack.c.l.b16 %v3254
        %v3323 = vunpack.c.l.b16 %v3255
        %v3324 = vunpack.c.l.b16 %v3256
        %v3325 = vunpack.c.l.b16 %v3257
        %v3326 = vunpack.c.l.b16 %v3258
        %v3327 = vunpack.c.l.b16 %v3259
        %v3328 = vunpack.c.l.b16 %v3260
        %v3329 = vunpack.c.l.b16 %v3261
        %v3330 = vunpack.c.l.b16 %v3262
        %v3331 = vunpack.c.l.b16 %v3263
        %v3332 = vunpack.c.l.b16 %v3264
        %v3333 = vunpack.c.l.b16 %v3265
        %v3334 = vunpack.c.l.b16 %v3266
        %v3335 = vunpack.c.l.b16 %v3267
        %v3336 = vunpack.c.l.b16 %v3268
        %v3337 = vunpack.c.l.b16 %v3269
        %v3338 = vunpack.c.l.b16 %v3270
        %v3339 = vunpack.c.l.b16 %v3271
        %v3340 = vunpack.c.l.b16 %v3272
        %v3341 = vunpack.c.l.b16 %v3273
        %v3342 = vunpack.c.l.b16 %v3274
        %v3343 = vunpack.c.l.b16 %v3275
        %vm3344 = vcmask 1041409
        %v3345 = vsel %vm3344, %v3313, %v3312
        %vm3346 = vcmask 1042434
        %v3347 = vsel %vm3346, %v3314, %v3345
        %vm3348 = vcmask 1043459
        %v3349 = vsel %vm3348, %v3315, %v3347
        %vm3350 = vcmask 1044484
        %v3351 = vsel %vm3350, %v3316, %v3349
        %vm3352 = vcmask 1045509
        %v3353 = vsel %vm3352, %v3317, %v3351
        %vm3354 = vcmask 1046534
        %v3355 = vsel %vm3354, %v3318, %v3353
        %vm3356 = vcmask 1047559
        %v3357 = vsel %vm3356, %v3319, %v3355
        %v3358 = vsel %vm3344, %v3321, %v3320
        %v3359 = vsel %vm3346, %v3322, %v3358
        %v3360 = vsel %vm3348, %v3323, %v3359
        %v3361 = vsel %vm3350, %v3324, %v3360
        %v3362 = vsel %vm3352, %v3325, %v3361
        %v3363 = vsel %vm3354, %v3326, %v3362
        %v3364 = vsel %vm3356, %v3327, %v3363
        %v3365 = vsel %vm3344, %v3329, %v3328
        %v3366 = vsel %vm3346, %v3330, %v3365
        %v3367 = vsel %vm3348, %v3331, %v3366
        %v3368 = vsel %vm3350, %v3332, %v3367
        %v3369 = vsel %vm3352, %v3333, %v3368
        %v3370 = vsel %vm3354, %v3334, %v3369
        %v3371 = vsel %vm3356, %v3335, %v3370
        %v3372 = vsel %vm3344, %v3337, %v3336
        %v3373 = vsel %vm3346, %v3338, %v3372
        %v3374 = vsel %vm3348, %v3339, %v3373
        %v3375 = vsel %vm3350, %v3340, %v3374
        %v3376 = vsel %vm3352, %v3341, %v3375
        %v3377 = vsel %vm3354, %v3342, %v3376
        %v3378 = vsel %vm3356, %v3343, %v3377
        %v3379 = vpack.c.b16 %v3364, %v3357
        %v3380 = vpack.c.b16 %v3378, %v3371
        %v3399 = vunpack.c.l.b16 %v860
        %v3400 = vunpack.c.l.b16 %v861
        %v3401 = vunpack.c.l.b16 %v862
        %v3402 = vunpack.c.l.b16 %v863
        %v3403 = vunpack.c.l.b16 %v864
        %v3404 = vunpack.c.l.b16 %v865
        %v3405 = vunpack.c.l.b16 %v866
        %v3406 = vunpack.c.l.b16 %v867
        %v3407 = vunpack.c.l.b16 %v868
        %v3408 = vunpack.c.l.b16 %v869
        %v3409 = vunpack.c.l.b16 %v870
        %v3410 = vunpack.c.l.b16 %v871
        %v3411 = vunpack.c.l.b16 %v872
        %v3412 = vunpack.c.l.b16 %v873
        %v3413 = vunpack.c.l.b16 %v874
        %v3414 = vunpack.c.l.b16 %v875
        %v3415 = vpack.c.b16 %v3400, %v3399
        %v3416 = vpack.c.b16 %v3402, %v3401
        %v3417 = vpack.c.b16 %v3404, %v3403
        %v3418 = vpack.c.b16 %v3406, %v3405
        %v3419 = vpack.c.b16 %v3408, %v3407
        %v3420 = vpack.c.b16 %v3410, %v3409
        %v3421 = vpack.c.b16 %v3412, %v3411
        %v3422 = vpack.c.b16 %v3414, %v3413
        %3431 = vmatprep.subr.bf16.mxu0 0
        %3432 = vmatpush1.bf16.msra.mxu0 %v3415
        %3433 = vmatprep.subr.bf16.mxu0 0
        %3434 = vmatpush1.bf16.msra.mxu0 %v3416
        %3435 = vmatprep.subr.bf16.mxu0 0
        %3436 = vmatpush1.bf16.msra.mxu0 %v3417
        %3437 = vmatprep.subr.bf16.mxu0 0
        %3438 = vmatpush1.bf16.msra.mxu0 %v3418
        %3439 = vmatprep.subr.bf16.mxu0 0
        %3440 = vmatpush1.bf16.msra.mxu0 %v3419
        %3441 = vmatprep.subr.bf16.mxu0 0
        %3442 = vmatpush1.bf16.msra.mxu0 %v3420
        %3443 = vmatprep.subr.bf16.mxu0 0
        %3444 = vmatpush1.bf16.msra.mxu0 %v3421
        %3445 = vmatprep.subr.bf16.mxu0 0
        %3446 = vmatpush1.bf16.msra.mxu0 %v3422
        %3447 = vmatprep.subr.bf16.mxu0 0
        %3448 = vmatpush1.bf16.msra.mxu0 0
        %3449 = vmatprep.subr.bf16.mxu0 0
        %3450 = vmatpush1.bf16.msra.mxu0 0
        %3451 = vmatprep.subr.bf16.mxu0 0
        %3452 = vmatpush1.bf16.msra.mxu0 0
        %3453 = vmatprep.subr.bf16.mxu0 0
        %3454 = vmatpush1.bf16.msra.mxu0 0
        %3455 = vmatprep.subr.bf16.mxu0 0
        %3456 = vmatpush1.bf16.msra.mxu0 0
        %3457 = vmatprep.subr.bf16.mxu0 0
        %3458 = vmatpush1.bf16.msra.mxu0 0
        %3459 = vmatprep.subr.bf16.mxu0 0
        %3460 = vmatpush1.bf16.msra.mxu0 0
        %3461 = vmatprep.subr.bf16.mxu0 0
        %3462 = vmatpush1.bf16.msra.mxu0 0
        %3463 = vmatprep.mubr.bf16.mxu0 0
        %3464 = vmatmul.mubr.bf16.gmra.mrb[0].mxu0 %v3379
        %v3465 = vpop.f32.mrb[0].mxu0
        %v3466 = vadd.f32 %v3279, %v3465
        %v3467 = vpop.f32.mrb[0].mxu0
        %v3468 = vpop.f32.mrb[0].mxu0
        %v3469 = vadd.f32 %v3279, %v3468
        %v3470 = vpop.f32.mrb[0].mxu0
        %3471 = vmatprep.mubr.bf16.mxu0 0
        %3472 = vmatmul.mubr.bf16.gmra.mrb[0].mxu0 %v3380
        %v3473 = vpop.f32.mrb[0].mxu0
        %v3474 = vadd.f32 %v3279, %v3473
        %v3475 = vpop.f32.mrb[0].mxu0
        %v3476 = vpop.f32.mrb[0].mxu0
        %v3477 = vadd.f32 %v3279, %v3476
        %v3478 = vpop.f32.mrb[0].mxu0
        %3479 = vdwg.mxu0
        %v3480 = vmax.f32 %v3466, 0.0
        %v3481 = vmax.f32 %v3469, 0.0
        %v3482 = vmax.f32 %v3474, 0.0
        %v3483 = vmax.f32 %v3477, 0.0
        %vm3484 = vcmp.ne.f32.partialorder %v3466, %v3466
        %vm3485 = vcmp.ne.f32.partialorder %v3469, %v3469
        %vm3486 = vcmp.ne.f32.partialorder %v3474, %v3474
        %vm3487 = vcmp.ne.f32.partialorder %v3477, %v3477
        %v3488 = vadd.f32 %v3466, 0.0
        %v3489 = vadd.f32 %v3469, 0.0
        %v3490 = vadd.f32 %v3474, 0.0
        %v3491 = vadd.f32 %v3477, 0.0
        %v3492 = vand.u32 2147483647, %v3466
        %v3493 = vand.u32 2147483647, %v3469
        %v3494 = vand.u32 2147483647, %v3474
        %v3495 = vand.u32 2147483647, %v3477
        %v3496 = vsub.f32 0.0, %v3492
        %v3497 = vsub.f32 0.0, %v3493
        %v3498 = vsub.f32 0.0, %v3494
        %v3499 = vsub.f32 0.0, %v3495
        %v3500 = vmul.f32 %v3496, 1.442695
        %v3501 = vpow.pop %v3500
        %v3502 = vmul.f32 %v3497, 1.442695
        %v3503 = vpow.pop %v3502
        %v3504 = vmul.f32 %v3498, 1.442695
        %v3505 = vpow.pop %v3504
        %v3506 = vmul.f32 %v3499, 1.442695
        %v3507 = vpow.pop %v3506
        %v3508 = vadd.f32 %v3501, 1.0
        %v3509 = vlog2.pop %v3508
        %v3510 = vmul.f32 %v3509, 0.6931472
        %v3511 = vmul.f32 -0.5, %v3501
        %v3512 = vadd.f32 %v3511, 1.0
        %v3513 = vmul.f32 %v3512, %v3501
        %v3514 = vand.u32 2147483647, %v3501
        %vm3515 = vcmp.lt.f32.partialorder %v3514, 0.0004427343
        %v3516 = vsel %vm3515, %v3513, %v3510
        %v3517 = vadd.f32 %v3503, 1.0
        %v3518 = vlog2.pop %v3517
        %v3519 = vmul.f32 %v3518, 0.6931472
        %v3520 = vmul.f32 -0.5, %v3503
        %v3521 = vadd.f32 %v3520, 1.0
        %v3522 = vmul.f32 %v3521, %v3503
        %v3523 = vand.u32 2147483647, %v3503
        %vm3524 = vcmp.lt.f32.partialorder %v3523, 0.0004427343
        %v3525 = vsel %vm3524, %v3522, %v3519
        %v3526 = vadd.f32 %v3505, 1.0
        %v3527 = vlog2.pop %v3526
        %v3528 = vmul.f32 %v3527, 0.6931472
        %v3529 = vmul.f32 -0.5, %v3505
        %v3530 = vadd.f32 %v3529, 1.0
        %v3531 = vmul.f32 %v3530, %v3505
        %v3532 = vand.u32 2147483647, %v3505
        %vm3533 = vcmp.lt.f32.partialorder %v3532, 0.0004427343
        %v3534 = vsel %vm3533, %v3531, %v3528
        %v3535 = vadd.f32 %v3507, 1.0
        %v3536 = vlog2.pop %v3535
        %v3537 = vmul.f32 %v3536, 0.6931472
        %v3538 = vmul.f32 -0.5, %v3507
        %v3539 = vadd.f32 %v3538, 1.0
        %v3540 = vmul.f32 %v3539, %v3507
        %v3541 = vand.u32 2147483647, %v3507
        %vm3542 = vcmp.lt.f32.partialorder %v3541, 0.0004427343
        %v3543 = vsel %vm3542, %v3540, %v3537
        %v3544 = vadd.f32 %v3480, %v3516
        %v3545 = vadd.f32 %v3481, %v3525
        %v3546 = vadd.f32 %v3482, %v3534
        %v3547 = vadd.f32 %v3483, %v3543
        %v3548 = vsel %vm3484, %v3488, %v3544
        %v3549 = vsel %vm3485, %v3489, %v3545
        %v3550 = vsel %vm3486, %v3490, %v3546
        %v3551 = vsel %vm3487, %v3491, %v3547
        %v3552 = vsub.f32 %v3548, 0.6931472
        %v3553 = vsub.f32 %v3549, 0.6931472
        %v3554 = vsub.f32 %v3550, 0.6931472
        %v3555 = vsub.f32 %v3551, 0.6931472
        %v3556 = vpack.c.bf16 %v3553, %v3552
        %v3557 = vpack.c.bf16 %v3555, %v3554
        %v3558 = vlaneseq
        %v3559 = vshrl.u32 %v3558, 7
        %v3560 = vsub.s32 0, %v3559
        %v3561 = vrot.slane %v895, %v3560
        %v3578 = vunpack.c.l.b16 %v876
        %v3579 = vunpack.c.l.b16 %v877
        %v3580 = vunpack.c.l.b16 %v878
        %v3581 = vunpack.c.l.b16 %v879
        %v3582 = vunpack.c.l.b16 %v880
        %v3583 = vunpack.c.l.b16 %v881
        %v3584 = vunpack.c.l.b16 %v882
        %v3585 = vunpack.c.l.b16 %v883
        %v3586 = vunpack.c.l.b16 %v884
        %v3587 = vunpack.c.l.b16 %v885
        %v3588 = vunpack.c.l.b16 %v886
        %v3589 = vunpack.c.l.b16 %v887
        %v3590 = vunpack.c.l.b16 %v888
        %v3591 = vunpack.c.l.b16 %v889
        %v3592 = vunpack.c.l.b16 %v890
        %v3593 = vunpack.c.l.b16 %v891
        %v3594 = vpack.c.b16 %v3579, %v3578
        %v3595 = vpack.c.b16 %v3581, %v3580
        %v3596 = vpack.c.b16 %v3583, %v3582
        %v3597 = vpack.c.b16 %v3585, %v3584
        %v3598 = vpack.c.b16 %v3587, %v3586
        %v3599 = vpack.c.b16 %v3589, %v3588
        %v3600 = vpack.c.b16 %v3591, %v3590
        %v3601 = vpack.c.b16 %v3593, %v3592
        %3610 = vmatprep.subr.bf16.mxu0 0
        %3611 = vmatpush1.bf16.msra.mxu0 %v3594
        %3612 = vmatprep.subr.bf16.mxu0 0
        %3613 = vmatpush1.bf16.msra.mxu0 %v3595
        %3614 = vmatprep.subr.bf16.mxu0 0
        %3615 = vmatpush1.bf16.msra.mxu0 %v3596
        %3616 = vmatprep.subr.bf16.mxu0 0
        %3617 = vmatpush1.bf16.msra.mxu0 %v3597
        %3618 = vmatprep.subr.bf16.mxu0 0
        %3619 = vmatpush1.bf16.msra.mxu0 %v3598
        %3620 = vmatprep.subr.bf16.mxu0 0
        %3621 = vmatpush1.bf16.msra.mxu0 %v3599
        %3622 = vmatprep.subr.bf16.mxu0 0
        %3623 = vmatpush1.bf16.msra.mxu0 %v3600
        %3624 = vmatprep.subr.bf16.mxu0 0
        %3625 = vmatpush1.bf16.msra.mxu0 %v3601
        %3626 = vmatprep.subr.bf16.mxu0 0
        %3627 = vmatpush1.bf16.msra.mxu0 0
        %3628 = vmatprep.subr.bf16.mxu0 0
        %3629 = vmatpush1.bf16.msra.mxu0 0
        %3630 = vmatprep.subr.bf16.mxu0 0
        %3631 = vmatpush1.bf16.msra.mxu0 0
        %3632 = vmatprep.subr.bf16.mxu0 0
        %3633 = vmatpush1.bf16.msra.mxu0 0
        %3634 = vmatprep.subr.bf16.mxu0 0
        %3635 = vmatpush1.bf16.msra.mxu0 0
        %3636 = vmatprep.subr.bf16.mxu0 0
        %3637 = vmatpush1.bf16.msra.mxu0 0
        %3638 = vmatprep.subr.bf16.mxu0 0
        %3639 = vmatpush1.bf16.msra.mxu0 0
        %3640 = vmatprep.subr.bf16.mxu0 0
        %3641 = vmatpush1.bf16.msra.mxu0 0
        %3642 = vmatprep.mubr.bf16.mxu0 0
        %3643 = vmatmul.mubr.bf16.gmra.mrb[0].mxu0 %v3556
        %v3644 = vpop.f32.mrb[0].mxu0
        %v3645 = vadd.f32 %v3561, %v3644
        %v3646 = vpop.f32.mrb[0].mxu0
        %v3647 = vpop.f32.mrb[0].mxu0
        %v3648 = vadd.f32 %v3561, %v3647
        %v3649 = vpop.f32.mrb[0].mxu0
        %3650 = vmatprep.mubr.bf16.mxu0 0
        %3651 = vmatmul.mubr.bf16.gmra.mrb[0].mxu0 %v3557
        %v3652 = vpop.f32.mrb[0].mxu0
        %v3653 = vadd.f32 %v3561, %v3652
        %v3654 = vpop.f32.mrb[0].mxu0
        %v3655 = vpop.f32.mrb[0].mxu0
        %v3656 = vadd.f32 %v3561, %v3655
        %v3657 = vpop.f32.mrb[0].mxu0
        %3658 = vdwg.mxu0
        %3659 = vst [vmem:[%s820] sm:$0xff] %v3645
        %3660 = vst [vmem:[%s820 + $0x8] sm:$0xff] %v3648
        %3661 = vst [vmem:[%s820 + $0x10] sm:$0xff] %v3653
        %3662 = vst [vmem:[%s820 + $0x18] sm:$0xff] %v3656
        %s3663 = sand.u32 %s194, 1
        %s3664 = scalar_lea.sflag [#allocation6], %s3663
        %s3665 = sand.u32 %s194, 1
        %s3666 = smul.addr %s3665, 32
        %s3667 = scalar_lea.vmem [#allocation5], %s3666
        // Predicated region
        $region162: #{interaction_block.1} parent=148 // pred_check
          %p3668 = pneg %p204
        $region163: #{interaction_block.1} parent=148 // pred_check_branch
          %3670 = sbr.rel (%p3668) target = $region165
        $region164: #{interaction_block.1} parent=148 // pred_region
          %s3671 = smul.u32 4, %s24
          %s3673 = ssub.s32 512, 512
          %3674 = vsyncadd %s3664, %s3673
          %s3675 = smul.addr %s3671, 2
          %s3676 = sadd.s32 %s25, %s3675
          %s3677 = smul.addr %s3676, 128
          %s3678 = scalar_lea.hbm %s6, %s3677
          %s3679 = sshll.u32 %s3667, 4
          %s3680 = int_to_ptr.vmem [resolvable:$true] %s3679
          %3685 = dma.vmem_to_hbm [thread:$0]  %s3680, 512, %s3678, %s3664, 128, 256, 8
        $region165: #{interaction_block.1} parent=148 // pred_fallthru
          _
      $region149: #{interaction_block.1} parent=5 // pred_fallthru
        _
      %p3686 = scmp.le.s32.totalorder 2, %s15
      // Predicated region
      $region166: #{interaction_block.1} parent=5 // pred_check
        %p3687 = pneg %p3686
      $region167: #{interaction_block.1} parent=5 // pred_check_branch
        %3689 = sbr.rel (%p3687) target = $region169
      $region168: #{interaction_block.1} parent=5 // pred_region
        %s3690 = ssub.s32 %s15, 2
        // Predicated region
        $region170: #{interaction_block.1} parent=168 // pred_check
          %p3691 = pneg %p210
        $region171: #{interaction_block.1} parent=168 // pred_check_branch
          %3693 = sbr.rel (%p3691) target = $region173
        $region172: #{interaction_block.1} parent=168 // pred_region
          %s3694 = sand.u32 %s195, 1
          %s3695 = scalar_lea.sflag [#allocation6], %s3694
          %s3696 = sand.u32 %s195, 1
          %s3697 = smul.addr %s3696, 32
          %s3698 = scalar_lea.vmem [#allocation5], %s3697
          %3699 = dma.done %s3695, 512
        $region173: #{interaction_block.1} parent=168 // pred_fallthru
          _
      $region169: #{interaction_block.1} parent=5 // pred_fallthru
        _
    $region6: #{interaction_block.1} parent=1 // loop_footer
      %s19 = sadd.s32 1, %s15
    $region7: #{interaction_block.1} parent=1 // loop_footer_branch
      %14 = sbr.rel target = $region3
    $region8: #{interaction_block.1} parent=1 // loop_exit
      _
    %3700 = vsyncpa [#allocation6], 1
    %s3701 = scalar_lea.sflag [#allocation6], 1
    %3702 = vsyncpa %s3701, 1

</llo_original>
